<compile_context>
chip_gen: v7x
topology: tpu7x:2x2x1
jax: 0.10.0
libtpu: 0.0.40
codegen_flags: <defaults>
</compile_context>

<pallas_src>
import functools
import math

import jax
import jax.numpy as jnp
from jax.experimental import pallas as pl
from jax.experimental.pallas import tpu as pltpu


def _round_up(x, m):
    return (x + m - 1) // m * m


def _layer_norm(x, g, b, eps=1e-5):
    m = jnp.mean(x, axis=-1, keepdims=True)
    v = jnp.mean(jnp.square(x - m), axis=-1, keepdims=True)
    return (x - m) * jax.lax.rsqrt(v + eps) * g + b


def _silu(x):
    return x * jax.nn.sigmoid(x)


def _mm(a_f32, w_bf16_ref, b_f32_ref):
    """bf16 MXU matmul with f32 accumulation + f32 bias (LN/softmax/residuals stay f32)."""
    return jnp.dot(a_f32.astype(jnp.bfloat16), w_bf16_ref[...],
                   preferred_element_type=jnp.float32) + b_f32_ref[...]


def conformer_block_kernel(
    # scalar prefetch
    len_ref,                                           # SMEM (B,) int32
    # blocked inputs
    x_ref,                                             # (1, TQ, D) current time block, f32
    halo_ref,                                          # (1, 1, HP, D) previous HP frames, f32
    # feed-forward module 1
    ff1_ln_g, ff1_ln_b, ff1_w1, ff1_b1, ff1_w2, ff1_b2,
    # causal convolution module (GLU pointwise weights pre-split in the wrapper)
    cv_ln_g, cv_ln_b, cv_w_val, cv_b_val, cv_w_gate, cv_b_gate,
    cv_dw_w, cv_dw_b, cv_ln2_g, cv_ln2_b, cv_pw2_w, cv_pw2_b,
    # causal multi-head attention module (QKV fused in the wrapper)
    mh_ln_g, mh_ln_b, w_qkv, b_qkv, w_o, b_o,
    # feed-forward module 2
    ff2_ln_g, ff2_ln_b, ff2_w1, ff2_b1, ff2_w2, ff2_b2,
    # final timewise layer norm
    fin_ln_g, fin_ln_b,
    # output
    o_ref,                                             # (1, TQ, D)
    # scratch
    attn_scr,                                          # (TQ, D) f32 VMEM
    *, num_heads, num_prev, kernel_size, halo, block_q,
):
    b = pl.program_id(0)
    j = pl.program_id(1)
    HP, TQ, K = halo, block_q, kernel_size

    # window = [previous HP frames | TQ current frames]
    xw = jnp.concatenate([halo_ref[0, 0], x_ref[0]], axis=0)       # (W, D) f32
    W, D = xw.shape
    length = len_ref[b]
    t0 = j * TQ                                                    # abs pos of first current frame

    # per-tile absolute positions (small iotas + scalar offsets; no (T,T) iotas)
    w_pos = (t0 - HP) + jax.lax.broadcasted_iota(jnp.int32, (W, 1), 0)
    q_pos = t0 + jax.lax.broadcasted_iota(jnp.int32, (TQ, 1), 0)
    k_pos = (t0 - HP) + jax.lax.broadcasted_iota(jnp.int32, (1, W), 1)

    def ff(h, ln_g, ln_b, w1, b1, w2, b2):
        h = _layer_norm(h, ln_g[...], ln_b[...])
        h = _silu(_mm(h, w1, b1))
        return _mm(h, w2, b2)                                      # dropout == identity

    # ---------------- feed-forward module 1 (macaron, half residual), full window ----------
    x1 = xw + 0.5 * ff(xw, ff1_ln_g, ff1_ln_b, ff1_w1, ff1_b1, ff1_w2, ff1_b2)

    # ---------------- causal convolution module ----------------
    hc = _layer_norm(x1, cv_ln_g[...], cv_ln_b[...])
    h = _mm(hc, cv_w_val, cv_b_val) * jax.nn.sigmoid(_mm(hc, cv_w_gate, cv_b_gate))  # GLU
    h = jnp.where(w_pos >= 0, h, 0.0)              # causal zero-pad at the true sequence start
    dw = cv_dw_w[...]                              # (K, C) f32
    # causal depthwise conv: out[t] = sum_m h[t-m] * dw[K-1-m]; pltpu.roll keeps the shifted
    # adds on the XLU (no zero-pad buffer / unaligned sublane slices).  Rows that receive
    # wrapped data (w < K-1) are never consumed: needed rows start at HP - num_prev >= K-1.
    acc = h * dw[K - 1:K, :]
    for m in range(1, K):
        acc = acc + pltpu.roll(h, shift=m, axis=0) * dw[K - 1 - m:K - m, :]
    h = acc + cv_dw_b[...]
    # TODO(synk): conv-module norm implemented as timewise LayerNorm (BatchNorm is non-causal).
    h = _silu(_layer_norm(h, cv_ln2_g[...], cv_ln2_b[...]))
    x2 = x1 + _mm(h, cv_pw2_w, cv_pw2_b)

    # ---------------- causal windowed multi-head self-attention ----------------
    hm = _layer_norm(x2, mh_ln_g[...], mh_ln_b[...])
    qkv = _mm(hm, w_qkv, b_qkv)                    # one (W,D)x(D,3D) MXU pass (fused QKV)
    q = qkv[HP:, 0:D]                              # queries: current frames only
    kk = qkv[:, D:2 * D]                           # keys / values: full window
    vv = qkv[:, 2 * D:3 * D]
    dh = D // num_heads
    scale = 1.0 / math.sqrt(dh)
    mask = ((k_pos <= q_pos) & (k_pos >= q_pos - num_prev)
            & (k_pos >= 0) & (k_pos < length))     # (TQ, W) window/causal/length mask
    for hd in range(num_heads):
        sl = slice(hd * dh, (hd + 1) * dh)
        s = jnp.dot(q[:, sl].astype(jnp.bfloat16),
                    kk[:, sl].T.astype(jnp.bfloat16),
                    preferred_element_type=jnp.float32) * scale
        s = jnp.where(mask, s, -1e9)
        s = s - jnp.max(s, axis=-1, keepdims=True)
        p = jnp.exp(s)
        p = p * pl.reciprocal(jnp.sum(p, axis=-1, keepdims=True), approx=True)
        # write each head's output straight into its slice of the VMEM accumulator
        attn_scr[:, sl] = jnp.dot(p.astype(jnp.bfloat16),
                                  vv[:, sl].astype(jnp.bfloat16),
                                  preferred_element_type=jnp.float32)
    x3 = x2[HP:, :] + _mm(attn_scr[...], w_o, b_o)

    # ---------------- feed-forward module 2 (half residual), current frames only ----------
    x4 = x3 + 0.5 * ff(x3, ff2_ln_g, ff2_ln_b, ff2_w1, ff2_b1, ff2_w2, ff2_b2)

    # ---------------- final timewise layer norm; zero frames past the sequence length ------
    y = _layer_norm(x4, fin_ln_g[...], fin_ln_b[...])
    y = jnp.where(q_pos < length, y, 0.0)
    o_ref[0] = y.astype(o_ref.dtype)


def make_params(key, D, F, C, K):
    """Parameters in the PyTorch module's natural (unfused, f32) form."""
    ks = iter(jax.random.split(key, 16))

    def w(shape, fan_in):
        return jax.random.normal(next(ks), shape, jnp.float32) / jnp.sqrt(float(fan_in))

    ones = lambda s: jnp.ones(s, jnp.float32)
    zeros = lambda s: jnp.zeros(s, jnp.float32)
    return dict(
        ff1_ln_g=ones((1, D)), ff1_ln_b=zeros((1, D)),
        ff1_w1=w((D, F), D), ff1_b1=zeros((1, F)), ff1_w2=w((F, D), F), ff1_b2=zeros((1, D)),
        cv_ln_g=ones((1, D)), cv_ln_b=zeros((1, D)),
        cv_pw1_w=w((D, 2 * C), D), cv_pw1_b=zeros((1, 2 * C)),
        cv_dw_w=w((K, C), K), cv_dw_b=zeros((1, C)),
        cv_ln2_g=ones((1, C)), cv_ln2_b=zeros((1, C)),
        cv_pw2_w=w((C, D), C), cv_pw2_b=zeros((1, D)),
        mh_ln_g=ones((1, D)), mh_ln_b=zeros((1, D)),
        wq=w((D, D), D), bq=zeros((1, D)), wk=w((D, D), D), bk=zeros((1, D)),
        wv=w((D, D), D), bv=zeros((1, D)), wo=w((D, D), D), bo=zeros((1, D)),
        ff2_ln_g=ones((1, D)), ff2_ln_b=zeros((1, D)),
        ff2_w1=w((D, F), D), ff2_b1=zeros((1, F)), ff2_w2=w((F, D), F), ff2_b2=zeros((1, D)),
        fin_ln_g=ones((1, D)), fin_ln_b=zeros((1, D)),
    )


def _pack_params(p):
    """Fuse QKV, split the GLU pointwise conv, cast all MXU weights to bf16 (biases stay f32)."""
    bf = lambda a: a.astype(jnp.bfloat16)
    C = p["cv_dw_w"].shape[1]
    w_qkv = bf(jnp.concatenate([p["wq"], p["wk"], p["wv"]], axis=1))
    b_qkv = jnp.concatenate([p["bq"], p["bk"], p["bv"]], axis=1)
    return [
        p["ff1_ln_g"], p["ff1_ln_b"], bf(p["ff1_w1"]), p["ff1_b1"], bf(p["ff1_w2"]), p["ff1_b2"],
        p["cv_ln_g"], p["cv_ln_b"],
        bf(p["cv_pw1_w"][:, :C]), p["cv_pw1_b"][:, :C],        # GLU value branch
        bf(p["cv_pw1_w"][:, C:]), p["cv_pw1_b"][:, C:],        # GLU gate branch
        p["cv_dw_w"], p["cv_dw_b"], p["cv_ln2_g"], p["cv_ln2_b"],
        bf(p["cv_pw2_w"]), p["cv_pw2_b"],
        p["mh_ln_g"], p["mh_ln_b"], w_qkv, b_qkv, bf(p["wo"]), p["bo"],
        p["ff2_ln_g"], p["ff2_ln_b"], bf(p["ff2_w1"]), p["ff2_b1"], bf(p["ff2_w2"]), p["ff2_b2"],
        p["fin_ln_g"], p["fin_ln_b"],
    ]


def causal_conformer_block_btd(x, x_lengths, params, *, num_heads, num_prev,
                               kernel_size, block_q=512):
    """Core entry point, time-major: (B, T, D) -> (B, T, D)."""
    B, T, D = x.shape
    assert D % num_heads == 0
    x = x.astype(jnp.float32)

    HP = _round_up(max(num_prev + kernel_size - 1, 1), 8)    # halo: attention + conv lookback
    TQ = max(_round_up(min(block_q, max(T, 1)), 8), HP)      # frames per grid step
    Tp = _round_up(max(T, TQ), TQ)
    if Tp != T:
        x = jnp.pad(x, ((0, 0), (0, Tp - T), (0, 0)))
    NT = Tp // TQ

    # Per-block halo source = last HP frames of the previous block (zeros before t = 0).
    xb = x.reshape(B, NT, TQ, D)
    halo_src = jnp.concatenate(
        [jnp.zeros((B, 1, HP, D), jnp.float32), xb[:, :NT - 1, TQ - HP:, :]], axis=1)

    kparams = _pack_params(params)

    # Explicit scoped-VMEM limit from a (generous) block + weight footprint estimate; the
    # default 16/32 MiB scoped limit is far below physical.  Keep headroom under the 64 MiB
    # v7x physical ceiling.
    W = HP + TQ
    wide = max(3 * D, int(params["ff1_w1"].shape[1]), 2 * int(params["cv_dw_w"].shape[1]))
    weight_bytes = sum(a.size * a.dtype.itemsize for a in kparams)
    vmem_need = 2 * weight_bytes + 12 * 4 * W * wide + 8 * 4 * TQ * W + 6 * 4 * W * D
    vmem_limit = int(min(max(vmem_need, 32 * 2 ** 20), 56 * 2 ** 20))

    kernel = functools.partial(
        conformer_block_kernel, num_heads=num_heads, num_prev=num_prev,
        kernel_size=kernel_size, halo=HP, block_q=TQ)

    # Grid-invariant weights: constant block index => the pipeline DMAs them once and keeps
    # them resident (no per-step HBM traffic).
    wspec = lambda shp: pl.BlockSpec(shp, lambda b, j, lens: (0,) * len(shp))
    grid_spec = pltpu.PrefetchScalarGridSpec(
        num_scalar_prefetch=1,
        grid=(B, NT),
        in_specs=[pl.BlockSpec((1, TQ, D), lambda b, j, lens: (b, j, 0)),
                  pl.BlockSpec((1, 1, HP, D), lambda b, j, lens: (b, j, 0, 0))]
                 + [wspec(a.shape) for a in kparams],
        out_specs=pl.BlockSpec((1, TQ, D), lambda b, j, lens: (b, j, 0)),
        scratch_shapes=[pltpu.VMEM((TQ, D), jnp.float32)],
    )
    out = pl.pallas_call(
        kernel,
        grid_spec=grid_spec,
        out_shape=jax.ShapeDtypeStruct((B, Tp, D), jnp.float32),
        compiler_params=pltpu.CompilerParams(
            dimension_semantics=("parallel", "parallel"),
            vmem_limit_bytes=vmem_limit),
    )(x_lengths.astype(jnp.int32), x, halo_src, *kparams)
    return out[:, :T, :]


def causal_conformer_block(x_ncl, x_lengths, params, *, num_heads, num_prev,
                           kernel_size, block_q=512):
    """PyTorch-compatible channels-first interface: (B, D, T) -> (B, D, T).

    Callers that already hold (B, T, D) activations should call
    `causal_conformer_block_btd` directly and avoid the two HBM transposes below."""
    x = jnp.transpose(x_ncl, (0, 2, 1))
    y = causal_conformer_block_btd(x, x_lengths, params, num_heads=num_heads,
                                   num_prev=num_prev, kernel_size=kernel_size,
                                   block_q=block_q)
    return jnp.transpose(y, (0, 2, 1))


if __name__ == "__main__":
    # small shapes consistent with the module (production shapes should use D/F/C % 128 == 0
    # and a 512-1024 frame time tile)
    B, D, T = 2, 64, 64            # batch, input_size (features), time
    F, C, K, H = 128, 64, 3, 4     # ff_hidden, conv_hidden, conv_kernel, mha heads
    NUM_PREV = 8                   # num_previous_frames (attention look-back)

    key = jax.random.PRNGKey(0)
    kx, kp = jax.random.split(key)
    x = jax.random.normal(kx, (B, D, T), jnp.float32)          # (B, D, T) channels-first
    x_lengths = jnp.array([T, 50], dtype=jnp.int32)
    params = make_params(kp, D, F, C, K)

    out = causal_conformer_block(
        x, x_lengths, params, num_heads=H, num_prev=NUM_PREV, kernel_size=K,
        block_q=32,   # small time tile so the demo exercises the blocking + halo path
    )
    out = jax.block_until_ready(out)
    assert out.shape == (B, D, T) and out.dtype == jnp.float32
    assert bool(jnp.all(jnp.isfinite(out)))
    print("KERNEL_OK")
</pallas_src>

<mosaic_0001>
module attributes {stable_mosaic.version = 11 : i64} {
  func.func @conformer_block_kernel(%arg0: i32, %arg1: i32, %arg2: memref<2xi32, #tpu.memory_space<smem>>, %arg3: memref<1x32x64xf32, #tpu.memory_space<vmem>>, %arg4: memref<1x1x16x64xf32, #tpu.memory_space<vmem>>, %arg5: memref<1x64xf32, #tpu.memory_space<vmem>>, %arg6: memref<1x64xf32, #tpu.memory_space<vmem>>, %arg7: memref<64x128xbf16, #tpu.memory_space<vmem>>, %arg8: memref<1x128xf32, #tpu.memory_space<vmem>>, %arg9: memref<128x64xbf16, #tpu.memory_space<vmem>>, %arg10: memref<1x64xf32, #tpu.memory_space<vmem>>, %arg11: memref<1x64xf32, #tpu.memory_space<vmem>>, %arg12: memref<1x64xf32, #tpu.memory_space<vmem>>, %arg13: memref<64x64xbf16, #tpu.memory_space<vmem>>, %arg14: memref<1x64xf32, #tpu.memory_space<vmem>>, %arg15: memref<64x64xbf16, #tpu.memory_space<vmem>>, %arg16: memref<1x64xf32, #tpu.memory_space<vmem>>, %arg17: memref<3x64xf32, #tpu.memory_space<vmem>>, %arg18: memref<1x64xf32, #tpu.memory_space<vmem>>, %arg19: memref<1x64xf32, #tpu.memory_space<vmem>>, %arg20: memref<1x64xf32, #tpu.memory_space<vmem>>, %arg21: memref<64x64xbf16, #tpu.memory_space<vmem>>, %arg22: memref<1x64xf32, #tpu.memory_space<vmem>>, %arg23: memref<1x64xf32, #tpu.memory_space<vmem>>, %arg24: memref<1x64xf32, #tpu.memory_space<vmem>>, %arg25: memref<64x192xbf16, #tpu.memory_space<vmem>>, %arg26: memref<1x192xf32, #tpu.memory_space<vmem>>, %arg27: memref<64x64xbf16, #tpu.memory_space<vmem>>, %arg28: memref<1x64xf32, #tpu.memory_space<vmem>>, %arg29: memref<1x64xf32, #tpu.memory_space<vmem>>, %arg30: memref<1x64xf32, #tpu.memory_space<vmem>>, %arg31: memref<64x128xbf16, #tpu.memory_space<vmem>>, %arg32: memref<1x128xf32, #tpu.memory_space<vmem>>, %arg33: memref<128x64xbf16, #tpu.memory_space<vmem>>, %arg34: memref<1x64xf32, #tpu.memory_space<vmem>>, %arg35: memref<1x64xf32, #tpu.memory_space<vmem>>, %arg36: memref<1x64xf32, #tpu.memory_space<vmem>>, %arg37: memref<1x32x64xf32, #tpu.memory_space<vmem>>, %arg38: memref<32x64xf32, #tpu.memory_space<vmem>>) attributes {dimension_semantics = [#tpu.dimension_semantics<parallel>, #tpu.dimension_semantics<parallel>], iteration_bounds = array<i64: 2, 2>, scalar_prefetch = 1 : i64, scratch_operands = 1 : i64, tpu.core_type = #tpu.core_type<tc>, window_params = [{transform_indices = @transform_0, window_bounds = array<i64: 1, 32, 64>}, {transform_indices = @transform_1, window_bounds = array<i64: 1, 1, 16, 64>}, {pipeline_mode = #tpu.pipeline_mode<synchronous>, transform_indices = @transform_2, window_bounds = array<i64: 1, 64>}, {pipeline_mode = #tpu.pipeline_mode<synchronous>, transform_indices = @transform_3, window_bounds = array<i64: 1, 64>}, {pipeline_mode = #tpu.pipeline_mode<synchronous>, transform_indices = @transform_4, window_bounds = array<i64: 64, 128>}, {pipeline_mode = #tpu.pipeline_mode<synchronous>, transform_indices = @transform_5, window_bounds = array<i64: 1, 128>}, {pipeline_mode = #tpu.pipeline_mode<synchronous>, transform_indices = @transform_6, window_bounds = array<i64: 128, 64>}, {pipeline_mode = #tpu.pipeline_mode<synchronous>, transform_indices = @transform_7, window_bounds = array<i64: 1, 64>}, {pipeline_mode = #tpu.pipeline_mode<synchronous>, transform_indices = @transform_8, window_bounds = array<i64: 1, 64>}, {pipeline_mode = #tpu.pipeline_mode<synchronous>, transform_indices = @transform_9, window_bounds = array<i64: 1, 64>}, {pipeline_mode = #tpu.pipeline_mode<synchronous>, transform_indices = @transform_10, window_bounds = array<i64: 64, 64>}, {pipeline_mode = #tpu.pipeline_mode<synchronous>, transform_indices = @transform_11, window_bounds = array<i64: 1, 64>}, {pipeline_mode = #tpu.pipeline_mode<synchronous>, transform_indices = @transform_12, window_bounds = array<i64: 64, 64>}, {pipeline_mode = #tpu.pipeline_mode<synchronous>, transform_indices = @transform_13, window_bounds = array<i64: 1, 64>}, {pipeline_mode = #tpu.pipeline_mode<synchronous>, transform_indices = @transform_14, window_bounds = array<i64: 3, 64>}, {pipeline_mode = #tpu.pipeline_mode<synchronous>, transform_indices = @transform_15, window_bounds = array<i64: 1, 64>}, {pipeline_mode = #tpu.pipeline_mode<synchronous>, transform_indices = @transform_16, window_bounds = array<i64: 1, 64>}, {pipeline_mode = #tpu.pipeline_mode<synchronous>, transform_indices = @transform_17, window_bounds = array<i64: 1, 64>}, {pipeline_mode = #tpu.pipeline_mode<synchronous>, transform_indices = @transform_18, window_bounds = array<i64: 64, 64>}, {pipeline_mode = #tpu.pipeline_mode<synchronous>, transform_indices = @transform_19, window_bounds = array<i64: 1, 64>}, {pipeline_mode = #tpu.pipeline_mode<synchronous>, transform_indices = @transform_20, window_bounds = array<i64: 1, 64>}, {pipeline_mode = #tpu.pipeline_mode<synchronous>, transform_indices = @transform_21, window_bounds = array<i64: 1, 64>}, {pipeline_mode = #tpu.pipeline_mode<synchronous>, transform_indices = @transform_22, window_bounds = array<i64: 64, 192>}, {pipeline_mode = #tpu.pipeline_mode<synchronous>, transform_indices = @transform_23, window_bounds = array<i64: 1, 192>}, {pipeline_mode = #tpu.pipeline_mode<synchronous>, transform_indices = @transform_24, window_bounds = array<i64: 64, 64>}, {pipeline_mode = #tpu.pipeline_mode<synchronous>, transform_indices = @transform_25, window_bounds = array<i64: 1, 64>}, {pipeline_mode = #tpu.pipeline_mode<synchronous>, transform_indices = @transform_26, window_bounds = array<i64: 1, 64>}, {pipeline_mode = #tpu.pipeline_mode<synchronous>, transform_indices = @transform_27, window_bounds = array<i64: 1, 64>}, {pipeline_mode = #tpu.pipeline_mode<synchronous>, transform_indices = @transform_28, window_bounds = array<i64: 64, 128>}, {pipeline_mode = #tpu.pipeline_mode<synchronous>, transform_indices = @transform_29, window_bounds = array<i64: 1, 128>}, {pipeline_mode = #tpu.pipeline_mode<synchronous>, transform_indices = @transform_30, window_bounds = array<i64: 128, 64>}, {pipeline_mode = #tpu.pipeline_mode<synchronous>, transform_indices = @transform_31, window_bounds = array<i64: 1, 64>}, {pipeline_mode = #tpu.pipeline_mode<synchronous>, transform_indices = @transform_32, window_bounds = array<i64: 1, 64>}, {pipeline_mode = #tpu.pipeline_mode<synchronous>, transform_indices = @transform_33, window_bounds = array<i64: 1, 64>}, {transform_indices = @transform_34, window_bounds = array<i64: 1, 32, 64>}]} {
    %c0 = arith.constant 0 : index
    %c0_0 = arith.constant 0 : index
    %c0_1 = arith.constant 0 : index
    %c0_2 = arith.constant 0 : index
    %0 = vector.load %arg4[%c0, %c0_0, %c0_1, %c0_2] : memref<1x1x16x64xf32, #tpu.memory_space<vmem>>, vector<1x1x16x64xf32>
    %1 = vector.shape_cast %0 : vector<1x1x16x64xf32> to vector<16x64xf32>
    %c0_3 = arith.constant 0 : index
    %c0_4 = arith.constant 0 : index
    %c0_5 = arith.constant 0 : index
    %2 = vector.load %arg3[%c0_3, %c0_4, %c0_5] : memref<1x32x64xf32, #tpu.memory_space<vmem>>, vector<1x32x64xf32>
    %3 = vector.shape_cast %2 : vector<1x32x64xf32> to vector<32x64xf32>
    %4 = tpu.concatenate %1, %3 in 0 : vector<16x64xf32>, vector<32x64xf32> -> vector<48x64xf32>
    %5 = arith.index_cast %arg0 : i32 to index
    %6 = memref.load %arg2[%5] : memref<2xi32, #tpu.memory_space<smem>>
    %c32_i32 = arith.constant 32 : i32
    %7 = arith.muli %arg1, %c32_i32 : i32
    %c16_i32 = arith.constant 16 : i32
    %8 = arith.subi %7, %c16_i32 : i32
    %9 = tpu.iota {dimensions = array<i32: 0>} : vector<48x1xi32>
    %10 = vector.broadcast %8 : i32 to vector<48x1xi32>
    %11 = arith.addi %10, %9 : vector<48x1xi32>
    %12 = tpu.iota {dimensions = array<i32: 0>} : vector<32x1xi32>
    %13 = vector.broadcast %7 : i32 to vector<32x1xi32>
    %14 = arith.addi %13, %12 : vector<32x1xi32>
    %c16_i32_6 = arith.constant 16 : i32
    %15 = arith.subi %7, %c16_i32_6 : i32
    %16 = tpu.iota {dimensions = array<i32: 1>} : vector<1x48xi32>
    %17 = vector.broadcast %15 : i32 to vector<1x48xi32>
    %18 = arith.addi %17, %16 : vector<1x48xi32>
    %c0_7 = arith.constant 0 : index
    %c0_8 = arith.constant 0 : index
    %19 = vector.load %arg5[%c0_7, %c0_8] : memref<1x64xf32, #tpu.memory_space<vmem>>, vector<1x64xf32>
    %c0_9 = arith.constant 0 : index
    %c0_10 = arith.constant 0 : index
    %20 = vector.load %arg6[%c0_9, %c0_10] : memref<1x64xf32, #tpu.memory_space<vmem>>, vector<1x64xf32>
    %cst = arith.constant dense<0.000000e+00> : vector<48xf32>
    %21 = vector.multi_reduction <add>, %4, %cst [1] : vector<48x64xf32> to vector<48xf32>
    %22 = vector.shape_cast %21 : vector<48xf32> to vector<48x1xf32>
    %cst_11 = arith.constant 6.400000e+01 : f32
    %23 = vector.broadcast %cst_11 : f32 to vector<48x1xf32>
    %24 = arith.divf %22, %23 : vector<48x1xf32>
    %25 = vector.broadcast %24 : vector<48x1xf32> to vector<48x64xf32>
    %26 = arith.subf %4, %25 : vector<48x64xf32>
    %27 = arith.mulf %26, %26 : vector<48x64xf32>
    %cst_12 = arith.constant dense<0.000000e+00> : vector<48xf32>
    %28 = vector.multi_reduction <add>, %27, %cst_12 [1] : vector<48x64xf32> to vector<48xf32>
    %29 = vector.shape_cast %28 : vector<48xf32> to vector<48x1xf32>
    %cst_13 = arith.constant 6.400000e+01 : f32
    %30 = vector.broadcast %cst_13 : f32 to vector<48x1xf32>
    %31 = arith.divf %29, %30 : vector<48x1xf32>
    %32 = vector.broadcast %24 : vector<48x1xf32> to vector<48x64xf32>
    %33 = arith.subf %4, %32 : vector<48x64xf32>
    %cst_14 = arith.constant 9.99999974E-6 : f32
    %34 = vector.broadcast %cst_14 : f32 to vector<48x1xf32>
    %35 = arith.addf %31, %34 : vector<48x1xf32>
    %36 = math.rsqrt %35 : vector<48x1xf32>
    %37 = vector.broadcast %36 : vector<48x1xf32> to vector<48x64xf32>
    %38 = arith.mulf %33, %37 : vector<48x64xf32>
    %39 = vector.broadcast %19 : vector<1x64xf32> to vector<48x64xf32>
    %40 = arith.mulf %38, %39 : vector<48x64xf32>
    %41 = vector.broadcast %20 : vector<1x64xf32> to vector<48x64xf32>
    %42 = arith.addf %40, %41 : vector<48x64xf32>
    %43 = arith.truncf %42 : vector<48x64xf32> to vector<48x64xbf16>
    %c0_15 = arith.constant 0 : index
    %c0_16 = arith.constant 0 : index
    %44 = vector.load %arg7[%c0_15, %c0_16] : memref<64x128xbf16, #tpu.memory_space<vmem>>, vector<64x128xbf16>
    %cst_17 = arith.constant dense<0.000000e+00> : vector<48x128xf32>
    %45 = tpu.matmul %43, %44, %cst_17 {dimension_numbers = #tpu.dot_dimension_numbers<[1], [0], [0], [1], [0, 0, 1, 1], [], []>} : vector<48x64xbf16>, vector<64x128xbf16>, vector<48x128xf32> -> vector<48x128xf32>
    %c0_18 = arith.constant 0 : index
    %c0_19 = arith.constant 0 : index
    %46 = vector.load %arg8[%c0_18, %c0_19] : memref<1x128xf32, #tpu.memory_space<vmem>>, vector<1x128xf32>
    %47 = vector.broadcast %46 : vector<1x128xf32> to vector<48x128xf32>
    %48 = arith.addf %45, %47 : vector<48x128xf32>
    %49 = arith.negf %48 : vector<48x128xf32>
    %50 = math.exp %49 : vector<48x128xf32>
    %cst_20 = arith.constant 1.000000e+00 : f32
    %51 = vector.broadcast %cst_20 : f32 to vector<48x128xf32>
    %52 = arith.addf %51, %50 : vector<48x128xf32>
    %53 = arith.divf %51, %52 : vector<48x128xf32>
    %54 = arith.mulf %48, %53 : vector<48x128xf32>
    %55 = arith.truncf %54 : vector<48x128xf32> to vector<48x128xbf16>
    %c0_21 = arith.constant 0 : index
    %c0_22 = arith.constant 0 : index
    %56 = vector.load %arg9[%c0_21, %c0_22] : memref<128x64xbf16, #tpu.memory_space<vmem>>, vector<128x64xbf16>
    %cst_23 = arith.constant dense<0.000000e+00> : vector<48x64xf32>
    %57 = tpu.matmul %55, %56, %cst_23 {dimension_numbers = #tpu.dot_dimension_numbers<[1], [0], [0], [1], [0, 0, 1, 1], [], []>} : vector<48x128xbf16>, vector<128x64xbf16>, vector<48x64xf32> -> vector<48x64xf32>
    %c0_24 = arith.constant 0 : index
    %c0_25 = arith.constant 0 : index
    %58 = vector.load %arg10[%c0_24, %c0_25] : memref<1x64xf32, #tpu.memory_space<vmem>>, vector<1x64xf32>
    %59 = vector.broadcast %58 : vector<1x64xf32> to vector<48x64xf32>
    %60 = arith.addf %57, %59 : vector<48x64xf32>
    %cst_26 = arith.constant 5.000000e-01 : f32
    %61 = vector.broadcast %cst_26 : f32 to vector<48x64xf32>
    %62 = arith.mulf %61, %60 : vector<48x64xf32>
    %63 = arith.addf %4, %62 : vector<48x64xf32>
    %c0_27 = arith.constant 0 : index
    %c0_28 = arith.constant 0 : index
    %64 = vector.load %arg11[%c0_27, %c0_28] : memref<1x64xf32, #tpu.memory_space<vmem>>, vector<1x64xf32>
    %c0_29 = arith.constant 0 : index
    %c0_30 = arith.constant 0 : index
    %65 = vector.load %arg12[%c0_29, %c0_30] : memref<1x64xf32, #tpu.memory_space<vmem>>, vector<1x64xf32>
    %cst_31 = arith.constant dense<0.000000e+00> : vector<48xf32>
    %66 = vector.multi_reduction <add>, %63, %cst_31 [1] : vector<48x64xf32> to vector<48xf32>
    %67 = vector.shape_cast %66 : vector<48xf32> to vector<48x1xf32>
    %cst_32 = arith.constant 6.400000e+01 : f32
    %68 = vector.broadcast %cst_32 : f32 to vector<48x1xf32>
    %69 = arith.divf %67, %68 : vector<48x1xf32>
    %70 = vector.broadcast %69 : vector<48x1xf32> to vector<48x64xf32>
    %71 = arith.subf %63, %70 : vector<48x64xf32>
    %72 = arith.mulf %71, %71 : vector<48x64xf32>
    %cst_33 = arith.constant dense<0.000000e+00> : vector<48xf32>
    %73 = vector.multi_reduction <add>, %72, %cst_33 [1] : vector<48x64xf32> to vector<48xf32>
    %74 = vector.shape_cast %73 : vector<48xf32> to vector<48x1xf32>
    %cst_34 = arith.constant 6.400000e+01 : f32
    %75 = vector.broadcast %cst_34 : f32 to vector<48x1xf32>
    %76 = arith.divf %74, %75 : vector<48x1xf32>
    %77 = vector.broadcast %69 : vector<48x1xf32> to vector<48x64xf32>
    %78 = arith.subf %63, %77 : vector<48x64xf32>
    %cst_35 = arith.constant 9.99999974E-6 : f32
    %79 = vector.broadcast %cst_35 : f32 to vector<48x1xf32>
    %80 = arith.addf %76, %79 : vector<48x1xf32>
    %81 = math.rsqrt %80 : vector<48x1xf32>
    %82 = vector.broadcast %81 : vector<48x1xf32> to vector<48x64xf32>
    %83 = arith.mulf %78, %82 : vector<48x64xf32>
    %84 = vector.broadcast %64 : vector<1x64xf32> to vector<48x64xf32>
    %85 = arith.mulf %83, %84 : vector<48x64xf32>
    %86 = vector.broadcast %65 : vector<1x64xf32> to vector<48x64xf32>
    %87 = arith.addf %85, %86 : vector<48x64xf32>
    %88 = arith.truncf %87 : vector<48x64xf32> to vector<48x64xbf16>
    %c0_36 = arith.constant 0 : index
    %c0_37 = arith.constant 0 : index
    %89 = vector.load %arg13[%c0_36, %c0_37] : memref<64x64xbf16, #tpu.memory_space<vmem>>, vector<64x64xbf16>
    %cst_38 = arith.constant dense<0.000000e+00> : vector<48x64xf32>
    %90 = tpu.matmul %88, %89, %cst_38 {dimension_numbers = #tpu.dot_dimension_numbers<[1], [0], [0], [1], [0, 0, 1, 1], [], []>} : vector<48x64xbf16>, vector<64x64xbf16>, vector<48x64xf32> -> vector<48x64xf32>
    %c0_39 = arith.constant 0 : index
    %c0_40 = arith.constant 0 : index
    %91 = vector.load %arg14[%c0_39, %c0_40] : memref<1x64xf32, #tpu.memory_space<vmem>>, vector<1x64xf32>
    %92 = vector.broadcast %91 : vector<1x64xf32> to vector<48x64xf32>
    %93 = arith.addf %90, %92 : vector<48x64xf32>
    %94 = arith.truncf %87 : vector<48x64xf32> to vector<48x64xbf16>
    %c0_41 = arith.constant 0 : index
    %c0_42 = arith.constant 0 : index
    %95 = vector.load %arg15[%c0_41, %c0_42] : memref<64x64xbf16, #tpu.memory_space<vmem>>, vector<64x64xbf16>
    %cst_43 = arith.constant dense<0.000000e+00> : vector<48x64xf32>
    %96 = tpu.matmul %94, %95, %cst_43 {dimension_numbers = #tpu.dot_dimension_numbers<[1], [0], [0], [1], [0, 0, 1, 1], [], []>} : vector<48x64xbf16>, vector<64x64xbf16>, vector<48x64xf32> -> vector<48x64xf32>
    %c0_44 = arith.constant 0 : index
    %c0_45 = arith.constant 0 : index
    %97 = vector.load %arg16[%c0_44, %c0_45] : memref<1x64xf32, #tpu.memory_space<vmem>>, vector<1x64xf32>
    %98 = vector.broadcast %97 : vector<1x64xf32> to vector<48x64xf32>
    %99 = arith.addf %96, %98 : vector<48x64xf32>
    %100 = arith.negf %99 : vector<48x64xf32>
    %101 = math.exp %100 : vector<48x64xf32>
    %cst_46 = arith.constant 1.000000e+00 : f32
    %102 = vector.broadcast %cst_46 : f32 to vector<48x64xf32>
    %103 = arith.addf %102, %101 : vector<48x64xf32>
    %104 = arith.divf %102, %103 : vector<48x64xf32>
    %105 = arith.mulf %93, %104 : vector<48x64xf32>
    %c0_i32 = arith.constant 0 : i32
    %106 = vector.broadcast %c0_i32 : i32 to vector<48x1xi32>
    %107 = arith.cmpi sge, %11, %106 : vector<48x1xi32>
    %cst_47 = arith.constant 0.000000e+00 : f32
    %108 = vector.shape_cast %107 : vector<48x1xi1> to vector<48x1xi1>
    %109 = vector.broadcast %108 : vector<48x1xi1> to vector<48x64xi1>
    %110 = vector.broadcast %cst_47 : f32 to vector<48x64xf32>
    %111 = arith.select %109, %105, %110 : vector<48x64xi1>, vector<48x64xf32>
    %c0_48 = arith.constant 0 : index
    %c0_49 = arith.constant 0 : index
    %112 = vector.load %arg17[%c0_48, %c0_49] : memref<3x64xf32, #tpu.memory_space<vmem>>, vector<3x64xf32>
    %113 = vector.extract_strided_slice %112 {offsets = [2, 0], sizes = [1, 64], strides = [1, 1]} : vector<3x64xf32> to vector<1x64xf32>
    %114 = vector.broadcast %113 : vector<1x64xf32> to vector<48x64xf32>
    %115 = arith.mulf %111, %114 : vector<48x64xf32>
    %c1_i32 = arith.constant 1 : i32
    %116 = tpu.dynamic_rotate %111 by %c1_i32 dim 0 : vector<48x64xf32>, i32 -> vector<48x64xf32>
    %117 = vector.extract_strided_slice %112 {offsets = [1, 0], sizes = [1, 64], strides = [1, 1]} : vector<3x64xf32> to vector<1x64xf32>
    %118 = vector.broadcast %117 : vector<1x64xf32> to vector<48x64xf32>
    %119 = arith.mulf %116, %118 : vector<48x64xf32>
    %120 = arith.addf %115, %119 : vector<48x64xf32>
    %c2_i32 = arith.constant 2 : i32
    %121 = tpu.dynamic_rotate %111 by %c2_i32 dim 0 : vector<48x64xf32>, i32 -> vector<48x64xf32>
    %122 = vector.extract_strided_slice %112 {offsets = [0, 0], sizes = [1, 64], strides = [1, 1]} : vector<3x64xf32> to vector<1x64xf32>
    %123 = vector.broadcast %122 : vector<1x64xf32> to vector<48x64xf32>
    %124 = arith.mulf %121, %123 : vector<48x64xf32>
    %125 = arith.addf %120, %124 : vector<48x64xf32>
    %c0_50 = arith.constant 0 : index
    %c0_51 = arith.constant 0 : index
    %126 = vector.load %arg18[%c0_50, %c0_51] : memref<1x64xf32, #tpu.memory_space<vmem>>, vector<1x64xf32>
    %127 = vector.broadcast %126 : vector<1x64xf32> to vector<48x64xf32>
    %128 = arith.addf %125, %127 : vector<48x64xf32>
    %c0_52 = arith.constant 0 : index
    %c0_53 = arith.constant 0 : index
    %129 = vector.load %arg19[%c0_52, %c0_53] : memref<1x64xf32, #tpu.memory_space<vmem>>, vector<1x64xf32>
    %c0_54 = arith.constant 0 : index
    %c0_55 = arith.constant 0 : index
    %130 = vector.load %arg20[%c0_54, %c0_55] : memref<1x64xf32, #tpu.memory_space<vmem>>, vector<1x64xf32>
    %cst_56 = arith.constant dense<0.000000e+00> : vector<48xf32>
    %131 = vector.multi_reduction <add>, %128, %cst_56 [1] : vector<48x64xf32> to vector<48xf32>
    %132 = vector.shape_cast %131 : vector<48xf32> to vector<48x1xf32>
    %cst_57 = arith.constant 6.400000e+01 : f32
    %133 = vector.broadcast %cst_57 : f32 to vector<48x1xf32>
    %134 = arith.divf %132, %133 : vector<48x1xf32>
    %135 = vector.broadcast %134 : vector<48x1xf32> to vector<48x64xf32>
    %136 = arith.subf %128, %135 : vector<48x64xf32>
    %137 = arith.mulf %136, %136 : vector<48x64xf32>
    %cst_58 = arith.constant dense<0.000000e+00> : vector<48xf32>
    %138 = vector.multi_reduction <add>, %137, %cst_58 [1] : vector<48x64xf32> to vector<48xf32>
    %139 = vector.shape_cast %138 : vector<48xf32> to vector<48x1xf32>
    %cst_59 = arith.constant 6.400000e+01 : f32
    %140 = vector.broadcast %cst_59 : f32 to vector<48x1xf32>
    %141 = arith.divf %139, %140 : vector<48x1xf32>
    %142 = vector.broadcast %134 : vector<48x1xf32> to vector<48x64xf32>
    %143 = arith.subf %128, %142 : vector<48x64xf32>
    %cst_60 = arith.constant 9.99999974E-6 : f32
    %144 = vector.broadcast %cst_60 : f32 to vector<48x1xf32>
    %145 = arith.addf %141, %144 : vector<48x1xf32>
    %146 = math.rsqrt %145 : vector<48x1xf32>
    %147 = vector.broadcast %146 : vector<48x1xf32> to vector<48x64xf32>
    %148 = arith.mulf %143, %147 : vector<48x64xf32>
    %149 = vector.broadcast %129 : vector<1x64xf32> to vector<48x64xf32>
    %150 = arith.mulf %148, %149 : vector<48x64xf32>
    %151 = vector.broadcast %130 : vector<1x64xf32> to vector<48x64xf32>
    %152 = arith.addf %150, %151 : vector<48x64xf32>
    %153 = arith.negf %152 : vector<48x64xf32>
    %154 = math.exp %153 : vector<48x64xf32>
    %cst_61 = arith.constant 1.000000e+00 : f32
    %155 = vector.broadcast %cst_61 : f32 to vector<48x64xf32>
    %156 = arith.addf %155, %154 : vector<48x64xf32>
    %157 = arith.divf %155, %156 : vector<48x64xf32>
    %158 = arith.mulf %152, %157 : vector<48x64xf32>
    %159 = arith.truncf %158 : vector<48x64xf32> to vector<48x64xbf16>
    %c0_62 = arith.constant 0 : index
    %c0_63 = arith.constant 0 : index
    %160 = vector.load %arg21[%c0_62, %c0_63] : memref<64x64xbf16, #tpu.memory_space<vmem>>, vector<64x64xbf16>
    %cst_64 = arith.constant dense<0.000000e+00> : vector<48x64xf32>
    %161 = tpu.matmul %159, %160, %cst_64 {dimension_numbers = #tpu.dot_dimension_numbers<[1], [0], [0], [1], [0, 0, 1, 1], [], []>} : vector<48x64xbf16>, vector<64x64xbf16>, vector<48x64xf32> -> vector<48x64xf32>
    %c0_65 = arith.constant 0 : index
    %c0_66 = arith.constant 0 : index
    %162 = vector.load %arg22[%c0_65, %c0_66] : memref<1x64xf32, #tpu.memory_space<vmem>>, vector<1x64xf32>
    %163 = vector.broadcast %162 : vector<1x64xf32> to vector<48x64xf32>
    %164 = arith.addf %161, %163 : vector<48x64xf32>
    %165 = arith.addf %63, %164 : vector<48x64xf32>
    %c0_67 = arith.constant 0 : index
    %c0_68 = arith.constant 0 : index
    %166 = vector.load %arg23[%c0_67, %c0_68] : memref<1x64xf32, #tpu.memory_space<vmem>>, vector<1x64xf32>
    %c0_69 = arith.constant 0 : index
    %c0_70 = arith.constant 0 : index
    %167 = vector.load %arg24[%c0_69, %c0_70] : memref<1x64xf32, #tpu.memory_space<vmem>>, vector<1x64xf32>
    %cst_71 = arith.constant dense<0.000000e+00> : vector<48xf32>
    %168 = vector.multi_reduction <add>, %165, %cst_71 [1] : vector<48x64xf32> to vector<48xf32>
    %169 = vector.shape_cast %168 : vector<48xf32> to vector<48x1xf32>
    %cst_72 = arith.constant 6.400000e+01 : f32
    %170 = vector.broadcast %cst_72 : f32 to vector<48x1xf32>
    %171 = arith.divf %169, %170 : vector<48x1xf32>
    %172 = vector.broadcast %171 : vector<48x1xf32> to vector<48x64xf32>
    %173 = arith.subf %165, %172 : vector<48x64xf32>
    %174 = arith.mulf %173, %173 : vector<48x64xf32>
    %cst_73 = arith.constant dense<0.000000e+00> : vector<48xf32>
    %175 = vector.multi_reduction <add>, %174, %cst_73 [1] : vector<48x64xf32> to vector<48xf32>
    %176 = vector.shape_cast %175 : vector<48xf32> to vector<48x1xf32>
    %cst_74 = arith.constant 6.400000e+01 : f32
    %177 = vector.broadcast %cst_74 : f32 to vector<48x1xf32>
    %178 = arith.divf %176, %177 : vector<48x1xf32>
    %179 = vector.broadcast %171 : vector<48x1xf32> to vector<48x64xf32>
    %180 = arith.subf %165, %179 : vector<48x64xf32>
    %cst_75 = arith.constant 9.99999974E-6 : f32
    %181 = vector.broadcast %cst_75 : f32 to vector<48x1xf32>
    %182 = arith.addf %178, %181 : vector<48x1xf32>
    %183 = math.rsqrt %182 : vector<48x1xf32>
    %184 = vector.broadcast %183 : vector<48x1xf32> to vector<48x64xf32>
    %185 = arith.mulf %180, %184 : vector<48x64xf32>
    %186 = vector.broadcast %166 : vector<1x64xf32> to vector<48x64xf32>
    %187 = arith.mulf %185, %186 : vector<48x64xf32>
    %188 = vector.broadcast %167 : vector<1x64xf32> to vector<48x64xf32>
    %189 = arith.addf %187, %188 : vector<48x64xf32>
    %190 = arith.truncf %189 : vector<48x64xf32> to vector<48x64xbf16>
    %c0_76 = arith.constant 0 : index
    %c0_77 = arith.constant 0 : index
    %191 = vector.load %arg25[%c0_76, %c0_77] : memref<64x192xbf16, #tpu.memory_space<vmem>>, vector<64x192xbf16>
    %cst_78 = arith.constant dense<0.000000e+00> : vector<48x192xf32>
    %192 = tpu.matmul %190, %191, %cst_78 {dimension_numbers = #tpu.dot_dimension_numbers<[1], [0], [0], [1], [0, 0, 1, 1], [], []>} : vector<48x64xbf16>, vector<64x192xbf16>, vector<48x192xf32> -> vector<48x192xf32>
    %c0_79 = arith.constant 0 : index
    %c0_80 = arith.constant 0 : index
    %193 = vector.load %arg26[%c0_79, %c0_80] : memref<1x192xf32, #tpu.memory_space<vmem>>, vector<1x192xf32>
    %194 = vector.broadcast %193 : vector<1x192xf32> to vector<48x192xf32>
    %195 = arith.addf %192, %194 : vector<48x192xf32>
    %196 = vector.extract_strided_slice %195 {offsets = [16, 0], sizes = [32, 64], strides = [1, 1]} : vector<48x192xf32> to vector<32x64xf32>
    %197 = vector.extract_strided_slice %195 {offsets = [0, 64], sizes = [48, 64], strides = [1, 1]} : vector<48x192xf32> to vector<48x64xf32>
    %198 = vector.extract_strided_slice %195 {offsets = [0, 128], sizes = [48, 64], strides = [1, 1]} : vector<48x192xf32> to vector<48x64xf32>
    %199 = vector.broadcast %18 : vector<1x48xi32> to vector<32x48xi32>
    %200 = vector.broadcast %14 : vector<32x1xi32> to vector<32x48xi32>
    %201 = arith.cmpi sle, %199, %200 : vector<32x48xi32>
    %c8_i32 = arith.constant 8 : i32
    %202 = vector.broadcast %c8_i32 : i32 to vector<32x1xi32>
    %203 = arith.subi %14, %202 : vector<32x1xi32>
    %204 = vector.broadcast %18 : vector<1x48xi32> to vector<32x48xi32>
    %205 = vector.broadcast %203 : vector<32x1xi32> to vector<32x48xi32>
    %206 = arith.cmpi sge, %204, %205 : vector<32x48xi32>
    %207 = arith.andi %201, %206 : vector<32x48xi1>
    %c0_i32_81 = arith.constant 0 : i32
    %208 = vector.broadcast %c0_i32_81 : i32 to vector<1x48xi32>
    %209 = arith.cmpi sge, %18, %208 : vector<1x48xi32>
    %210 = vector.broadcast %209 : vector<1x48xi1> to vector<32x48xi1>
    %211 = arith.andi %207, %210 : vector<32x48xi1>
    %212 = vector.broadcast %6 : i32 to vector<1x48xi32>
    %213 = arith.cmpi slt, %18, %212 : vector<1x48xi32>
    %214 = vector.broadcast %213 : vector<1x48xi1> to vector<32x48xi1>
    %215 = arith.andi %211, %214 : vector<32x48xi1>
    %216 = vector.extract_strided_slice %196 {offsets = [0, 0], sizes = [32, 16], strides = [1, 1]} : vector<32x64xf32> to vector<32x16xf32>
    %217 = arith.truncf %216 : vector<32x16xf32> to vector<32x16xbf16>
    %218 = vector.extract_strided_slice %197 {offsets = [0, 0], sizes = [48, 16], strides = [1, 1]} : vector<48x64xf32> to vector<48x16xf32>
    %219 = tpu.transpose %218, [1, 0] : vector<48x16xf32> -> vector<16x48xf32>
    %220 = arith.truncf %219 : vector<16x48xf32> to vector<16x48xbf16>
    %cst_82 = arith.constant dense<0.000000e+00> : vector<32x48xf32>
    %221 = tpu.matmul %217, %220, %cst_82 {dimension_numbers = #tpu.dot_dimension_numbers<[1], [0], [0], [1], [0, 0, 1, 1], [], []>} : vector<32x16xbf16>, vector<16x48xbf16>, vector<32x48xf32> -> vector<32x48xf32>
    %cst_83 = arith.constant 2.500000e-01 : f32
    %222 = vector.broadcast %cst_83 : f32 to vector<32x48xf32>
    %223 = arith.mulf %221, %222 : vector<32x48xf32>
    %cst_84 = arith.constant -1.000000e+09 : f32
    %224 = vector.broadcast %cst_84 : f32 to vector<32x48xf32>
    %225 = arith.select %215, %223, %224 : vector<32x48xi1>, vector<32x48xf32>
    %cst_85 = arith.constant dense<0xFF800000> : vector<32xf32>
    %226 = vector.multi_reduction <maximumf>, %225, %cst_85 [1] : vector<32x48xf32> to vector<32xf32>
    %227 = vector.shape_cast %226 : vector<32xf32> to vector<32x1xf32>
    %228 = vector.broadcast %227 : vector<32x1xf32> to vector<32x48xf32>
    %229 = arith.subf %225, %228 : vector<32x48xf32>
    %230 = math.exp %229 : vector<32x48xf32>
    %cst_86 = arith.constant dense<0.000000e+00> : vector<32xf32>
    %231 = vector.multi_reduction <add>, %230, %cst_86 [1] : vector<32x48xf32> to vector<32xf32>
    %232 = vector.shape_cast %231 : vector<32xf32> to vector<32x1xf32>
    %233 = tpu.reciprocal %232 {approx = true} : vector<32x1xf32> -> vector<32x1xf32>
    %234 = vector.broadcast %233 : vector<32x1xf32> to vector<32x48xf32>
    %235 = arith.mulf %230, %234 : vector<32x48xf32>
    %236 = arith.truncf %235 : vector<32x48xf32> to vector<32x48xbf16>
    %237 = vector.extract_strided_slice %198 {offsets = [0, 0], sizes = [48, 16], strides = [1, 1]} : vector<48x64xf32> to vector<48x16xf32>
    %238 = arith.truncf %237 : vector<48x16xf32> to vector<48x16xbf16>
    %cst_87 = arith.constant dense<0.000000e+00> : vector<32x16xf32>
    %239 = tpu.matmul %236, %238, %cst_87 {dimension_numbers = #tpu.dot_dimension_numbers<[1], [0], [0], [1], [0, 0, 1, 1], [], []>} : vector<32x48xbf16>, vector<48x16xbf16>, vector<32x16xf32> -> vector<32x16xf32>
    %c0_88 = arith.constant 0 : index
    %c0_89 = arith.constant 0 : index
    %240 = vector.load %arg38[%c0_88, %c0_89] : memref<32x64xf32, #tpu.memory_space<vmem>>, vector<32x16xf32>
    tpu.vector_store %arg38[%c0_88, %c0_89], %239 {strides = array<i32>} : memref<32x64xf32, #tpu.memory_space<vmem>>, vector<32x16xf32>,
    %241 = vector.extract_strided_slice %196 {offsets = [0, 16], sizes = [32, 16], strides = [1, 1]} : vector<32x64xf32> to vector<32x16xf32>
    %242 = arith.truncf %241 : vector<32x16xf32> to vector<32x16xbf16>
    %243 = vector.extract_strided_slice %197 {offsets = [0, 16], sizes = [48, 16], strides = [1, 1]} : vector<48x64xf32> to vector<48x16xf32>
    %244 = tpu.transpose %243, [1, 0] : vector<48x16xf32> -> vector<16x48xf32>
    %245 = arith.truncf %244 : vector<16x48xf32> to vector<16x48xbf16>
    %cst_90 = arith.constant dense<0.000000e+00> : vector<32x48xf32>
    %246 = tpu.matmul %242, %245, %cst_90 {dimension_numbers = #tpu.dot_dimension_numbers<[1], [0], [0], [1], [0, 0, 1, 1], [], []>} : vector<32x16xbf16>, vector<16x48xbf16>, vector<32x48xf32> -> vector<32x48xf32>
    %cst_91 = arith.constant 2.500000e-01 : f32
    %247 = vector.broadcast %cst_91 : f32 to vector<32x48xf32>
    %248 = arith.mulf %246, %247 : vector<32x48xf32>
    %cst_92 = arith.constant -1.000000e+09 : f32
    %249 = vector.broadcast %cst_92 : f32 to vector<32x48xf32>
    %250 = arith.select %215, %248, %249 : vector<32x48xi1>, vector<32x48xf32>
    %cst_93 = arith.constant dense<0xFF800000> : vector<32xf32>
    %251 = vector.multi_reduction <maximumf>, %250, %cst_93 [1] : vector<32x48xf32> to vector<32xf32>
    %252 = vector.shape_cast %251 : vector<32xf32> to vector<32x1xf32>
    %253 = vector.broadcast %252 : vector<32x1xf32> to vector<32x48xf32>
    %254 = arith.subf %250, %253 : vector<32x48xf32>
    %255 = math.exp %254 : vector<32x48xf32>
    %cst_94 = arith.constant dense<0.000000e+00> : vector<32xf32>
    %256 = vector.multi_reduction <add>, %255, %cst_94 [1] : vector<32x48xf32> to vector<32xf32>
    %257 = vector.shape_cast %256 : vector<32xf32> to vector<32x1xf32>
    %258 = tpu.reciprocal %257 {approx = true} : vector<32x1xf32> -> vector<32x1xf32>
    %259 = vector.broadcast %258 : vector<32x1xf32> to vector<32x48xf32>
    %260 = arith.mulf %255, %259 : vector<32x48xf32>
    %261 = arith.truncf %260 : vector<32x48xf32> to vector<32x48xbf16>
    %262 = vector.extract_strided_slice %198 {offsets = [0, 16], sizes = [48, 16], strides = [1, 1]} : vector<48x64xf32> to vector<48x16xf32>
    %263 = arith.truncf %262 : vector<48x16xf32> to vector<48x16xbf16>
    %cst_95 = arith.constant dense<0.000000e+00> : vector<32x16xf32>
    %264 = tpu.matmul %261, %263, %cst_95 {dimension_numbers = #tpu.dot_dimension_numbers<[1], [0], [0], [1], [0, 0, 1, 1], [], []>} : vector<32x48xbf16>, vector<48x16xbf16>, vector<32x16xf32> -> vector<32x16xf32>
    %c0_96 = arith.constant 0 : index
    %c16 = arith.constant 16 : index
    %265 = vector.load %arg38[%c0_96, %c16] : memref<32x64xf32, #tpu.memory_space<vmem>>, vector<32x16xf32>
    tpu.vector_store %arg38[%c0_96, %c16], %264 {strides = array<i32>} : memref<32x64xf32, #tpu.memory_space<vmem>>, vector<32x16xf32>,
    %266 = vector.extract_strided_slice %196 {offsets = [0, 32], sizes = [32, 16], strides = [1, 1]} : vector<32x64xf32> to vector<32x16xf32>
    %267 = arith.truncf %266 : vector<32x16xf32> to vector<32x16xbf16>
    %268 = vector.extract_strided_slice %197 {offsets = [0, 32], sizes = [48, 16], strides = [1, 1]} : vector<48x64xf32> to vector<48x16xf32>
    %269 = tpu.transpose %268, [1, 0] : vector<48x16xf32> -> vector<16x48xf32>
    %270 = arith.truncf %269 : vector<16x48xf32> to vector<16x48xbf16>
    %cst_97 = arith.constant dense<0.000000e+00> : vector<32x48xf32>
    %271 = tpu.matmul %267, %270, %cst_97 {dimension_numbers = #tpu.dot_dimension_numbers<[1], [0], [0], [1], [0, 0, 1, 1], [], []>} : vector<32x16xbf16>, vector<16x48xbf16>, vector<32x48xf32> -> vector<32x48xf32>
    %cst_98 = arith.constant 2.500000e-01 : f32
    %272 = vector.broadcast %cst_98 : f32 to vector<32x48xf32>
    %273 = arith.mulf %271, %272 : vector<32x48xf32>
    %cst_99 = arith.constant -1.000000e+09 : f32
    %274 = vector.broadcast %cst_99 : f32 to vector<32x48xf32>
    %275 = arith.select %215, %273, %274 : vector<32x48xi1>, vector<32x48xf32>
    %cst_100 = arith.constant dense<0xFF800000> : vector<32xf32>
    %276 = vector.multi_reduction <maximumf>, %275, %cst_100 [1] : vector<32x48xf32> to vector<32xf32>
    %277 = vector.shape_cast %276 : vector<32xf32> to vector<32x1xf32>
    %278 = vector.broadcast %277 : vector<32x1xf32> to vector<32x48xf32>
    %279 = arith.subf %275, %278 : vector<32x48xf32>
    %280 = math.exp %279 : vector<32x48xf32>
    %cst_101 = arith.constant dense<0.000000e+00> : vector<32xf32>
    %281 = vector.multi_reduction <add>, %280, %cst_101 [1] : vector<32x48xf32> to vector<32xf32>
    %282 = vector.shape_cast %281 : vector<32xf32> to vector<32x1xf32>
    %283 = tpu.reciprocal %282 {approx = true} : vector<32x1xf32> -> vector<32x1xf32>
    %284 = vector.broadcast %283 : vector<32x1xf32> to vector<32x48xf32>
    %285 = arith.mulf %280, %284 : vector<32x48xf32>
    %286 = arith.truncf %285 : vector<32x48xf32> to vector<32x48xbf16>
    %287 = vector.extract_strided_slice %198 {offsets = [0, 32], sizes = [48, 16], strides = [1, 1]} : vector<48x64xf32> to vector<48x16xf32>
    %288 = arith.truncf %287 : vector<48x16xf32> to vector<48x16xbf16>
    %cst_102 = arith.constant dense<0.000000e+00> : vector<32x16xf32>
    %289 = tpu.matmul %286, %288, %cst_102 {dimension_numbers = #tpu.dot_dimension_numbers<[1], [0], [0], [1], [0, 0, 1, 1], [], []>} : vector<32x48xbf16>, vector<48x16xbf16>, vector<32x16xf32> -> vector<32x16xf32>
    %c0_103 = arith.constant 0 : index
    %c32 = arith.constant 32 : index
    %290 = vector.load %arg38[%c0_103, %c32] : memref<32x64xf32, #tpu.memory_space<vmem>>, vector<32x16xf32>
    tpu.vector_store %arg38[%c0_103, %c32], %289 {strides = array<i32>} : memref<32x64xf32, #tpu.memory_space<vmem>>, vector<32x16xf32>,
    %291 = vector.extract_strided_slice %196 {offsets = [0, 48], sizes = [32, 16], strides = [1, 1]} : vector<32x64xf32> to vector<32x16xf32>
    %292 = arith.truncf %291 : vector<32x16xf32> to vector<32x16xbf16>
    %293 = vector.extract_strided_slice %197 {offsets = [0, 48], sizes = [48, 16], strides = [1, 1]} : vector<48x64xf32> to vector<48x16xf32>
    %294 = tpu.transpose %293, [1, 0] : vector<48x16xf32> -> vector<16x48xf32>
    %295 = arith.truncf %294 : vector<16x48xf32> to vector<16x48xbf16>
    %cst_104 = arith.constant dense<0.000000e+00> : vector<32x48xf32>
    %296 = tpu.matmul %292, %295, %cst_104 {dimension_numbers = #tpu.dot_dimension_numbers<[1], [0], [0], [1], [0, 0, 1, 1], [], []>} : vector<32x16xbf16>, vector<16x48xbf16>, vector<32x48xf32> -> vector<32x48xf32>
    %cst_105 = arith.constant 2.500000e-01 : f32
    %297 = vector.broadcast %cst_105 : f32 to vector<32x48xf32>
    %298 = arith.mulf %296, %297 : vector<32x48xf32>
    %cst_106 = arith.constant -1.000000e+09 : f32
    %299 = vector.broadcast %cst_106 : f32 to vector<32x48xf32>
    %300 = arith.select %215, %298, %299 : vector<32x48xi1>, vector<32x48xf32>
    %cst_107 = arith.constant dense<0xFF800000> : vector<32xf32>
    %301 = vector.multi_reduction <maximumf>, %300, %cst_107 [1] : vector<32x48xf32> to vector<32xf32>
    %302 = vector.shape_cast %301 : vector<32xf32> to vector<32x1xf32>
    %303 = vector.broadcast %302 : vector<32x1xf32> to vector<32x48xf32>
    %304 = arith.subf %300, %303 : vector<32x48xf32>
    %305 = math.exp %304 : vector<32x48xf32>
    %cst_108 = arith.constant dense<0.000000e+00> : vector<32xf32>
    %306 = vector.multi_reduction <add>, %305, %cst_108 [1] : vector<32x48xf32> to vector<32xf32>
    %307 = vector.shape_cast %306 : vector<32xf32> to vector<32x1xf32>
    %308 = tpu.reciprocal %307 {approx = true} : vector<32x1xf32> -> vector<32x1xf32>
    %309 = vector.broadcast %308 : vector<32x1xf32> to vector<32x48xf32>
    %310 = arith.mulf %305, %309 : vector<32x48xf32>
    %311 = arith.truncf %310 : vector<32x48xf32> to vector<32x48xbf16>
    %312 = vector.extract_strided_slice %198 {offsets = [0, 48], sizes = [48, 16], strides = [1, 1]} : vector<48x64xf32> to vector<48x16xf32>
    %313 = arith.truncf %312 : vector<48x16xf32> to vector<48x16xbf16>
    %cst_109 = arith.constant dense<0.000000e+00> : vector<32x16xf32>
    %314 = tpu.matmul %311, %313, %cst_109 {dimension_numbers = #tpu.dot_dimension_numbers<[1], [0], [0], [1], [0, 0, 1, 1], [], []>} : vector<32x48xbf16>, vector<48x16xbf16>, vector<32x16xf32> -> vector<32x16xf32>
    %c0_110 = arith.constant 0 : index
    %c48 = arith.constant 48 : index
    %315 = vector.load %arg38[%c0_110, %c48] : memref<32x64xf32, #tpu.memory_space<vmem>>, vector<32x16xf32>
    tpu.vector_store %arg38[%c0_110, %c48], %314 {strides = array<i32>} : memref<32x64xf32, #tpu.memory_space<vmem>>, vector<32x16xf32>,
    %316 = vector.extract_strided_slice %165 {offsets = [16, 0], sizes = [32, 64], strides = [1, 1]} : vector<48x64xf32> to vector<32x64xf32>
    %c0_111 = arith.constant 0 : index
    %c0_112 = arith.constant 0 : index
    %317 = vector.load %arg38[%c0_111, %c0_112] : memref<32x64xf32, #tpu.memory_space<vmem>>, vector<32x64xf32>
    %318 = arith.truncf %317 : vector<32x64xf32> to vector<32x64xbf16>
    %c0_113 = arith.constant 0 : index
    %c0_114 = arith.constant 0 : index
    %319 = vector.load %arg27[%c0_113, %c0_114] : memref<64x64xbf16, #tpu.memory_space<vmem>>, vector<64x64xbf16>
    %cst_115 = arith.constant dense<0.000000e+00> : vector<32x64xf32>
    %320 = tpu.matmul %318, %319, %cst_115 {dimension_numbers = #tpu.dot_dimension_numbers<[1], [0], [0], [1], [0, 0, 1, 1], [], []>} : vector<32x64xbf16>, vector<64x64xbf16>, vector<32x64xf32> -> vector<32x64xf32>
    %c0_116 = arith.constant 0 : index
    %c0_117 = arith.constant 0 : index
    %321 = vector.load %arg28[%c0_116, %c0_117] : memref<1x64xf32, #tpu.memory_space<vmem>>, vector<1x64xf32>
    %322 = vector.broadcast %321 : vector<1x64xf32> to vector<32x64xf32>
    %323 = arith.addf %320, %322 : vector<32x64xf32>
    %324 = arith.addf %316, %323 : vector<32x64xf32>
    %c0_118 = arith.constant 0 : index
    %c0_119 = arith.constant 0 : index
    %325 = vector.load %arg29[%c0_118, %c0_119] : memref<1x64xf32, #tpu.memory_space<vmem>>, vector<1x64xf32>
    %c0_120 = arith.constant 0 : index
    %c0_121 = arith.constant 0 : index
    %326 = vector.load %arg30[%c0_120, %c0_121] : memref<1x64xf32, #tpu.memory_space<vmem>>, vector<1x64xf32>
    %cst_122 = arith.constant dense<0.000000e+00> : vector<32xf32>
    %327 = vector.multi_reduction <add>, %324, %cst_122 [1] : vector<32x64xf32> to vector<32xf32>
    %328 = vector.shape_cast %327 : vector<32xf32> to vector<32x1xf32>
    %cst_123 = arith.constant 6.400000e+01 : f32
    %329 = vector.broadcast %cst_123 : f32 to vector<32x1xf32>
    %330 = arith.divf %328, %329 : vector<32x1xf32>
    %331 = vector.broadcast %330 : vector<32x1xf32> to vector<32x64xf32>
    %332 = arith.subf %324, %331 : vector<32x64xf32>
    %333 = arith.mulf %332, %332 : vector<32x64xf32>
    %cst_124 = arith.constant dense<0.000000e+00> : vector<32xf32>
    %334 = vector.multi_reduction <add>, %333, %cst_124 [1] : vector<32x64xf32> to vector<32xf32>
    %335 = vector.shape_cast %334 : vector<32xf32> to vector<32x1xf32>
    %cst_125 = arith.constant 6.400000e+01 : f32
    %336 = vector.broadcast %cst_125 : f32 to vector<32x1xf32>
    %337 = arith.divf %335, %336 : vector<32x1xf32>
    %338 = vector.broadcast %330 : vector<32x1xf32> to vector<32x64xf32>
    %339 = arith.subf %324, %338 : vector<32x64xf32>
    %cst_126 = arith.constant 9.99999974E-6 : f32
    %340 = vector.broadcast %cst_126 : f32 to vector<32x1xf32>
    %341 = arith.addf %337, %340 : vector<32x1xf32>
    %342 = math.rsqrt %341 : vector<32x1xf32>
    %343 = vector.broadcast %342 : vector<32x1xf32> to vector<32x64xf32>
    %344 = arith.mulf %339, %343 : vector<32x64xf32>
    %345 = vector.broadcast %325 : vector<1x64xf32> to vector<32x64xf32>
    %346 = arith.mulf %344, %345 : vector<32x64xf32>
    %347 = vector.broadcast %326 : vector<1x64xf32> to vector<32x64xf32>
    %348 = arith.addf %346, %347 : vector<32x64xf32>
    %349 = arith.truncf %348 : vector<32x64xf32> to vector<32x64xbf16>
    %c0_127 = arith.constant 0 : index
    %c0_128 = arith.constant 0 : index
    %350 = vector.load %arg31[%c0_127, %c0_128] : memref<64x128xbf16, #tpu.memory_space<vmem>>, vector<64x128xbf16>
    %cst_129 = arith.constant dense<0.000000e+00> : vector<32x128xf32>
    %351 = tpu.matmul %349, %350, %cst_129 {dimension_numbers = #tpu.dot_dimension_numbers<[1], [0], [0], [1], [0, 0, 1, 1], [], []>} : vector<32x64xbf16>, vector<64x128xbf16>, vector<32x128xf32> -> vector<32x128xf32>
    %c0_130 = arith.constant 0 : index
    %c0_131 = arith.constant 0 : index
    %352 = vector.load %arg32[%c0_130, %c0_131] : memref<1x128xf32, #tpu.memory_space<vmem>>, vector<1x128xf32>
    %353 = vector.broadcast %352 : vector<1x128xf32> to vector<32x128xf32>
    %354 = arith.addf %351, %353 : vector<32x128xf32>
    %355 = arith.negf %354 : vector<32x128xf32>
    %356 = math.exp %355 : vector<32x128xf32>
    %cst_132 = arith.constant 1.000000e+00 : f32
    %357 = vector.broadcast %cst_132 : f32 to vector<32x128xf32>
    %358 = arith.addf %357, %356 : vector<32x128xf32>
    %359 = arith.divf %357, %358 : vector<32x128xf32>
    %360 = arith.mulf %354, %359 : vector<32x128xf32>
    %361 = arith.truncf %360 : vector<32x128xf32> to vector<32x128xbf16>
    %c0_133 = arith.constant 0 : index
    %c0_134 = arith.constant 0 : index
    %362 = vector.load %arg33[%c0_133, %c0_134] : memref<128x64xbf16, #tpu.memory_space<vmem>>, vector<128x64xbf16>
    %cst_135 = arith.constant dense<0.000000e+00> : vector<32x64xf32>
    %363 = tpu.matmul %361, %362, %cst_135 {dimension_numbers = #tpu.dot_dimension_numbers<[1], [0], [0], [1], [0, 0, 1, 1], [], []>} : vector<32x128xbf16>, vector<128x64xbf16>, vector<32x64xf32> -> vector<32x64xf32>
    %c0_136 = arith.constant 0 : index
    %c0_137 = arith.constant 0 : index
    %364 = vector.load %arg34[%c0_136, %c0_137] : memref<1x64xf32, #tpu.memory_space<vmem>>, vector<1x64xf32>
    %365 = vector.broadcast %364 : vector<1x64xf32> to vector<32x64xf32>
    %366 = arith.addf %363, %365 : vector<32x64xf32>
    %cst_138 = arith.constant 5.000000e-01 : f32
    %367 = vector.broadcast %cst_138 : f32 to vector<32x64xf32>
    %368 = arith.mulf %367, %366 : vector<32x64xf32>
    %369 = arith.addf %324, %368 : vector<32x64xf32>
    %c0_139 = arith.constant 0 : index
    %c0_140 = arith.constant 0 : index
    %370 = vector.load %arg35[%c0_139, %c0_140] : memref<1x64xf32, #tpu.memory_space<vmem>>, vector<1x64xf32>
    %c0_141 = arith.constant 0 : index
    %c0_142 = arith.constant 0 : index
    %371 = vector.load %arg36[%c0_141, %c0_142] : memref<1x64xf32, #tpu.memory_space<vmem>>, vector<1x64xf32>
    %cst_143 = arith.constant dense<0.000000e+00> : vector<32xf32>
    %372 = vector.multi_reduction <add>, %369, %cst_143 [1] : vector<32x64xf32> to vector<32xf32>
    %373 = vector.shape_cast %372 : vector<32xf32> to vector<32x1xf32>
    %cst_144 = arith.constant 6.400000e+01 : f32
    %374 = vector.broadcast %cst_144 : f32 to vector<32x1xf32>
    %375 = arith.divf %373, %374 : vector<32x1xf32>
    %376 = vector.broadcast %375 : vector<32x1xf32> to vector<32x64xf32>
    %377 = arith.subf %369, %376 : vector<32x64xf32>
    %378 = arith.mulf %377, %377 : vector<32x64xf32>
    %cst_145 = arith.constant dense<0.000000e+00> : vector<32xf32>
    %379 = vector.multi_reduction <add>, %378, %cst_145 [1] : vector<32x64xf32> to vector<32xf32>
    %380 = vector.shape_cast %379 : vector<32xf32> to vector<32x1xf32>
    %cst_146 = arith.constant 6.400000e+01 : f32
    %381 = vector.broadcast %cst_146 : f32 to vector<32x1xf32>
    %382 = arith.divf %380, %381 : vector<32x1xf32>
    %383 = vector.broadcast %375 : vector<32x1xf32> to vector<32x64xf32>
    %384 = arith.subf %369, %383 : vector<32x64xf32>
    %cst_147 = arith.constant 9.99999974E-6 : f32
    %385 = vector.broadcast %cst_147 : f32 to vector<32x1xf32>
    %386 = arith.addf %382, %385 : vector<32x1xf32>
    %387 = math.rsqrt %386 : vector<32x1xf32>
    %388 = vector.broadcast %387 : vector<32x1xf32> to vector<32x64xf32>
    %389 = arith.mulf %384, %388 : vector<32x64xf32>
    %390 = vector.broadcast %370 : vector<1x64xf32> to vector<32x64xf32>
    %391 = arith.mulf %389, %390 : vector<32x64xf32>
    %392 = vector.broadcast %371 : vector<1x64xf32> to vector<32x64xf32>
    %393 = arith.addf %391, %392 : vector<32x64xf32>
    %394 = vector.broadcast %6 : i32 to vector<32x1xi32>
    %395 = arith.cmpi slt, %14, %394 : vector<32x1xi32>
    %cst_148 = arith.constant 0.000000e+00 : f32
    %396 = vector.shape_cast %395 : vector<32x1xi1> to vector<32x1xi1>
    %397 = vector.broadcast %396 : vector<32x1xi1> to vector<32x64xi1>
    %398 = vector.broadcast %cst_148 : f32 to vector<32x64xf32>
    %399 = arith.select %397, %393, %398 : vector<32x64xi1>, vector<32x64xf32>
    %c0_149 = arith.constant 0 : index
    %c0_150 = arith.constant 0 : index
    %c0_151 = arith.constant 0 : index
    %400 = vector.load %arg37[%c0_149, %c0_150, %c0_151] : memref<1x32x64xf32, #tpu.memory_space<vmem>>, vector<1x32x64xf32>
    %401 = vector.shape_cast %400 : vector<1x32x64xf32> to vector<32x64xf32>
    %402 = vector.shape_cast %399 : vector<32x64xf32> to vector<1x32x64xf32>
    tpu.vector_store %arg37[%c0_149, %c0_150, %c0_151], %402 {strides = array<i32>} : memref<1x32x64xf32, #tpu.memory_space<vmem>>, vector<1x32x64xf32>,
    return
  }
  func.func @transform_0(%arg0: i32, %arg1: i32, %arg2: memref<2xi32, #tpu.memory_space<smem>>) -> (i32, i32, i32) {
    %c0_i32 = arith.constant 0 : i32
    %c0_i32_0 = arith.constant 0 : i32
    return %arg0, %arg1, %c0_i32 : i32, i32, i32
  }
  func.func @transform_1(%arg0: i32, %arg1: i32, %arg2: memref<2xi32, #tpu.memory_space<smem>>) -> (i32, i32, i32, i32) {
    %c0_i32 = arith.constant 0 : i32
    %c0_i32_0 = arith.constant 0 : i32
    %c0_i32_1 = arith.constant 0 : i32
    return %arg0, %arg1, %c0_i32, %c0_i32_0 : i32, i32, i32, i32
  }
  func.func @transform_2(%arg0: i32, %arg1: i32, %arg2: memref<2xi32, #tpu.memory_space<smem>>) -> (i32, i32) {
    %c0_i32 = arith.constant 0 : i32
    %c0_i32_0 = arith.constant 0 : i32
    %c0_i32_1 = arith.constant 0 : i32
    return %c0_i32, %c0_i32_0 : i32, i32
  }
  func.func @transform_3(%arg0: i32, %arg1: i32, %arg2: memref<2xi32, #tpu.memory_space<smem>>) -> (i32, i32) {
    %c0_i32 = arith.constant 0 : i32
    %c0_i32_0 = arith.constant 0 : i32
    %c0_i32_1 = arith.constant 0 : i32
    return %c0_i32, %c0_i32_0 : i32, i32
  }
  func.func @transform_4(%arg0: i32, %arg1: i32, %arg2: memref<2xi32, #tpu.memory_space<smem>>) -> (i32, i32) {
    %c0_i32 = arith.constant 0 : i32
    %c0_i32_0 = arith.constant 0 : i32
    %c0_i32_1 = arith.constant 0 : i32
    return %c0_i32, %c0_i32_0 : i32, i32
  }
  func.func @transform_5(%arg0: i32, %arg1: i32, %arg2: memref<2xi32, #tpu.memory_space<smem>>) -> (i32, i32) {
    %c0_i32 = arith.constant 0 : i32
    %c0_i32_0 = arith.constant 0 : i32
    %c0_i32_1 = arith.constant 0 : i32
    return %c0_i32, %c0_i32_0 : i32, i32
  }
  func.func @transform_6(%arg0: i32, %arg1: i32, %arg2: memref<2xi32, #tpu.memory_space<smem>>) -> (i32, i32) {
    %c0_i32 = arith.constant 0 : i32
    %c0_i32_0 = arith.constant 0 : i32
    %c0_i32_1 = arith.constant 0 : i32
    return %c0_i32, %c0_i32_0 : i32, i32
  }
  func.func @transform_7(%arg0: i32, %arg1: i32, %arg2: memref<2xi32, #tpu.memory_space<smem>>) -> (i32, i32) {
    %c0_i32 = arith.constant 0 : i32
    %c0_i32_0 = arith.constant 0 : i32
    %c0_i32_1 = arith.constant 0 : i32
    return %c0_i32, %c0_i32_0 : i32, i32
  }
  func.func @transform_8(%arg0: i32, %arg1: i32, %arg2: memref<2xi32, #tpu.memory_space<smem>>) -> (i32, i32) {
    %c0_i32 = arith.constant 0 : i32
    %c0_i32_0 = arith.constant 0 : i32
    %c0_i32_1 = arith.constant 0 : i32
    return %c0_i32, %c0_i32_0 : i32, i32
  }
  func.func @transform_9(%arg0: i32, %arg1: i32, %arg2: memref<2xi32, #tpu.memory_space<smem>>) -> (i32, i32) {
    %c0_i32 = arith.constant 0 : i32
    %c0_i32_0 = arith.constant 0 : i32
    %c0_i32_1 = arith.constant 0 : i32
    return %c0_i32, %c0_i32_0 : i32, i32
  }
  func.func @transform_10(%arg0: i32, %arg1: i32, %arg2: memref<2xi32, #tpu.memory_space<smem>>) -> (i32, i32) {
    %c0_i32 = arith.constant 0 : i32
    %c0_i32_0 = arith.constant 0 : i32
    %c0_i32_1 = arith.constant 0 : i32
    return %c0_i32, %c0_i32_0 : i32, i32
  }
  func.func @transform_11(%arg0: i32, %arg1: i32, %arg2: memref<2xi32, #tpu.memory_space<smem>>) -> (i32, i32) {
    %c0_i32 = arith.constant 0 : i32
    %c0_i32_0 = arith.constant 0 : i32
    %c0_i32_1 = arith.constant 0 : i32
    return %c0_i32, %c0_i32_0 : i32, i32
  }
  func.func @transform_12(%arg0: i32, %arg1: i32, %arg2: memref<2xi32, #tpu.memory_space<smem>>) -> (i32, i32) {
    %c0_i32 = arith.constant 0 : i32
    %c0_i32_0 = arith.constant 0 : i32
    %c0_i32_1 = arith.constant 0 : i32
    return %c0_i32, %c0_i32_0 : i32, i32
  }
  func.func @transform_13(%arg0: i32, %arg1: i32, %arg2: memref<2xi32, #tpu.memory_space<smem>>) -> (i32, i32) {
    %c0_i32 = arith.constant 0 : i32
    %c0_i32_0 = arith.constant 0 : i32
    %c0_i32_1 = arith.constant 0 : i32
    return %c0_i32, %c0_i32_0 : i32, i32
  }
  func.func @transform_14(%arg0: i32, %arg1: i32, %arg2: memref<2xi32, #tpu.memory_space<smem>>) -> (i32, i32) {
    %c0_i32 = arith.constant 0 : i32
    %c0_i32_0 = arith.constant 0 : i32
    %c0_i32_1 = arith.constant 0 : i32
    return %c0_i32, %c0_i32_0 : i32, i32
  }
  func.func @transform_15(%arg0: i32, %arg1: i32, %arg2: memref<2xi32, #tpu.memory_space<smem>>) -> (i32, i32) {
    %c0_i32 = arith.constant 0 : i32
    %c0_i32_0 = arith.constant 0 : i32
    %c0_i32_1 = arith.constant 0 : i32
    return %c0_i32, %c0_i32_0 : i32, i32
  }
  func.func @transform_16(%arg0: i32, %arg1: i32, %arg2: memref<2xi32, #tpu.memory_space<smem>>) -> (i32, i32) {
    %c0_i32 = arith.constant 0 : i32
    %c0_i32_0 = arith.constant 0 : i32
    %c0_i32_1 = arith.constant 0 : i32
    return %c0_i32, %c0_i32_0 : i32, i32
  }
  func.func @transform_17(%arg0: i32, %arg1: i32, %arg2: memref<2xi32, #tpu.memory_space<smem>>) -> (i32, i32) {
    %c0_i32 = arith.constant 0 : i32
    %c0_i32_0 = arith.constant 0 : i32
    %c0_i32_1 = arith.constant 0 : i32
    return %c0_i32, %c0_i32_0 : i32, i32
  }
  func.func @transform_18(%arg0: i32, %arg1: i32, %arg2: memref<2xi32, #tpu.memory_space<smem>>) -> (i32, i32) {
    %c0_i32 = arith.constant 0 : i32
    %c0_i32_0 = arith.constant 0 : i32
    %c0_i32_1 = arith.constant 0 : i32
    return %c0_i32, %c0_i32_0 : i32, i32
  }
  func.func @transform_19(%arg0: i32, %arg1: i32, %arg2: memref<2xi32, #tpu.memory_space<smem>>) -> (i32, i32) {
    %c0_i32 = arith.constant 0 : i32
    %c0_i32_0 = arith.constant 0 : i32
    %c0_i32_1 = arith.constant 0 : i32
    return %c0_i32, %c0_i32_0 : i32, i32
  }
  func.func @transform_20(%arg0: i32, %arg1: i32, %arg2: memref<2xi32, #tpu.memory_space<smem>>) -> (i32, i32) {
    %c0_i32 = arith.constant 0 : i32
    %c0_i32_0 = arith.constant 0 : i32
    %c0_i32_1 = arith.constant 0 : i32
    return %c0_i32, %c0_i32_0 : i32, i32
  }
  func.func @transform_21(%arg0: i32, %arg1: i32, %arg2: memref<2xi32, #tpu.memory_space<smem>>) -> (i32, i32) {
    %c0_i32 = arith.constant 0 : i32
    %c0_i32_0 = arith.constant 0 : i32
    %c0_i32_1 = arith.constant 0 : i32
    return %c0_i32, %c0_i32_0 : i32, i32
  }
  func.func @transform_22(%arg0: i32, %arg1: i32, %arg2: memref<2xi32, #tpu.memory_space<smem>>) -> (i32, i32) {
    %c0_i32 = arith.constant 0 : i32
    %c0_i32_0 = arith.constant 0 : i32
    %c0_i32_1 = arith.constant 0 : i32
    return %c0_i32, %c0_i32_0 : i32, i32
  }
  func.func @transform_23(%arg0: i32, %arg1: i32, %arg2: memref<2xi32, #tpu.memory_space<smem>>) -> (i32, i32) {
    %c0_i32 = arith.constant 0 : i32
    %c0_i32_0 = arith.constant 0 : i32
    %c0_i32_1 = arith.constant 0 : i32
    return %c0_i32, %c0_i32_0 : i32, i32
  }
  func.func @transform_24(%arg0: i32, %arg1: i32, %arg2: memref<2xi32, #tpu.memory_space<smem>>) -> (i32, i32) {
    %c0_i32 = arith.constant 0 : i32
    %c0_i32_0 = arith.constant 0 : i32
    %c0_i32_1 = arith.constant 0 : i32
    return %c0_i32, %c0_i32_0 : i32, i32
  }
  func.func @transform_25(%arg0: i32, %arg1: i32, %arg2: memref<2xi32, #tpu.memory_space<smem>>) -> (i32, i32) {
    %c0_i32 = arith.constant 0 : i32
    %c0_i32_0 = arith.constant 0 : i32
    %c0_i32_1 = arith.constant 0 : i32
    return %c0_i32, %c0_i32_0 : i32, i32
  }
  func.func @transform_26(%arg0: i32, %arg1: i32, %arg2: memref<2xi32, #tpu.memory_space<smem>>) -> (i32, i32) {
    %c0_i32 = arith.constant 0 : i32
    %c0_i32_0 = arith.constant 0 : i32
    %c0_i32_1 = arith.constant 0 : i32
    return %c0_i32, %c0_i32_0 : i32, i32
  }
  func.func @transform_27(%arg0: i32, %arg1: i32, %arg2: memref<2xi32, #tpu.memory_space<smem>>) -> (i32, i32) {
    %c0_i32 = arith.constant 0 : i32
    %c0_i32_0 = arith.constant 0 : i32
    %c0_i32_1 = arith.constant 0 : i32
    return %c0_i32, %c0_i32_0 : i32, i32
  }
  func.func @transform_28(%arg0: i32, %arg1: i32, %arg2: memref<2xi32, #tpu.memory_space<smem>>) -> (i32, i32) {
    %c0_i32 = arith.constant 0 : i32
    %c0_i32_0 = arith.constant 0 : i32
    %c0_i32_1 = arith.constant 0 : i32
    return %c0_i32, %c0_i32_0 : i32, i32
  }
  func.func @transform_29(%arg0: i32, %arg1: i32, %arg2: memref<2xi32, #tpu.memory_space<smem>>) -> (i32, i32) {
    %c0_i32 = arith.constant 0 : i32
    %c0_i32_0 = arith.constant 0 : i32
    %c0_i32_1 = arith.constant 0 : i32
    return %c0_i32, %c0_i32_0 : i32, i32
  }
  func.func @transform_30(%arg0: i32, %arg1: i32, %arg2: memref<2xi32, #tpu.memory_space<smem>>) -> (i32, i32) {
    %c0_i32 = arith.constant 0 : i32
    %c0_i32_0 = arith.constant 0 : i32
    %c0_i32_1 = arith.constant 0 : i32
    return %c0_i32, %c0_i32_0 : i32, i32
  }
  func.func @transform_31(%arg0: i32, %arg1: i32, %arg2: memref<2xi32, #tpu.memory_space<smem>>) -> (i32, i32) {
    %c0_i32 = arith.constant 0 : i32
    %c0_i32_0 = arith.constant 0 : i32
    %c0_i32_1 = arith.constant 0 : i32
    return %c0_i32, %c0_i32_0 : i32, i32
  }
  func.func @transform_32(%arg0: i32, %arg1: i32, %arg2: memref<2xi32, #tpu.memory_space<smem>>) -> (i32, i32) {
    %c0_i32 = arith.constant 0 : i32
    %c0_i32_0 = arith.constant 0 : i32
    %c0_i32_1 = arith.constant 0 : i32
    return %c0_i32, %c0_i32_0 : i32, i32
  }
  func.func @transform_33(%arg0: i32, %arg1: i32, %arg2: memref<2xi32, #tpu.memory_space<smem>>) -> (i32, i32) {
    %c0_i32 = arith.constant 0 : i32
    %c0_i32_0 = arith.constant 0 : i32
    %c0_i32_1 = arith.constant 0 : i32
    return %c0_i32, %c0_i32_0 : i32, i32
  }
  func.func @transform_34(%arg0: i32, %arg1: i32, %arg2: memref<2xi32, #tpu.memory_space<smem>>) -> (i32, i32, i32) {
    %c0_i32 = arith.constant 0 : i32
    %c0_i32_0 = arith.constant 0 : i32
    return %arg0, %arg1, %c0_i32 : i32, i32, i32
  }
}

</mosaic_0001>

<llo_original>
// kernel: tpu_custom_call.1
$region0: #{tpu_custom_call.1}
  #allocation0 [shape = 'u32[]', space=smem, size = 0x4, offset = 0x4, fixed_abs, tag = 'smem constant byte address 0x4 - core index']
  #allocation1 [shape = 'u32[144,128]{1,0:T(1,128)}', space=vmem, size = 0x12000, scoped, tag = 'internal scratch']
  #allocation2 [shape = 'f32[32,64]{1,0:T(8,128)}', space=vmem, size = 0x4000, scoped, tag = 'scratch operand']
  #allocation3 [shape = 's32[1]{0}', space=sflag, size = 0x4, scoped, tag = 'scoped memory for tpu_custom_call.1']
  #allocation4 [shape = 'u8[512]{0}', space=smem, size = 0x200, scoped, tag = 'prefetched SMEM operand 0']
  %s0 = inlined_call_operand.smem [shape: u32[36], index: -1, kind: input, shape index: {}]
  %s1 = sld [smem:[%s0]]
  %s2 = scalar_lea.smem %s0, 1
  %s3 = sld [smem:[%s2]]
  %s4 = scalar_lea.smem %s0, 2
  %s5 = sld [smem:[%s4]]
  %s6 = scalar_lea.smem %s0, 3
  %s7 = sld [smem:[%s6]]
  %s8 = scalar_lea.smem %s0, 4
  %s9 = sld [smem:[%s8]]
  %s10 = scalar_lea.smem %s0, 5
  %s11 = sld [smem:[%s10]]
  %s12 = scalar_lea.smem %s0, 6
  %s13 = sld [smem:[%s12]]
  %s14 = scalar_lea.smem %s0, 7
  %s15 = sld [smem:[%s14]]
  %s16 = scalar_lea.smem %s0, 8
  %s17 = sld [smem:[%s16]]
  %s18 = scalar_lea.smem %s0, 9
  %s19 = sld [smem:[%s18]]
  %s20 = scalar_lea.smem %s0, 10
  %s21 = sld [smem:[%s20]]
  %s22 = scalar_lea.smem %s0, 11
  %s23 = sld [smem:[%s22]]
  %s24 = scalar_lea.smem %s0, 12
  %s25 = sld [smem:[%s24]]
  %s26 = scalar_lea.smem %s0, 13
  %s27 = sld [smem:[%s26]]
  %s28 = scalar_lea.smem %s0, 14
  %s29 = sld [smem:[%s28]]
  %s30 = scalar_lea.smem %s0, 15
  %s31 = sld [smem:[%s30]]
  %s32 = scalar_lea.smem %s0, 16
  %s33 = sld [smem:[%s32]]
  %s34 = scalar_lea.smem %s0, 17
  %s35 = sld [smem:[%s34]]
  %s36 = scalar_lea.smem %s0, 18
  %s37 = sld [smem:[%s36]]
  %s38 = scalar_lea.smem %s0, 19
  %s39 = sld [smem:[%s38]]
  %s40 = scalar_lea.smem %s0, 20
  %s41 = sld [smem:[%s40]]
  %s42 = scalar_lea.smem %s0, 21
  %s43 = sld [smem:[%s42]]
  %s44 = scalar_lea.smem %s0, 22
  %s45 = sld [smem:[%s44]]
  %s46 = scalar_lea.smem %s0, 23
  %s47 = sld [smem:[%s46]]
  %s48 = scalar_lea.smem %s0, 24
  %s49 = sld [smem:[%s48]]
  %s50 = scalar_lea.smem %s0, 25
  %s51 = sld [smem:[%s50]]
  %s52 = scalar_lea.smem %s0, 26
  %s53 = sld [smem:[%s52]]
  %s54 = scalar_lea.smem %s0, 27
  %s55 = sld [smem:[%s54]]
  %s56 = scalar_lea.smem %s0, 28
  %s57 = sld [smem:[%s56]]
  %s58 = scalar_lea.smem %s0, 29
  %s59 = sld [smem:[%s58]]
  %s60 = scalar_lea.smem %s0, 30
  %s61 = sld [smem:[%s60]]
  %s62 = scalar_lea.smem %s0, 31
  %s63 = sld [smem:[%s62]]
  %s64 = scalar_lea.smem %s0, 32
  %s65 = sld [smem:[%s64]]
  %s66 = scalar_lea.smem %s0, 33
  %s67 = sld [smem:[%s66]]
  %s68 = scalar_lea.smem %s0, 34
  %s69 = sld [smem:[%s68]]
  %s70 = scalar_lea.smem %s0, 35
  %s71 = sld [smem:[%s70]]
  %s72 = sld [smem:[#allocation0]]
  $region257: #{tpu_custom_call.1} parent=0
    _
  %s74 = ssub.s32 1, %s72
  %s75 = scalar_select 0, %s74, %s72
  %77 = dma.hbm_to_smem %s1, 16, [#allocation4], [#allocation3]
  %78 = dma.done [#allocation3], 16
  %79 = sfence
  $region1: #{tpu_custom_call.1} parent=0
    #allocation5 [shape = 'u8[512]{0}', space=vmem, size = 0x400, scoped, tag = 'input window, operand 3, single buffered']
    #allocation6 [shape = 's32[2]{0}', space=sflag, size = 0x8, scoped, tag = 'scoped memory for tpu_custom_call.1']
    #allocation7 [shape = 's32[2]{0}', space=sflag, size = 0x8, scoped, tag = 'scoped memory for tpu_custom_call.1']
    #allocation8 [shape = 'u8[512]{0}', space=vmem, size = 0x400, scoped, tag = 'input window, operand 4, single buffered']
    #allocation9 [shape = 's32[1]{0}', space=sflag, size = 0x4, scoped, tag = 'scoped memory for tpu_custom_call.1']
    #allocation10 [shape = 'u8[16384]{0}', space=vmem, size = 0x4000, scoped, tag = 'input window, operand 5, single buffered']
    #allocation11 [shape = 'u8[512]{0}', space=vmem, size = 0x400, scoped, tag = 'input window, operand 6, single buffered']
    #allocation12 [shape = 's32[1]{0}', space=sflag, size = 0x4, scoped, tag = 'scoped memory for tpu_custom_call.1']
    #allocation13 [shape = 'u8[512]{0}', space=vmem, size = 0x400, scoped, tag = 'input window, operand 8, single buffered']
    #allocation14 [shape = 'u8[512]{0}', space=vmem, size = 0x400, scoped, tag = 'input window, operand 9, single buffered']
    #allocation15 [shape = 's32[1]{0}', space=sflag, size = 0x4, scoped, tag = 'scoped memory for tpu_custom_call.1']
    #allocation16 [shape = 'u8[512]{0}', space=vmem, size = 0x400, scoped, tag = 'input window, operand 10, single buffered']
    #allocation17 [shape = 'u8[16384]{0}', space=vmem, size = 0x4000, scoped, tag = 'input window, operand 11, single buffered']
    #allocation18 [shape = 's32[1]{0}', space=sflag, size = 0x4, scoped, tag = 'scoped memory for tpu_custom_call.1']
    #allocation19 [shape = 'u8[512]{0}', space=vmem, size = 0x400, scoped, tag = 'input window, operand 12, single buffered']
    #allocation20 [shape = 'u8[16384]{0}', space=vmem, size = 0x4000, scoped, tag = 'input window, operand 13, single buffered']
    #allocation21 [shape = 's32[1]{0}', space=sflag, size = 0x4, scoped, tag = 'scoped memory for tpu_custom_call.1']
    #allocation22 [shape = 'u8[512]{0}', space=vmem, size = 0x400, scoped, tag = 'input window, operand 14, single buffered']
    #allocation23 [shape = 'u8[2048]{0}', space=vmem, size = 0x800, scoped, tag = 'input window, operand 15, single buffered']
    #allocation24 [shape = 's32[1]{0}', space=sflag, size = 0x4, scoped, tag = 'scoped memory for tpu_custom_call.1']
    #allocation25 [shape = 'u8[512]{0}', space=vmem, size = 0x400, scoped, tag = 'input window, operand 16, single buffered']
    #allocation26 [shape = 'u8[512]{0}', space=vmem, size = 0x400, scoped, tag = 'input window, operand 17, single buffered']
    #allocation27 [shape = 's32[1]{0}', space=sflag, size = 0x4, scoped, tag = 'scoped memory for tpu_custom_call.1']
    #allocation28 [shape = 'u8[512]{0}', space=vmem, size = 0x400, scoped, tag = 'input window, operand 18, single buffered']
    #allocation29 [shape = 'u8[16384]{0}', space=vmem, size = 0x4000, scoped, tag = 'input window, operand 19, single buffered']
    #allocation30 [shape = 's32[1]{0}', space=sflag, size = 0x4, scoped, tag = 'scoped memory for tpu_custom_call.1']
    #allocation31 [shape = 'u8[512]{0}', space=vmem, size = 0x400, scoped, tag = 'input window, operand 20, single buffered']
    #allocation32 [shape = 'u8[512]{0}', space=vmem, size = 0x400, scoped, tag = 'input window, operand 21, single buffered']
    #allocation33 [shape = 's32[1]{0}', space=sflag, size = 0x4, scoped, tag = 'scoped memory for tpu_custom_call.1']
    #allocation34 [shape = 'u8[512]{0}', space=vmem, size = 0x400, scoped, tag = 'input window, operand 22, single buffered']
    #allocation35 [shape = 'u8[16384]{0}', space=vmem, size = 0x4000, scoped, tag = 'input window, operand 25, single buffered']
    #allocation36 [shape = 's32[1]{0}', space=sflag, size = 0x4, scoped, tag = 'scoped memory for tpu_custom_call.1']
    #allocation37 [shape = 'u8[512]{0}', space=vmem, size = 0x400, scoped, tag = 'input window, operand 26, single buffered']
    #allocation38 [shape = 'u8[16384]{0}', space=vmem, size = 0x4000, scoped, tag = 'input window, operand 29, single buffered']
    #allocation39 [shape = 's32[1]{0}', space=sflag, size = 0x4, scoped, tag = 'scoped memory for tpu_custom_call.1']
    #allocation40 [shape = 'u8[32768]{0}', space=vmem, size = 0x8000, scoped, tag = 'output window, operand 0']
    %80 = vsyncpa [#allocation6], 0
    %81 = vsyncpa [#allocation9], 0
    %82 = vsyncpa [#allocation12], 0
    %83 = vsyncpa [#allocation15], 0
    %84 = vsyncpa [#allocation18], 0
    %85 = vsyncpa [#allocation21], 0
    %86 = vsyncpa [#allocation24], 0
    %87 = vsyncpa [#allocation27], 0
    %88 = vsyncpa [#allocation30], 0
    %89 = vsyncpa [#allocation33], 0
    %90 = vsyncpa [#allocation36], 0
    %91 = vsyncpa [#allocation39], 0
    %92 = vsyncpa [#allocation7], 0
    %s93 = scalar_lea.sflag [#allocation7], 1
    %94 = vsyncpa %s93, 0
    loop: start=0, step=1, limit=6
    $region2: #{tpu_custom_call.1} parent=1 // loop_pre_header
      _
    $region3: #{tpu_custom_call.1} parent=1 // loop_header
      %s96 = sphi 0, %s100
      %p97 = scmp.ge.s32.totalorder %s96, 6
      %s103 = sphi 0, %s115
      %s104 = sphi 0, %s111
      %s105 = sphi 0, %s103
      %s106 = sphi 0, %s104
      %s107 = sphi 0, %s105
      %s108 = sphi 0, %s106
      %s120 = sphi 0, %s122
      %s123 = sphi 0, %s120
      %s124 = sphi 0, %s123
      %s140 = sphi 0, %s124
      %s148 = sphi 0, %s150
      %s151 = sphi 0, %s148
      %s152 = sphi 0, %s151
      %s168 = sphi 0, %s152
      %s172 = sphi 0, %s172
      %s174 = sphi 0, %s172
      %s175 = sphi 0, %s174
      %s189 = sphi 0, %s175
      %s193 = sphi 0, %s193
      %s195 = sphi 0, %s193
      %s196 = sphi 0, %s195
      %s210 = sphi 0, %s196
      %s214 = sphi 0, %s214
      %s216 = sphi 0, %s214
      %s217 = sphi 0, %s216
      %s231 = sphi 0, %s217
      %s235 = sphi 0, %s235
      %s237 = sphi 0, %s235
      %s238 = sphi 0, %s237
      %s252 = sphi 0, %s238
      %s256 = sphi 0, %s256
      %s258 = sphi 0, %s256
      %s259 = sphi 0, %s258
      %s273 = sphi 0, %s259
      %s277 = sphi 0, %s277
      %s279 = sphi 0, %s277
      %s280 = sphi 0, %s279
      %s294 = sphi 0, %s280
      %s298 = sphi 0, %s298
      %s300 = sphi 0, %s298
      %s301 = sphi 0, %s300
      %s315 = sphi 0, %s301
      %s319 = sphi 0, %s319
      %s321 = sphi 0, %s319
      %s322 = sphi 0, %s321
      %s336 = sphi 0, %s322
      %s340 = sphi 0, %s340
      %s342 = sphi 0, %s340
      %s343 = sphi 0, %s342
      %s357 = sphi 0, %s343
      %s361 = sphi 0, %s361
      %s363 = sphi 0, %s361
      %s364 = sphi 0, %s363
      %s378 = sphi 0, %s364
      %s382 = sphi 0, %s382
      %s384 = sphi 0, %s382
      %s385 = sphi 0, %s384
      %s399 = sphi 0, %s385
      %s403 = sphi 0, %s403
      %s405 = sphi 0, %s403
      %s406 = sphi 0, %s405
      %s420 = sphi 0, %s406
      %s424 = sphi 0, %s424
      %s426 = sphi 0, %s424
      %s427 = sphi 0, %s426
      %s441 = sphi 0, %s427
      %s445 = sphi 0, %s445
      %s447 = sphi 0, %s445
      %s448 = sphi 0, %s447
      %s462 = sphi 0, %s448
      %s466 = sphi 0, %s466
      %s468 = sphi 0, %s466
      %s469 = sphi 0, %s468
      %s483 = sphi 0, %s469
      %s487 = sphi 0, %s487
      %s489 = sphi 0, %s487
      %s490 = sphi 0, %s489
      %s504 = sphi 0, %s490
      %s508 = sphi 0, %s508
      %s510 = sphi 0, %s508
      %s511 = sphi 0, %s510
      %s525 = sphi 0, %s511
      %s529 = sphi 0, %s529
      %s531 = sphi 0, %s529
      %s532 = sphi 0, %s531
      %s546 = sphi 0, %s532
      %s550 = sphi 0, %s550
      %s552 = sphi 0, %s550
      %s553 = sphi 0, %s552
      %s567 = sphi 0, %s553
      %s571 = sphi 0, %s571
      %s573 = sphi 0, %s571
      %s574 = sphi 0, %s573
      %s588 = sphi 0, %s574
      %s592 = sphi 0, %s592
      %s594 = sphi 0, %s592
      %s595 = sphi 0, %s594
      %s609 = sphi 0, %s595
      %s613 = sphi 0, %s613
      %s615 = sphi 0, %s613
      %s616 = sphi 0, %s615
      %s630 = sphi 0, %s616
      %s634 = sphi 0, %s634
      %s636 = sphi 0, %s634
      %s637 = sphi 0, %s636
      %s651 = sphi 0, %s637
      %s655 = sphi 0, %s655
      %s657 = sphi 0, %s655
      %s658 = sphi 0, %s657
      %s672 = sphi 0, %s658
      %s676 = sphi 0, %s676
      %s678 = sphi 0, %s676
      %s679 = sphi 0, %s678
      %s693 = sphi 0, %s679
      %s697 = sphi 0, %s697
      %s699 = sphi 0, %s697
      %s700 = sphi 0, %s699
      %s714 = sphi 0, %s700
      %s718 = sphi 0, %s718
      %s720 = sphi 0, %s718
      %s721 = sphi 0, %s720
      %s735 = sphi 0, %s721
      %s739 = sphi 0, %s739
      %s741 = sphi 0, %s739
      %s742 = sphi 0, %s741
      %s756 = sphi 0, %s742
      %s760 = sphi 0, %s760
      %s762 = sphi 0, %s760
      %s763 = sphi 0, %s762
      %s777 = sphi 0, %s763
      %s781 = sphi 0, %s781
      %s783 = sphi 0, %s781
      %s784 = sphi 0, %s783
      %s798 = sphi 0, %s784
      %s802 = sphi 0, %s802
      %s804 = sphi 0, %s802
      %s805 = sphi 0, %s804
      %s819 = sphi 0, %s805
      %s823 = sphi 0, %s823
      %s825 = sphi 0, %s823
      %s826 = sphi 0, %s825
      %s840 = sphi 0, %s826
      %s848 = sphi 0, %s850
      %s851 = sphi 0, %s848
      %s852 = sphi 0, %s851
      %s868 = sphi 0, %s852
    $region4: #{tpu_custom_call.1} parent=1 // loop_header_branch
      %99 = sbr.rel (%p97) target = $region8
    $region5: #{tpu_custom_call.1} parent=1 // loop_body
      %s101 = ssub.s32 %s96, 1
      %s102 = ssub.s32 %s96, 2
      %s109 = sadd.s32 1, %s104
      %p110 = scmp.ge.s32.totalorder %s109, 2
      %s111 = scalar_select %p110, 0, %s109
      %s112 = sadd.s32 1, %s103
      %s113 = scalar_select %p110, %s112, %s103
      %p114 = scmp.ge.s32.totalorder %s113, 2
      %s115 = scalar_select %p114, 0, %s113
      %s116 = ssub.s32 %s103, %s115
      %s117 = ssub.s32 %s104, %s111
      %s118 = sor.u32 %s116, %s117
      %p119 = scmp.eq.s32.totalorder %s118, 0
      %s121 = sadd.s32 %s120, 1
      %s122 = scalar_select %p119, %s120, %s121
      %p125 = pneg %p119
      %p126 = scmp.eq.s32.totalorder %s96, 3
      %p127 = por %p125, %p126
      %p128 = scmp.ne.s32.totalorder %s120, %s123
      %p129 = scmp.eq.s32.totalorder %s96, 0
      %p130 = por %p128, %p129
      %p131 = scmp.ne.s32.totalorder %s120, %s123
      %p132 = scmp.eq.s32.totalorder %s101, 3
      %p133 = por %p131, %p132
      %p134 = scmp.ne.s32.totalorder %s123, %s124
      %p135 = scmp.eq.s32.totalorder %s101, 0
      %p136 = por %p134, %p135
      %p137 = scmp.ne.s32.totalorder %s123, %s124
      %p138 = scmp.eq.s32.totalorder %s102, 3
      %p139 = por %p137, %p138
      %p141 = scmp.ne.s32.totalorder %s124, %s140
      %p142 = scmp.eq.s32.totalorder %s102, 0
      %p143 = por %p141, %p142
      %s144 = ssub.s32 %s103, %s115
      %s145 = ssub.s32 %s104, %s111
      %s146 = sor.u32 %s144, %s145
      %p147 = scmp.eq.s32.totalorder %s146, 0
      %s149 = sadd.s32 %s148, 1
      %s150 = scalar_select %p147, %s148, %s149
      %p153 = pneg %p147
      %p154 = scmp.eq.s32.totalorder %s96, 3
      %p155 = por %p153, %p154
      %p156 = scmp.ne.s32.totalorder %s148, %s151
      %p157 = scmp.eq.s32.totalorder %s96, 0
      %p158 = por %p156, %p157
      %p159 = scmp.ne.s32.totalorder %s148, %s151
      %p160 = scmp.eq.s32.totalorder %s101, 3
      %p161 = por %p159, %p160
      %p162 = scmp.ne.s32.totalorder %s151, %s152
      %p163 = scmp.eq.s32.totalorder %s101, 0
      %p164 = por %p162, %p163
      %p165 = scmp.ne.s32.totalorder %s151, %s152
      %p166 = scmp.eq.s32.totalorder %s102, 3
      %p167 = por %p165, %p166
      %p169 = scmp.ne.s32.totalorder %s152, %s168
      %p170 = scmp.eq.s32.totalorder %s102, 0
      %p171 = por %p169, %p170
      %s173 = sadd.s32 %s172, 1
      %p176 = scmp.eq.s32.totalorder %s96, 3
      %p177 = scmp.ne.s32.totalorder %s172, %s174
      %p178 = scmp.eq.s32.totalorder %s96, 0
      %p179 = por %p177, %p178
      %p180 = scmp.ne.s32.totalorder %s172, %s174
      %p181 = scmp.eq.s32.totalorder %s101, 3
      %p182 = por %p180, %p181
      %p183 = scmp.ne.s32.totalorder %s174, %s175
      %p184 = scmp.eq.s32.totalorder %s101, 0
      %p185 = por %p183, %p184
      %p186 = scmp.ne.s32.totalorder %s174, %s175
      %p187 = scmp.eq.s32.totalorder %s102, 3
      %p188 = por %p186, %p187
      %p190 = scmp.ne.s32.totalorder %s175, %s189
      %p191 = scmp.eq.s32.totalorder %s102, 0
      %p192 = por %p190, %p191
      %s194 = sadd.s32 %s193, 1
      %p197 = scmp.eq.s32.totalorder %s96, 3
      %p198 = scmp.ne.s32.totalorder %s193, %s195
      %p199 = scmp.eq.s32.totalorder %s96, 0
      %p200 = por %p198, %p199
      %p201 = scmp.ne.s32.totalorder %s193, %s195
      %p202 = scmp.eq.s32.totalorder %s101, 3
      %p203 = por %p201, %p202
      %p204 = scmp.ne.s32.totalorder %s195, %s196
      %p205 = scmp.eq.s32.totalorder %s101, 0
      %p206 = por %p204, %p205
      %p207 = scmp.ne.s32.totalorder %s195, %s196
      %p208 = scmp.eq.s32.totalorder %s102, 3
      %p209 = por %p207, %p208
      %p211 = scmp.ne.s32.totalorder %s196, %s210
      %p212 = scmp.eq.s32.totalorder %s102, 0
      %p213 = por %p211, %p212
      %s215 = sadd.s32 %s214, 1
      %p218 = scmp.eq.s32.totalorder %s96, 3
      %p219 = scmp.ne.s32.totalorder %s214, %s216
      %p220 = scmp.eq.s32.totalorder %s96, 0
      %p221 = por %p219, %p220
      %p222 = scmp.ne.s32.totalorder %s214, %s216
      %p223 = scmp.eq.s32.totalorder %s101, 3
      %p224 = por %p222, %p223
      %p225 = scmp.ne.s32.totalorder %s216, %s217
      %p226 = scmp.eq.s32.totalorder %s101, 0
      %p227 = por %p225, %p226
      %p228 = scmp.ne.s32.totalorder %s216, %s217
      %p229 = scmp.eq.s32.totalorder %s102, 3
      %p230 = por %p228, %p229
      %p232 = scmp.ne.s32.totalorder %s217, %s231
      %p233 = scmp.eq.s32.totalorder %s102, 0
      %p234 = por %p232, %p233
      %s236 = sadd.s32 %s235, 1
      %p239 = scmp.eq.s32.totalorder %s96, 3
      %p240 = scmp.ne.s32.totalorder %s235, %s237
      %p241 = scmp.eq.s32.totalorder %s96, 0
      %p242 = por %p240, %p241
      %p243 = scmp.ne.s32.totalorder %s235, %s237
      %p244 = scmp.eq.s32.totalorder %s101, 3
      %p245 = por %p243, %p244
      %p246 = scmp.ne.s32.totalorder %s237, %s238
      %p247 = scmp.eq.s32.totalorder %s101, 0
      %p248 = por %p246, %p247
      %p249 = scmp.ne.s32.totalorder %s237, %s238
      %p250 = scmp.eq.s32.totalorder %s102, 3
      %p251 = por %p249, %p250
      %p253 = scmp.ne.s32.totalorder %s238, %s252
      %p254 = scmp.eq.s32.totalorder %s102, 0
      %p255 = por %p253, %p254
      %s257 = sadd.s32 %s256, 1
      %p260 = scmp.eq.s32.totalorder %s96, 3
      %p261 = scmp.ne.s32.totalorder %s256, %s258
      %p262 = scmp.eq.s32.totalorder %s96, 0
      %p263 = por %p261, %p262
      %p264 = scmp.ne.s32.totalorder %s256, %s258
      %p265 = scmp.eq.s32.totalorder %s101, 3
      %p266 = por %p264, %p265
      %p267 = scmp.ne.s32.totalorder %s258, %s259
      %p268 = scmp.eq.s32.totalorder %s101, 0
      %p269 = por %p267, %p268
      %p270 = scmp.ne.s32.totalorder %s258, %s259
      %p271 = scmp.eq.s32.totalorder %s102, 3
      %p272 = por %p270, %p271
      %p274 = scmp.ne.s32.totalorder %s259, %s273
      %p275 = scmp.eq.s32.totalorder %s102, 0
      %p276 = por %p274, %p275
      %s278 = sadd.s32 %s277, 1
      %p281 = scmp.eq.s32.totalorder %s96, 3
      %p282 = scmp.ne.s32.totalorder %s277, %s279
      %p283 = scmp.eq.s32.totalorder %s96, 0
      %p284 = por %p282, %p283
      %p285 = scmp.ne.s32.totalorder %s277, %s279
      %p286 = scmp.eq.s32.totalorder %s101, 3
      %p287 = por %p285, %p286
      %p288 = scmp.ne.s32.totalorder %s279, %s280
      %p289 = scmp.eq.s32.totalorder %s101, 0
      %p290 = por %p288, %p289
      %p291 = scmp.ne.s32.totalorder %s279, %s280
      %p292 = scmp.eq.s32.totalorder %s102, 3
      %p293 = por %p291, %p292
      %p295 = scmp.ne.s32.totalorder %s280, %s294
      %p296 = scmp.eq.s32.totalorder %s102, 0
      %p297 = por %p295, %p296
      %s299 = sadd.s32 %s298, 1
      %p302 = scmp.eq.s32.totalorder %s96, 3
      %p303 = scmp.ne.s32.totalorder %s298, %s300
      %p304 = scmp.eq.s32.totalorder %s96, 0
      %p305 = por %p303, %p304
      %p306 = scmp.ne.s32.totalorder %s298, %s300
      %p307 = scmp.eq.s32.totalorder %s101, 3
      %p308 = por %p306, %p307
      %p309 = scmp.ne.s32.totalorder %s300, %s301
      %p310 = scmp.eq.s32.totalorder %s101, 0
      %p311 = por %p309, %p310
      %p312 = scmp.ne.s32.totalorder %s300, %s301
      %p313 = scmp.eq.s32.totalorder %s102, 3
      %p314 = por %p312, %p313
      %p316 = scmp.ne.s32.totalorder %s301, %s315
      %p317 = scmp.eq.s32.totalorder %s102, 0
      %p318 = por %p316, %p317
      %s320 = sadd.s32 %s319, 1
      %p323 = scmp.eq.s32.totalorder %s96, 3
      %p324 = scmp.ne.s32.totalorder %s319, %s321
      %p325 = scmp.eq.s32.totalorder %s96, 0
      %p326 = por %p324, %p325
      %p327 = scmp.ne.s32.totalorder %s319, %s321
      %p328 = scmp.eq.s32.totalorder %s101, 3
      %p329 = por %p327, %p328
      %p330 = scmp.ne.s32.totalorder %s321, %s322
      %p331 = scmp.eq.s32.totalorder %s101, 0
      %p332 = por %p330, %p331
      %p333 = scmp.ne.s32.totalorder %s321, %s322
      %p334 = scmp.eq.s32.totalorder %s102, 3
      %p335 = por %p333, %p334
      %p337 = scmp.ne.s32.totalorder %s322, %s336
      %p338 = scmp.eq.s32.totalorder %s102, 0
      %p339 = por %p337, %p338
      %s341 = sadd.s32 %s340, 1
      %p344 = scmp.eq.s32.totalorder %s96, 3
      %p345 = scmp.ne.s32.totalorder %s340, %s342
      %p346 = scmp.eq.s32.totalorder %s96, 0
      %p347 = por %p345, %p346
      %p348 = scmp.ne.s32.totalorder %s340, %s342
      %p349 = scmp.eq.s32.totalorder %s101, 3
      %p350 = por %p348, %p349
      %p351 = scmp.ne.s32.totalorder %s342, %s343
      %p352 = scmp.eq.s32.totalorder %s101, 0
      %p353 = por %p351, %p352
      %p354 = scmp.ne.s32.totalorder %s342, %s343
      %p355 = scmp.eq.s32.totalorder %s102, 3
      %p356 = por %p354, %p355
      %p358 = scmp.ne.s32.totalorder %s343, %s357
      %p359 = scmp.eq.s32.totalorder %s102, 0
      %p360 = por %p358, %p359
      %s362 = sadd.s32 %s361, 1
      %p365 = scmp.eq.s32.totalorder %s96, 3
      %p366 = scmp.ne.s32.totalorder %s361, %s363
      %p367 = scmp.eq.s32.totalorder %s96, 0
      %p368 = por %p366, %p367
      %p369 = scmp.ne.s32.totalorder %s361, %s363
      %p370 = scmp.eq.s32.totalorder %s101, 3
      %p371 = por %p369, %p370
      %p372 = scmp.ne.s32.totalorder %s363, %s364
      %p373 = scmp.eq.s32.totalorder %s101, 0
      %p374 = por %p372, %p373
      %p375 = scmp.ne.s32.totalorder %s363, %s364
      %p376 = scmp.eq.s32.totalorder %s102, 3
      %p377 = por %p375, %p376
      %p379 = scmp.ne.s32.totalorder %s364, %s378
      %p380 = scmp.eq.s32.totalorder %s102, 0
      %p381 = por %p379, %p380
      %s383 = sadd.s32 %s382, 1
      %p386 = scmp.eq.s32.totalorder %s96, 3
      %p387 = scmp.ne.s32.totalorder %s382, %s384
      %p388 = scmp.eq.s32.totalorder %s96, 0
      %p389 = por %p387, %p388
      %p390 = scmp.ne.s32.totalorder %s382, %s384
      %p391 = scmp.eq.s32.totalorder %s101, 3
      %p392 = por %p390, %p391
      %p393 = scmp.ne.s32.totalorder %s384, %s385
      %p394 = scmp.eq.s32.totalorder %s101, 0
      %p395 = por %p393, %p394
      %p396 = scmp.ne.s32.totalorder %s384, %s385
      %p397 = scmp.eq.s32.totalorder %s102, 3
      %p398 = por %p396, %p397
      %p400 = scmp.ne.s32.totalorder %s385, %s399
      %p401 = scmp.eq.s32.totalorder %s102, 0
      %p402 = por %p400, %p401
      %s404 = sadd.s32 %s403, 1
      %p407 = scmp.eq.s32.totalorder %s96, 3
      %p408 = scmp.ne.s32.totalorder %s403, %s405
      %p409 = scmp.eq.s32.totalorder %s96, 0
      %p410 = por %p408, %p409
      %p411 = scmp.ne.s32.totalorder %s403, %s405
      %p412 = scmp.eq.s32.totalorder %s101, 3
      %p413 = por %p411, %p412
      %p414 = scmp.ne.s32.totalorder %s405, %s406
      %p415 = scmp.eq.s32.totalorder %s101, 0
      %p416 = por %p414, %p415
      %p417 = scmp.ne.s32.totalorder %s405, %s406
      %p418 = scmp.eq.s32.totalorder %s102, 3
      %p419 = por %p417, %p418
      %p421 = scmp.ne.s32.totalorder %s406, %s420
      %p422 = scmp.eq.s32.totalorder %s102, 0
      %p423 = por %p421, %p422
      %s425 = sadd.s32 %s424, 1
      %p428 = scmp.eq.s32.totalorder %s96, 3
      %p429 = scmp.ne.s32.totalorder %s424, %s426
      %p430 = scmp.eq.s32.totalorder %s96, 0
      %p431 = por %p429, %p430
      %p432 = scmp.ne.s32.totalorder %s424, %s426
      %p433 = scmp.eq.s32.totalorder %s101, 3
      %p434 = por %p432, %p433
      %p435 = scmp.ne.s32.totalorder %s426, %s427
      %p436 = scmp.eq.s32.totalorder %s101, 0
      %p437 = por %p435, %p436
      %p438 = scmp.ne.s32.totalorder %s426, %s427
      %p439 = scmp.eq.s32.totalorder %s102, 3
      %p440 = por %p438, %p439
      %p442 = scmp.ne.s32.totalorder %s427, %s441
      %p443 = scmp.eq.s32.totalorder %s102, 0
      %p444 = por %p442, %p443
      %s446 = sadd.s32 %s445, 1
      %p449 = scmp.eq.s32.totalorder %s96, 3
      %p450 = scmp.ne.s32.totalorder %s445, %s447
      %p451 = scmp.eq.s32.totalorder %s96, 0
      %p452 = por %p450, %p451
      %p453 = scmp.ne.s32.totalorder %s445, %s447
      %p454 = scmp.eq.s32.totalorder %s101, 3
      %p455 = por %p453, %p454
      %p456 = scmp.ne.s32.totalorder %s447, %s448
      %p457 = scmp.eq.s32.totalorder %s101, 0
      %p458 = por %p456, %p457
      %p459 = scmp.ne.s32.totalorder %s447, %s448
      %p460 = scmp.eq.s32.totalorder %s102, 3
      %p461 = por %p459, %p460
      %p463 = scmp.ne.s32.totalorder %s448, %s462
      %p464 = scmp.eq.s32.totalorder %s102, 0
      %p465 = por %p463, %p464
      %s467 = sadd.s32 %s466, 1
      %p470 = scmp.eq.s32.totalorder %s96, 3
      %p471 = scmp.ne.s32.totalorder %s466, %s468
      %p472 = scmp.eq.s32.totalorder %s96, 0
      %p473 = por %p471, %p472
      %p474 = scmp.ne.s32.totalorder %s466, %s468
      %p475 = scmp.eq.s32.totalorder %s101, 3
      %p476 = por %p474, %p475
      %p477 = scmp.ne.s32.totalorder %s468, %s469
      %p478 = scmp.eq.s32.totalorder %s101, 0
      %p479 = por %p477, %p478
      %p480 = scmp.ne.s32.totalorder %s468, %s469
      %p481 = scmp.eq.s32.totalorder %s102, 3
      %p482 = por %p480, %p481
      %p484 = scmp.ne.s32.totalorder %s469, %s483
      %p485 = scmp.eq.s32.totalorder %s102, 0
      %p486 = por %p484, %p485
      %s488 = sadd.s32 %s487, 1
      %p491 = scmp.eq.s32.totalorder %s96, 3
      %p492 = scmp.ne.s32.totalorder %s487, %s489
      %p493 = scmp.eq.s32.totalorder %s96, 0
      %p494 = por %p492, %p493
      %p495 = scmp.ne.s32.totalorder %s487, %s489
      %p496 = scmp.eq.s32.totalorder %s101, 3
      %p497 = por %p495, %p496
      %p498 = scmp.ne.s32.totalorder %s489, %s490
      %p499 = scmp.eq.s32.totalorder %s101, 0
      %p500 = por %p498, %p499
      %p501 = scmp.ne.s32.totalorder %s489, %s490
      %p502 = scmp.eq.s32.totalorder %s102, 3
      %p503 = por %p501, %p502
      %p505 = scmp.ne.s32.totalorder %s490, %s504
      %p506 = scmp.eq.s32.totalorder %s102, 0
      %p507 = por %p505, %p506
      %s509 = sadd.s32 %s508, 1
      %p512 = scmp.eq.s32.totalorder %s96, 3
      %p513 = scmp.ne.s32.totalorder %s508, %s510
      %p514 = scmp.eq.s32.totalorder %s96, 0
      %p515 = por %p513, %p514
      %p516 = scmp.ne.s32.totalorder %s508, %s510
      %p517 = scmp.eq.s32.totalorder %s101, 3
      %p518 = por %p516, %p517
      %p519 = scmp.ne.s32.totalorder %s510, %s511
      %p520 = scmp.eq.s32.totalorder %s101, 0
      %p521 = por %p519, %p520
      %p522 = scmp.ne.s32.totalorder %s510, %s511
      %p523 = scmp.eq.s32.totalorder %s102, 3
      %p524 = por %p522, %p523
      %p526 = scmp.ne.s32.totalorder %s511, %s525
      %p527 = scmp.eq.s32.totalorder %s102, 0
      %p528 = por %p526, %p527
      %s530 = sadd.s32 %s529, 1
      %p533 = scmp.eq.s32.totalorder %s96, 3
      %p534 = scmp.ne.s32.totalorder %s529, %s531
      %p535 = scmp.eq.s32.totalorder %s96, 0
      %p536 = por %p534, %p535
      %p537 = scmp.ne.s32.totalorder %s529, %s531
      %p538 = scmp.eq.s32.totalorder %s101, 3
      %p539 = por %p537, %p538
      %p540 = scmp.ne.s32.totalorder %s531, %s532
      %p541 = scmp.eq.s32.totalorder %s101, 0
      %p542 = por %p540, %p541
      %p543 = scmp.ne.s32.totalorder %s531, %s532
      %p544 = scmp.eq.s32.totalorder %s102, 3
      %p545 = por %p543, %p544
      %p547 = scmp.ne.s32.totalorder %s532, %s546
      %p548 = scmp.eq.s32.totalorder %s102, 0
      %p549 = por %p547, %p548
      %s551 = sadd.s32 %s550, 1
      %p554 = scmp.eq.s32.totalorder %s96, 3
      %p555 = scmp.ne.s32.totalorder %s550, %s552
      %p556 = scmp.eq.s32.totalorder %s96, 0
      %p557 = por %p555, %p556
      %p558 = scmp.ne.s32.totalorder %s550, %s552
      %p559 = scmp.eq.s32.totalorder %s101, 3
      %p560 = por %p558, %p559
      %p561 = scmp.ne.s32.totalorder %s552, %s553
      %p562 = scmp.eq.s32.totalorder %s101, 0
      %p563 = por %p561, %p562
      %p564 = scmp.ne.s32.totalorder %s552, %s553
      %p565 = scmp.eq.s32.totalorder %s102, 3
      %p566 = por %p564, %p565
      %p568 = scmp.ne.s32.totalorder %s553, %s567
      %p569 = scmp.eq.s32.totalorder %s102, 0
      %p570 = por %p568, %p569
      %s572 = sadd.s32 %s571, 1
      %p575 = scmp.eq.s32.totalorder %s96, 3
      %p576 = scmp.ne.s32.totalorder %s571, %s573
      %p577 = scmp.eq.s32.totalorder %s96, 0
      %p578 = por %p576, %p577
      %p579 = scmp.ne.s32.totalorder %s571, %s573
      %p580 = scmp.eq.s32.totalorder %s101, 3
      %p581 = por %p579, %p580
      %p582 = scmp.ne.s32.totalorder %s573, %s574
      %p583 = scmp.eq.s32.totalorder %s101, 0
      %p584 = por %p582, %p583
      %p585 = scmp.ne.s32.totalorder %s573, %s574
      %p586 = scmp.eq.s32.totalorder %s102, 3
      %p587 = por %p585, %p586
      %p589 = scmp.ne.s32.totalorder %s574, %s588
      %p590 = scmp.eq.s32.totalorder %s102, 0
      %p591 = por %p589, %p590
      %s593 = sadd.s32 %s592, 1
      %p596 = scmp.eq.s32.totalorder %s96, 3
      %p597 = scmp.ne.s32.totalorder %s592, %s594
      %p598 = scmp.eq.s32.totalorder %s96, 0
      %p599 = por %p597, %p598
      %p600 = scmp.ne.s32.totalorder %s592, %s594
      %p601 = scmp.eq.s32.totalorder %s101, 3
      %p602 = por %p600, %p601
      %p603 = scmp.ne.s32.totalorder %s594, %s595
      %p604 = scmp.eq.s32.totalorder %s101, 0
      %p605 = por %p603, %p604
      %p606 = scmp.ne.s32.totalorder %s594, %s595
      %p607 = scmp.eq.s32.totalorder %s102, 3
      %p608 = por %p606, %p607
      %p610 = scmp.ne.s32.totalorder %s595, %s609
      %p611 = scmp.eq.s32.totalorder %s102, 0
      %p612 = por %p610, %p611
      %s614 = sadd.s32 %s613, 1
      %p617 = scmp.eq.s32.totalorder %s96, 3
      %p618 = scmp.ne.s32.totalorder %s613, %s615
      %p619 = scmp.eq.s32.totalorder %s96, 0
      %p620 = por %p618, %p619
      %p621 = scmp.ne.s32.totalorder %s613, %s615
      %p622 = scmp.eq.s32.totalorder %s101, 3
      %p623 = por %p621, %p622
      %p624 = scmp.ne.s32.totalorder %s615, %s616
      %p625 = scmp.eq.s32.totalorder %s101, 0
      %p626 = por %p624, %p625
      %p627 = scmp.ne.s32.totalorder %s615, %s616
      %p628 = scmp.eq.s32.totalorder %s102, 3
      %p629 = por %p627, %p628
      %p631 = scmp.ne.s32.totalorder %s616, %s630
      %p632 = scmp.eq.s32.totalorder %s102, 0
      %p633 = por %p631, %p632
      %s635 = sadd.s32 %s634, 1
      %p638 = scmp.eq.s32.totalorder %s96, 3
      %p639 = scmp.ne.s32.totalorder %s634, %s636
      %p640 = scmp.eq.s32.totalorder %s96, 0
      %p641 = por %p639, %p640
      %p642 = scmp.ne.s32.totalorder %s634, %s636
      %p643 = scmp.eq.s32.totalorder %s101, 3
      %p644 = por %p642, %p643
      %p645 = scmp.ne.s32.totalorder %s636, %s637
      %p646 = scmp.eq.s32.totalorder %s101, 0
      %p647 = por %p645, %p646
      %p648 = scmp.ne.s32.totalorder %s636, %s637
      %p649 = scmp.eq.s32.totalorder %s102, 3
      %p650 = por %p648, %p649
      %p652 = scmp.ne.s32.totalorder %s637, %s651
      %p653 = scmp.eq.s32.totalorder %s102, 0
      %p654 = por %p652, %p653
      %s656 = sadd.s32 %s655, 1
      %p659 = scmp.eq.s32.totalorder %s96, 3
      %p660 = scmp.ne.s32.totalorder %s655, %s657
      %p661 = scmp.eq.s32.totalorder %s96, 0
      %p662 = por %p660, %p661
      %p663 = scmp.ne.s32.totalorder %s655, %s657
      %p664 = scmp.eq.s32.totalorder %s101, 3
      %p665 = por %p663, %p664
      %p666 = scmp.ne.s32.totalorder %s657, %s658
      %p667 = scmp.eq.s32.totalorder %s101, 0
      %p668 = por %p666, %p667
      %p669 = scmp.ne.s32.totalorder %s657, %s658
      %p670 = scmp.eq.s32.totalorder %s102, 3
      %p671 = por %p669, %p670
      %p673 = scmp.ne.s32.totalorder %s658, %s672
      %p674 = scmp.eq.s32.totalorder %s102, 0
      %p675 = por %p673, %p674
      %s677 = sadd.s32 %s676, 1
      %p680 = scmp.eq.s32.totalorder %s96, 3
      %p681 = scmp.ne.s32.totalorder %s676, %s678
      %p682 = scmp.eq.s32.totalorder %s96, 0
      %p683 = por %p681, %p682
      %p684 = scmp.ne.s32.totalorder %s676, %s678
      %p685 = scmp.eq.s32.totalorder %s101, 3
      %p686 = por %p684, %p685
      %p687 = scmp.ne.s32.totalorder %s678, %s679
      %p688 = scmp.eq.s32.totalorder %s101, 0
      %p689 = por %p687, %p688
      %p690 = scmp.ne.s32.totalorder %s678, %s679
      %p691 = scmp.eq.s32.totalorder %s102, 3
      %p692 = por %p690, %p691
      %p694 = scmp.ne.s32.totalorder %s679, %s693
      %p695 = scmp.eq.s32.totalorder %s102, 0
      %p696 = por %p694, %p695
      %s698 = sadd.s32 %s697, 1
      %p701 = scmp.eq.s32.totalorder %s96, 3
      %p702 = scmp.ne.s32.totalorder %s697, %s699
      %p703 = scmp.eq.s32.totalorder %s96, 0
      %p704 = por %p702, %p703
      %p705 = scmp.ne.s32.totalorder %s697, %s699
      %p706 = scmp.eq.s32.totalorder %s101, 3
      %p707 = por %p705, %p706
      %p708 = scmp.ne.s32.totalorder %s699, %s700
      %p709 = scmp.eq.s32.totalorder %s101, 0
      %p710 = por %p708, %p709
      %p711 = scmp.ne.s32.totalorder %s699, %s700
      %p712 = scmp.eq.s32.totalorder %s102, 3
      %p713 = por %p711, %p712
      %p715 = scmp.ne.s32.totalorder %s700, %s714
      %p716 = scmp.eq.s32.totalorder %s102, 0
      %p717 = por %p715, %p716
      %s719 = sadd.s32 %s718, 1
      %p722 = scmp.eq.s32.totalorder %s96, 3
      %p723 = scmp.ne.s32.totalorder %s718, %s720
      %p724 = scmp.eq.s32.totalorder %s96, 0
      %p725 = por %p723, %p724
      %p726 = scmp.ne.s32.totalorder %s718, %s720
      %p727 = scmp.eq.s32.totalorder %s101, 3
      %p728 = por %p726, %p727
      %p729 = scmp.ne.s32.totalorder %s720, %s721
      %p730 = scmp.eq.s32.totalorder %s101, 0
      %p731 = por %p729, %p730
      %p732 = scmp.ne.s32.totalorder %s720, %s721
      %p733 = scmp.eq.s32.totalorder %s102, 3
      %p734 = por %p732, %p733
      %p736 = scmp.ne.s32.totalorder %s721, %s735
      %p737 = scmp.eq.s32.totalorder %s102, 0
      %p738 = por %p736, %p737
      %s740 = sadd.s32 %s739, 1
      %p743 = scmp.eq.s32.totalorder %s96, 3
      %p744 = scmp.ne.s32.totalorder %s739, %s741
      %p745 = scmp.eq.s32.totalorder %s96, 0
      %p746 = por %p744, %p745
      %p747 = scmp.ne.s32.totalorder %s739, %s741
      %p748 = scmp.eq.s32.totalorder %s101, 3
      %p749 = por %p747, %p748
      %p750 = scmp.ne.s32.totalorder %s741, %s742
      %p751 = scmp.eq.s32.totalorder %s101, 0
      %p752 = por %p750, %p751
      %p753 = scmp.ne.s32.totalorder %s741, %s742
      %p754 = scmp.eq.s32.totalorder %s102, 3
      %p755 = por %p753, %p754
      %p757 = scmp.ne.s32.totalorder %s742, %s756
      %p758 = scmp.eq.s32.totalorder %s102, 0
      %p759 = por %p757, %p758
      %s761 = sadd.s32 %s760, 1
      %p764 = scmp.eq.s32.totalorder %s96, 3
      %p765 = scmp.ne.s32.totalorder %s760, %s762
      %p766 = scmp.eq.s32.totalorder %s96, 0
      %p767 = por %p765, %p766
      %p768 = scmp.ne.s32.totalorder %s760, %s762
      %p769 = scmp.eq.s32.totalorder %s101, 3
      %p770 = por %p768, %p769
      %p771 = scmp.ne.s32.totalorder %s762, %s763
      %p772 = scmp.eq.s32.totalorder %s101, 0
      %p773 = por %p771, %p772
      %p774 = scmp.ne.s32.totalorder %s762, %s763
      %p775 = scmp.eq.s32.totalorder %s102, 3
      %p776 = por %p774, %p775
      %p778 = scmp.ne.s32.totalorder %s763, %s777
      %p779 = scmp.eq.s32.totalorder %s102, 0
      %p780 = por %p778, %p779
      %s782 = sadd.s32 %s781, 1
      %p785 = scmp.eq.s32.totalorder %s96, 3
      %p786 = scmp.ne.s32.totalorder %s781, %s783
      %p787 = scmp.eq.s32.totalorder %s96, 0
      %p788 = por %p786, %p787
      %p789 = scmp.ne.s32.totalorder %s781, %s783
      %p790 = scmp.eq.s32.totalorder %s101, 3
      %p791 = por %p789, %p790
      %p792 = scmp.ne.s32.totalorder %s783, %s784
      %p793 = scmp.eq.s32.totalorder %s101, 0
      %p794 = por %p792, %p793
      %p795 = scmp.ne.s32.totalorder %s783, %s784
      %p796 = scmp.eq.s32.totalorder %s102, 3
      %p797 = por %p795, %p796
      %p799 = scmp.ne.s32.totalorder %s784, %s798
      %p800 = scmp.eq.s32.totalorder %s102, 0
      %p801 = por %p799, %p800
      %s803 = sadd.s32 %s802, 1
      %p806 = scmp.eq.s32.totalorder %s96, 3
      %p807 = scmp.ne.s32.totalorder %s802, %s804
      %p808 = scmp.eq.s32.totalorder %s96, 0
      %p809 = por %p807, %p808
      %p810 = scmp.ne.s32.totalorder %s802, %s804
      %p811 = scmp.eq.s32.totalorder %s101, 3
      %p812 = por %p810, %p811
      %p813 = scmp.ne.s32.totalorder %s804, %s805
      %p814 = scmp.eq.s32.totalorder %s101, 0
      %p815 = por %p813, %p814
      %p816 = scmp.ne.s32.totalorder %s804, %s805
      %p817 = scmp.eq.s32.totalorder %s102, 3
      %p818 = por %p816, %p817
      %p820 = scmp.ne.s32.totalorder %s805, %s819
      %p821 = scmp.eq.s32.totalorder %s102, 0
      %p822 = por %p820, %p821
      %s824 = sadd.s32 %s823, 1
      %p827 = scmp.eq.s32.totalorder %s96, 3
      %p828 = scmp.ne.s32.totalorder %s823, %s825
      %p829 = scmp.eq.s32.totalorder %s96, 0
      %p830 = por %p828, %p829
      %p831 = scmp.ne.s32.totalorder %s823, %s825
      %p832 = scmp.eq.s32.totalorder %s101, 3
      %p833 = por %p831, %p832
      %p834 = scmp.ne.s32.totalorder %s825, %s826
      %p835 = scmp.eq.s32.totalorder %s101, 0
      %p836 = por %p834, %p835
      %p837 = scmp.ne.s32.totalorder %s825, %s826
      %p838 = scmp.eq.s32.totalorder %s102, 3
      %p839 = por %p837, %p838
      %p841 = scmp.ne.s32.totalorder %s826, %s840
      %p842 = scmp.eq.s32.totalorder %s102, 0
      %p843 = por %p841, %p842
      %s844 = ssub.s32 %s103, %s115
      %s845 = ssub.s32 %s104, %s111
      %s846 = sor.u32 %s844, %s845
      %p847 = scmp.eq.s32.totalorder %s846, 0
      %s849 = sadd.s32 %s848, 1
      %s850 = scalar_select %p847, %s848, %s849
      %p853 = pneg %p847
      %p854 = scmp.eq.s32.totalorder %s96, 3
      %p855 = por %p853, %p854
      %p856 = scmp.ne.s32.totalorder %s848, %s851
      %p857 = scmp.eq.s32.totalorder %s96, 0
      %p858 = por %p856, %p857
      %p859 = scmp.ne.s32.totalorder %s848, %s851
      %p860 = scmp.eq.s32.totalorder %s101, 3
      %p861 = por %p859, %p860
      %p862 = scmp.ne.s32.totalorder %s851, %s852
      %p863 = scmp.eq.s32.totalorder %s101, 0
      %p864 = por %p862, %p863
      %p865 = scmp.ne.s32.totalorder %s851, %s852
      %p866 = scmp.eq.s32.totalorder %s102, 3
      %p867 = por %p865, %p866
      %p869 = scmp.ne.s32.totalorder %s852, %s868
      %p870 = scmp.eq.s32.totalorder %s102, 0
      %p871 = por %p869, %p870
      %p872 = scmp.le.s32.totalorder 1, %s96
      %p873 = scmp.lt.s32.totalorder %s96, 5
      %p874 = pnand %p872, %p873
      %p875 = pneg %p874
      // Predicated region
      $region9: #{tpu_custom_call.1} parent=5 // pred_check
        _
      $region10: #{tpu_custom_call.1} parent=5 // pred_check_branch
        %877 = sbr.rel (%p874) target = $region12
      $region11: #{tpu_custom_call.1} parent=5 // pred_region
        %s878 = ssub.s32 %s96, 1
        // Predicated region
        $region13: #{tpu_custom_call.1} parent=11 // pred_check
          %p879 = pneg %p185
        $region14: #{tpu_custom_call.1} parent=11 // pred_check_branch
          %881 = sbr.rel (%p879) target = $region16
        $region15: #{tpu_custom_call.1} parent=11 // pred_region
          %s883 = ssub.s32 16, 16
          %884 = vsyncadd [#allocation6], %s883
          %s886 = sshll.u32 [#allocation5], 4
          %s887 = int_to_ptr.vmem [resolvable:$true] %s886
          %889 = dma.hbm_to_vmem [thread:$0]  %s7, 16, %s887, [#allocation6]
        $region16: #{tpu_custom_call.1} parent=11 // pred_fallthru
          _
        // Predicated region
        $region17: #{tpu_custom_call.1} parent=11 // pred_check
          %p890 = pneg %p206
        $region18: #{tpu_custom_call.1} parent=11 // pred_check_branch
          %892 = sbr.rel (%p890) target = $region20
        $region19: #{tpu_custom_call.1} parent=11 // pred_region
          %s894 = ssub.s32 16, 16
          %895 = vsyncadd [#allocation9], %s894
          %s897 = sshll.u32 [#allocation8], 4
          %s898 = int_to_ptr.vmem [resolvable:$true] %s897
          %900 = dma.hbm_to_vmem [thread:$0]  %s9, 16, %s898, [#allocation9]
        $region20: #{tpu_custom_call.1} parent=11 // pred_fallthru
          _
        // Predicated region
        $region21: #{tpu_custom_call.1} parent=11 // pred_check
          %p901 = pneg %p227
        $region22: #{tpu_custom_call.1} parent=11 // pred_check_branch
          %903 = sbr.rel (%p901) target = $region24
        $region23: #{tpu_custom_call.1} parent=11 // pred_region
          %s905 = ssub.s32 512, 512
          %906 = vsyncadd [#allocation9], %s905
          %s907 = sshll.u32 [#allocation10], 4
          %s908 = int_to_ptr.vmem [resolvable:$true] %s907
          %913 = dma.hbm_to_vmem [thread:$0]  %s11, 512, %s908, [#allocation9], 64, 64, 4
        $region24: #{tpu_custom_call.1} parent=11 // pred_fallthru
          _
        // Predicated region
        $region25: #{tpu_custom_call.1} parent=11 // pred_check
          %p914 = pneg %p248
        $region26: #{tpu_custom_call.1} parent=11 // pred_check_branch
          %916 = sbr.rel (%p914) target = $region28
        $region27: #{tpu_custom_call.1} parent=11 // pred_region
          %s918 = ssub.s32 16, 16
          %919 = vsyncadd [#allocation12], %s918
          %s921 = sshll.u32 [#allocation11], 4
          %s922 = int_to_ptr.vmem [resolvable:$true] %s921
          %924 = dma.hbm_to_vmem [thread:$0]  %s13, 16, %s922, [#allocation12]
        $region28: #{tpu_custom_call.1} parent=11 // pred_fallthru
          _
        // Predicated region
        $region29: #{tpu_custom_call.1} parent=11 // pred_check
          %p925 = pneg %p269
        $region30: #{tpu_custom_call.1} parent=11 // pred_check_branch
          %927 = sbr.rel (%p925) target = $region32
        $region31: #{tpu_custom_call.1} parent=11 // pred_region
          _
        $region32: #{tpu_custom_call.1} parent=11 // pred_fallthru
          _
        // Predicated region
        $region33: #{tpu_custom_call.1} parent=11 // pred_check
          %p928 = pneg %p290
        $region34: #{tpu_custom_call.1} parent=11 // pred_check_branch
          %930 = sbr.rel (%p928) target = $region36
        $region35: #{tpu_custom_call.1} parent=11 // pred_region
          %s932 = ssub.s32 16, 16
          %933 = vsyncadd [#allocation12], %s932
          %s935 = sshll.u32 [#allocation13], 4
          %s936 = int_to_ptr.vmem [resolvable:$true] %s935
          %938 = dma.hbm_to_vmem [thread:$0]  %s17, 16, %s936, [#allocation12]
        $region36: #{tpu_custom_call.1} parent=11 // pred_fallthru
          _
        // Predicated region
        $region37: #{tpu_custom_call.1} parent=11 // pred_check
          %p939 = pneg %p311
        $region38: #{tpu_custom_call.1} parent=11 // pred_check_branch
          %941 = sbr.rel (%p939) target = $region40
        $region39: #{tpu_custom_call.1} parent=11 // pred_region
          %s943 = ssub.s32 16, 16
          %944 = vsyncadd [#allocation15], %s943
          %s946 = sshll.u32 [#allocation14], 4
          %s947 = int_to_ptr.vmem [resolvable:$true] %s946
          %949 = dma.hbm_to_vmem [thread:$0]  %s19, 16, %s947, [#allocation15]
        $region40: #{tpu_custom_call.1} parent=11 // pred_fallthru
          _
        // Predicated region
        $region41: #{tpu_custom_call.1} parent=11 // pred_check
          %p950 = pneg %p332
        $region42: #{tpu_custom_call.1} parent=11 // pred_check_branch
          %952 = sbr.rel (%p950) target = $region44
        $region43: #{tpu_custom_call.1} parent=11 // pred_region
          %s954 = ssub.s32 16, 16
          %955 = vsyncadd [#allocation15], %s954
          %s957 = sshll.u32 [#allocation16], 4
          %s958 = int_to_ptr.vmem [resolvable:$true] %s957
          %960 = dma.hbm_to_vmem [thread:$0]  %s21, 16, %s958, [#allocation15]
        $region44: #{tpu_custom_call.1} parent=11 // pred_fallthru
          _
        // Predicated region
        $region45: #{tpu_custom_call.1} parent=11 // pred_check
          %p961 = pneg %p353
        $region46: #{tpu_custom_call.1} parent=11 // pred_check_branch
          %963 = sbr.rel (%p961) target = $region48
        $region47: #{tpu_custom_call.1} parent=11 // pred_region
          %s965 = ssub.s32 512, 512
          %966 = vsyncadd [#allocation18], %s965
          %s967 = sshll.u32 [#allocation17], 4
          %s968 = int_to_ptr.vmem [resolvable:$true] %s967
          %973 = dma.hbm_to_vmem [thread:$0]  %s23, 512, %s968, [#allocation18], 64, 64, 4
        $region48: #{tpu_custom_call.1} parent=11 // pred_fallthru
          _
        // Predicated region
        $region49: #{tpu_custom_call.1} parent=11 // pred_check
          %p974 = pneg %p374
        $region50: #{tpu_custom_call.1} parent=11 // pred_check_branch
          %976 = sbr.rel (%p974) target = $region52
        $region51: #{tpu_custom_call.1} parent=11 // pred_region
          %s978 = ssub.s32 16, 16
          %979 = vsyncadd [#allocation18], %s978
          %s981 = sshll.u32 [#allocation19], 4
          %s982 = int_to_ptr.vmem [resolvable:$true] %s981
          %984 = dma.hbm_to_vmem [thread:$0]  %s25, 16, %s982, [#allocation18]
        $region52: #{tpu_custom_call.1} parent=11 // pred_fallthru
          _
        // Predicated region
        $region53: #{tpu_custom_call.1} parent=11 // pred_check
          %p985 = pneg %p395
        $region54: #{tpu_custom_call.1} parent=11 // pred_check_branch
          %987 = sbr.rel (%p985) target = $region56
        $region55: #{tpu_custom_call.1} parent=11 // pred_region
          %s989 = ssub.s32 512, 512
          %990 = vsyncadd [#allocation21], %s989
          %s991 = sshll.u32 [#allocation20], 4
          %s992 = int_to_ptr.vmem [resolvable:$true] %s991
          %997 = dma.hbm_to_vmem [thread:$0]  %s27, 512, %s992, [#allocation21], 64, 64, 4
        $region56: #{tpu_custom_call.1} parent=11 // pred_fallthru
          _
        // Predicated region
        $region57: #{tpu_custom_call.1} parent=11 // pred_check
          %p998 = pneg %p416
        $region58: #{tpu_custom_call.1} parent=11 // pred_check_branch
          %1000 = sbr.rel (%p998) target = $region60
        $region59: #{tpu_custom_call.1} parent=11 // pred_region
          %s1002 = ssub.s32 16, 16
          %1003 = vsyncadd [#allocation21], %s1002
          %s1005 = sshll.u32 [#allocation22], 4
          %s1006 = int_to_ptr.vmem [resolvable:$true] %s1005
          %1008 = dma.hbm_to_vmem [thread:$0]  %s29, 16, %s1006, [#allocation21]
        $region60: #{tpu_custom_call.1} parent=11 // pred_fallthru
          _
        // Predicated region
        $region61: #{tpu_custom_call.1} parent=11 // pred_check
          %p1009 = pneg %p437
        $region62: #{tpu_custom_call.1} parent=11 // pred_check_branch
          %1011 = sbr.rel (%p1009) target = $region64
        $region63: #{tpu_custom_call.1} parent=11 // pred_region
          %s1013 = ssub.s32 64, 64
          %1014 = vsyncadd [#allocation24], %s1013
          %s1016 = sshll.u32 [#allocation23], 4
          %s1017 = int_to_ptr.vmem [resolvable:$true] %s1016
          %1019 = dma.hbm_to_vmem [thread:$0]  %s31, 64, %s1017, [#allocation24]
        $region64: #{tpu_custom_call.1} parent=11 // pred_fallthru
          _
        // Predicated region
        $region65: #{tpu_custom_call.1} parent=11 // pred_check
          %p1020 = pneg %p458
        $region66: #{tpu_custom_call.1} parent=11 // pred_check_branch
          %1022 = sbr.rel (%p1020) target = $region68
        $region67: #{tpu_custom_call.1} parent=11 // pred_region
          %s1024 = ssub.s32 16, 16
          %1025 = vsyncadd [#allocation24], %s1024
          %s1027 = sshll.u32 [#allocation25], 4
          %s1028 = int_to_ptr.vmem [resolvable:$true] %s1027
          %1030 = dma.hbm_to_vmem [thread:$0]  %s33, 16, %s1028, [#allocation24]
        $region68: #{tpu_custom_call.1} parent=11 // pred_fallthru
          _
        // Predicated region
        $region69: #{tpu_custom_call.1} parent=11 // pred_check
          %p1031 = pneg %p479
        $region70: #{tpu_custom_call.1} parent=11 // pred_check_branch
          %1033 = sbr.rel (%p1031) target = $region72
        $region71: #{tpu_custom_call.1} parent=11 // pred_region
          %s1035 = ssub.s32 16, 16
          %1036 = vsyncadd [#allocation27], %s1035
          %s1038 = sshll.u32 [#allocation26], 4
          %s1039 = int_to_ptr.vmem [resolvable:$true] %s1038
          %1041 = dma.hbm_to_vmem [thread:$0]  %s35, 16, %s1039, [#allocation27]
        $region72: #{tpu_custom_call.1} parent=11 // pred_fallthru
          _
        // Predicated region
        $region73: #{tpu_custom_call.1} parent=11 // pred_check
          %p1042 = pneg %p500
        $region74: #{tpu_custom_call.1} parent=11 // pred_check_branch
          %1044 = sbr.rel (%p1042) target = $region76
        $region75: #{tpu_custom_call.1} parent=11 // pred_region
          %s1046 = ssub.s32 16, 16
          %1047 = vsyncadd [#allocation27], %s1046
          %s1049 = sshll.u32 [#allocation28], 4
          %s1050 = int_to_ptr.vmem [resolvable:$true] %s1049
          %1052 = dma.hbm_to_vmem [thread:$0]  %s37, 16, %s1050, [#allocation27]
        $region76: #{tpu_custom_call.1} parent=11 // pred_fallthru
          _
        // Predicated region
        $region77: #{tpu_custom_call.1} parent=11 // pred_check
          %p1053 = pneg %p521
        $region78: #{tpu_custom_call.1} parent=11 // pred_check_branch
          %1055 = sbr.rel (%p1053) target = $region80
        $region79: #{tpu_custom_call.1} parent=11 // pred_region
          %s1057 = ssub.s32 512, 512
          %1058 = vsyncadd [#allocation30], %s1057
          %s1059 = sshll.u32 [#allocation29], 4
          %s1060 = int_to_ptr.vmem [resolvable:$true] %s1059
          %1065 = dma.hbm_to_vmem [thread:$0]  %s39, 512, %s1060, [#allocation30], 64, 64, 4
        $region80: #{tpu_custom_call.1} parent=11 // pred_fallthru
          _
        // Predicated region
        $region81: #{tpu_custom_call.1} parent=11 // pred_check
          %p1066 = pneg %p542
        $region82: #{tpu_custom_call.1} parent=11 // pred_check_branch
          %1068 = sbr.rel (%p1066) target = $region84
        $region83: #{tpu_custom_call.1} parent=11 // pred_region
          %s1070 = ssub.s32 16, 16
          %1071 = vsyncadd [#allocation30], %s1070
          %s1073 = sshll.u32 [#allocation31], 4
          %s1074 = int_to_ptr.vmem [resolvable:$true] %s1073
          %1076 = dma.hbm_to_vmem [thread:$0]  %s41, 16, %s1074, [#allocation30]
        $region84: #{tpu_custom_call.1} parent=11 // pred_fallthru
          _
        // Predicated region
        $region85: #{tpu_custom_call.1} parent=11 // pred_check
          %p1077 = pneg %p563
        $region86: #{tpu_custom_call.1} parent=11 // pred_check_branch
          %1079 = sbr.rel (%p1077) target = $region88
        $region87: #{tpu_custom_call.1} parent=11 // pred_region
          %s1081 = ssub.s32 16, 16
          %1082 = vsyncadd [#allocation33], %s1081
          %s1084 = sshll.u32 [#allocation32], 4
          %s1085 = int_to_ptr.vmem [resolvable:$true] %s1084
          %1087 = dma.hbm_to_vmem [thread:$0]  %s43, 16, %s1085, [#allocation33]
        $region88: #{tpu_custom_call.1} parent=11 // pred_fallthru
          _
        // Predicated region
        $region89: #{tpu_custom_call.1} parent=11 // pred_check
          %p1088 = pneg %p584
        $region90: #{tpu_custom_call.1} parent=11 // pred_check_branch
          %1090 = sbr.rel (%p1088) target = $region92
        $region91: #{tpu_custom_call.1} parent=11 // pred_region
          %s1092 = ssub.s32 16, 16
          %1093 = vsyncadd [#allocation33], %s1092
          %s1095 = sshll.u32 [#allocation34], 4
          %s1096 = int_to_ptr.vmem [resolvable:$true] %s1095
          %1098 = dma.hbm_to_vmem [thread:$0]  %s45, 16, %s1096, [#allocation33]
        $region92: #{tpu_custom_call.1} parent=11 // pred_fallthru
          _
        // Predicated region
        $region93: #{tpu_custom_call.1} parent=11 // pred_check
          %p1099 = pneg %p605
        $region94: #{tpu_custom_call.1} parent=11 // pred_check_branch
          %1101 = sbr.rel (%p1099) target = $region96
        $region95: #{tpu_custom_call.1} parent=11 // pred_region
          _
        $region96: #{tpu_custom_call.1} parent=11 // pred_fallthru
          _
        // Predicated region
        $region97: #{tpu_custom_call.1} parent=11 // pred_check
          %p1102 = pneg %p626
        $region98: #{tpu_custom_call.1} parent=11 // pred_check_branch
          %1104 = sbr.rel (%p1102) target = $region100
        $region99: #{tpu_custom_call.1} parent=11 // pred_region
          _
        $region100: #{tpu_custom_call.1} parent=11 // pred_fallthru
          _
        // Predicated region
        $region101: #{tpu_custom_call.1} parent=11 // pred_check
          %p1105 = pneg %p647
        $region102: #{tpu_custom_call.1} parent=11 // pred_check_branch
          %1107 = sbr.rel (%p1105) target = $region104
        $region103: #{tpu_custom_call.1} parent=11 // pred_region
          %s1109 = ssub.s32 512, 512
          %1110 = vsyncadd [#allocation36], %s1109
          %s1111 = sshll.u32 [#allocation35], 4
          %s1112 = int_to_ptr.vmem [resolvable:$true] %s1111
          %1117 = dma.hbm_to_vmem [thread:$0]  %s51, 512, %s1112, [#allocation36], 64, 64, 4
        $region104: #{tpu_custom_call.1} parent=11 // pred_fallthru
          _
        // Predicated region
        $region105: #{tpu_custom_call.1} parent=11 // pred_check
          %p1118 = pneg %p668
        $region106: #{tpu_custom_call.1} parent=11 // pred_check_branch
          %1120 = sbr.rel (%p1118) target = $region108
        $region107: #{tpu_custom_call.1} parent=11 // pred_region
          %s1122 = ssub.s32 16, 16
          %1123 = vsyncadd [#allocation36], %s1122
          %s1125 = sshll.u32 [#allocation37], 4
          %s1126 = int_to_ptr.vmem [resolvable:$true] %s1125
          %1128 = dma.hbm_to_vmem [thread:$0]  %s53, 16, %s1126, [#allocation36]
        $region108: #{tpu_custom_call.1} parent=11 // pred_fallthru
          _
        // Predicated region
        $region109: #{tpu_custom_call.1} parent=11 // pred_check
          %p1129 = pneg %p689
        $region110: #{tpu_custom_call.1} parent=11 // pred_check_branch
          %1131 = sbr.rel (%p1129) target = $region112
        $region111: #{tpu_custom_call.1} parent=11 // pred_region
          _
        $region112: #{tpu_custom_call.1} parent=11 // pred_fallthru
          _
        // Predicated region
        $region113: #{tpu_custom_call.1} parent=11 // pred_check
          %p1132 = pneg %p710
        $region114: #{tpu_custom_call.1} parent=11 // pred_check_branch
          %1134 = sbr.rel (%p1132) target = $region116
        $region115: #{tpu_custom_call.1} parent=11 // pred_region
          _
        $region116: #{tpu_custom_call.1} parent=11 // pred_fallthru
          _
        // Predicated region
        $region117: #{tpu_custom_call.1} parent=11 // pred_check
          %p1135 = pneg %p731
        $region118: #{tpu_custom_call.1} parent=11 // pred_check_branch
          %1137 = sbr.rel (%p1135) target = $region120
        $region119: #{tpu_custom_call.1} parent=11 // pred_region
          %s1139 = ssub.s32 512, 512
          %1140 = vsyncadd [#allocation39], %s1139
          %s1141 = sshll.u32 [#allocation38], 4
          %s1142 = int_to_ptr.vmem [resolvable:$true] %s1141
          %1147 = dma.hbm_to_vmem [thread:$0]  %s59, 512, %s1142, [#allocation39], 64, 64, 4
        $region120: #{tpu_custom_call.1} parent=11 // pred_fallthru
          _
        // Predicated region
        $region121: #{tpu_custom_call.1} parent=11 // pred_check
          %p1148 = pneg %p752
        $region122: #{tpu_custom_call.1} parent=11 // pred_check_branch
          %1150 = sbr.rel (%p1148) target = $region124
        $region123: #{tpu_custom_call.1} parent=11 // pred_region
          _
        $region124: #{tpu_custom_call.1} parent=11 // pred_fallthru
          _
        // Predicated region
        $region125: #{tpu_custom_call.1} parent=11 // pred_check
          %p1151 = pneg %p773
        $region126: #{tpu_custom_call.1} parent=11 // pred_check_branch
          %1153 = sbr.rel (%p1151) target = $region128
        $region127: #{tpu_custom_call.1} parent=11 // pred_region
          _
        $region128: #{tpu_custom_call.1} parent=11 // pred_fallthru
          _
        // Predicated region
        $region129: #{tpu_custom_call.1} parent=11 // pred_check
          %p1154 = pneg %p794
        $region130: #{tpu_custom_call.1} parent=11 // pred_check_branch
          %1156 = sbr.rel (%p1154) target = $region132
        $region131: #{tpu_custom_call.1} parent=11 // pred_region
          _
        $region132: #{tpu_custom_call.1} parent=11 // pred_fallthru
          _
        // Predicated region
        $region133: #{tpu_custom_call.1} parent=11 // pred_check
          %p1157 = pneg %p815
        $region134: #{tpu_custom_call.1} parent=11 // pred_check_branch
          %1159 = sbr.rel (%p1157) target = $region136
        $region135: #{tpu_custom_call.1} parent=11 // pred_region
          _
        $region136: #{tpu_custom_call.1} parent=11 // pred_fallthru
          _
        // Predicated region
        $region137: #{tpu_custom_call.1} parent=11 // pred_check
          %p1160 = pneg %p836
        $region138: #{tpu_custom_call.1} parent=11 // pred_check_branch
          %1162 = sbr.rel (%p1160) target = $region140
        $region139: #{tpu_custom_call.1} parent=11 // pred_region
          _
        $region140: #{tpu_custom_call.1} parent=11 // pred_fallthru
          _
      $region12: #{tpu_custom_call.1} parent=5 // pred_fallthru
        _
      %p1163 = scmp.lt.s32.totalorder %s96, 4
      // Predicated region
      $region141: #{tpu_custom_call.1} parent=5 // pred_check
        %p1164 = pneg %p1163
      $region142: #{tpu_custom_call.1} parent=5 // pred_check_branch
        %1166 = sbr.rel (%p1164) target = $region144
      $region143: #{tpu_custom_call.1} parent=5 // pred_region
        // Predicated region
        $region145: #{tpu_custom_call.1} parent=143 // pred_check
          %p1167 = pneg %p130
        $region146: #{tpu_custom_call.1} parent=143 // pred_check_branch
          %1169 = sbr.rel (%p1167) target = $region148
        $region147: #{tpu_custom_call.1} parent=143 // pred_region
          %s1170 = smul.u32 4, %s104
          %p1171 = scmp.lt.s32.totalorder %s103, 1
          %s1172 = scalar_select %p1171, %s103, 1
          %p1173 = scmp.lt.s32.totalorder %s1170, 7
          %s1174 = scalar_select %p1173, %s1170, 7
          %s1175 = smul.addr %s1172, 8
          %s1176 = sadd.s32 %s1174, %s1175
          %s1177 = smul.addr %s1176, 8
          %s1178 = scalar_lea.vmem %s3, %s1177
          %s1179 = smul.u32 4, %s104
        $region148: #{tpu_custom_call.1} parent=143 // pred_fallthru
          _
        // Predicated region
        $region149: #{tpu_custom_call.1} parent=143 // pred_check
          %p1180 = pneg %p158
        $region150: #{tpu_custom_call.1} parent=143 // pred_check_branch
          %1182 = sbr.rel (%p1180) target = $region152
        $region151: #{tpu_custom_call.1} parent=143 // pred_region
          %p1183 = scmp.lt.s32.totalorder %s103, 1
          %s1184 = scalar_select %p1183, %s103, 1
          %p1185 = scmp.lt.s32.totalorder %s104, 1
          %s1186 = scalar_select %p1185, %s104, 1
          %s1187 = smul.addr %s1186, 2
          %s1188 = smul.addr %s1184, 4
          %s1189 = sadd.s32 %s1187, %s1188
          %s1190 = smul.addr %s1189, 8
          %s1191 = scalar_lea.vmem %s5, %s1190
        $region152: #{tpu_custom_call.1} parent=143 // pred_fallthru
          _
      $region144: #{tpu_custom_call.1} parent=5 // pred_fallthru
        _
      %p1192 = scmp.le.s32.totalorder 1, %s96
      %p1193 = scmp.lt.s32.totalorder %s96, 5
      %p1194 = pnand %p1192, %p1193
      %p1195 = pneg %p1194
      // Predicated region
      $region153: #{tpu_custom_call.1} parent=5 // pred_check
        _
      $region154: #{tpu_custom_call.1} parent=5 // pred_check_branch
        %1197 = sbr.rel (%p1194) target = $region156
      $region155: #{tpu_custom_call.1} parent=5 // pred_region
        %s1198 = ssub.s32 %s96, 1
        // Predicated region
        $region157: #{tpu_custom_call.1} parent=155 // pred_check
          %p1199 = pneg %p185
        $region158: #{tpu_custom_call.1} parent=155 // pred_check_branch
          %1201 = sbr.rel (%p1199) target = $region160
        $region159: #{tpu_custom_call.1} parent=155 // pred_region
          %1202 = dma.done [#allocation6], 16
        $region160: #{tpu_custom_call.1} parent=155 // pred_fallthru
          _
        // Predicated region
        $region161: #{tpu_custom_call.1} parent=155 // pred_check
          %p1203 = pneg %p206
        $region162: #{tpu_custom_call.1} parent=155 // pred_check_branch
          %1205 = sbr.rel (%p1203) target = $region164
        $region163: #{tpu_custom_call.1} parent=155 // pred_region
          %1206 = dma.done [#allocation9], 16
        $region164: #{tpu_custom_call.1} parent=155 // pred_fallthru
          _
        // Predicated region
        $region165: #{tpu_custom_call.1} parent=155 // pred_check
          %p1207 = pneg %p227
        $region166: #{tpu_custom_call.1} parent=155 // pred_check_branch
          %1209 = sbr.rel (%p1207) target = $region168
        $region167: #{tpu_custom_call.1} parent=155 // pred_region
          %1210 = dma.done [#allocation9], 512
        $region168: #{tpu_custom_call.1} parent=155 // pred_fallthru
          _
        // Predicated region
        $region169: #{tpu_custom_call.1} parent=155 // pred_check
          %p1211 = pneg %p248
        $region170: #{tpu_custom_call.1} parent=155 // pred_check_branch
          %1213 = sbr.rel (%p1211) target = $region172
        $region171: #{tpu_custom_call.1} parent=155 // pred_region
          %1214 = dma.done [#allocation12], 16
        $region172: #{tpu_custom_call.1} parent=155 // pred_fallthru
          _
        // Predicated region
        $region173: #{tpu_custom_call.1} parent=155 // pred_check
          %p1215 = pneg %p290
        $region174: #{tpu_custom_call.1} parent=155 // pred_check_branch
          %1217 = sbr.rel (%p1215) target = $region176
        $region175: #{tpu_custom_call.1} parent=155 // pred_region
          %1218 = dma.done [#allocation12], 16
        $region176: #{tpu_custom_call.1} parent=155 // pred_fallthru
          _
        // Predicated region
        $region177: #{tpu_custom_call.1} parent=155 // pred_check
          %p1219 = pneg %p311
        $region178: #{tpu_custom_call.1} parent=155 // pred_check_branch
          %1221 = sbr.rel (%p1219) target = $region180
        $region179: #{tpu_custom_call.1} parent=155 // pred_region
          %1222 = dma.done [#allocation15], 16
        $region180: #{tpu_custom_call.1} parent=155 // pred_fallthru
          _
        // Predicated region
        $region181: #{tpu_custom_call.1} parent=155 // pred_check
          %p1223 = pneg %p332
        $region182: #{tpu_custom_call.1} parent=155 // pred_check_branch
          %1225 = sbr.rel (%p1223) target = $region184
        $region183: #{tpu_custom_call.1} parent=155 // pred_region
          %1226 = dma.done [#allocation15], 16
        $region184: #{tpu_custom_call.1} parent=155 // pred_fallthru
          _
        // Predicated region
        $region185: #{tpu_custom_call.1} parent=155 // pred_check
          %p1227 = pneg %p353
        $region186: #{tpu_custom_call.1} parent=155 // pred_check_branch
          %1229 = sbr.rel (%p1227) target = $region188
        $region187: #{tpu_custom_call.1} parent=155 // pred_region
          %1230 = dma.done [#allocation18], 512
        $region188: #{tpu_custom_call.1} parent=155 // pred_fallthru
          _
        // Predicated region
        $region189: #{tpu_custom_call.1} parent=155 // pred_check
          %p1231 = pneg %p374
        $region190: #{tpu_custom_call.1} parent=155 // pred_check_branch
          %1233 = sbr.rel (%p1231) target = $region192
        $region191: #{tpu_custom_call.1} parent=155 // pred_region
          %1234 = dma.done [#allocation18], 16
        $region192: #{tpu_custom_call.1} parent=155 // pred_fallthru
          _
        // Predicated region
        $region193: #{tpu_custom_call.1} parent=155 // pred_check
          %p1235 = pneg %p395
        $region194: #{tpu_custom_call.1} parent=155 // pred_check_branch
          %1237 = sbr.rel (%p1235) target = $region196
        $region195: #{tpu_custom_call.1} parent=155 // pred_region
          %1238 = dma.done [#allocation21], 512
        $region196: #{tpu_custom_call.1} parent=155 // pred_fallthru
          _
        // Predicated region
        $region197: #{tpu_custom_call.1} parent=155 // pred_check
          %p1239 = pneg %p416
        $region198: #{tpu_custom_call.1} parent=155 // pred_check_branch
          %1241 = sbr.rel (%p1239) target = $region200
        $region199: #{tpu_custom_call.1} parent=155 // pred_region
          %1242 = dma.done [#allocation21], 16
        $region200: #{tpu_custom_call.1} parent=155 // pred_fallthru
          _
        // Predicated region
        $region201: #{tpu_custom_call.1} parent=155 // pred_check
          %p1243 = pneg %p437
        $region202: #{tpu_custom_call.1} parent=155 // pred_check_branch
          %1245 = sbr.rel (%p1243) target = $region204
        $region203: #{tpu_custom_call.1} parent=155 // pred_region
          %1246 = dma.done [#allocation24], 64
        $region204: #{tpu_custom_call.1} parent=155 // pred_fallthru
          _
        // Predicated region
        $region205: #{tpu_custom_call.1} parent=155 // pred_check
          %p1247 = pneg %p458
        $region206: #{tpu_custom_call.1} parent=155 // pred_check_branch
          %1249 = sbr.rel (%p1247) target = $region208
        $region207: #{tpu_custom_call.1} parent=155 // pred_region
          %1250 = dma.done [#allocation24], 16
        $region208: #{tpu_custom_call.1} parent=155 // pred_fallthru
          _
        // Predicated region
        $region209: #{tpu_custom_call.1} parent=155 // pred_check
          %p1251 = pneg %p479
        $region210: #{tpu_custom_call.1} parent=155 // pred_check_branch
          %1253 = sbr.rel (%p1251) target = $region212
        $region211: #{tpu_custom_call.1} parent=155 // pred_region
          %1254 = dma.done [#allocation27], 16
        $region212: #{tpu_custom_call.1} parent=155 // pred_fallthru
          _
        // Predicated region
        $region213: #{tpu_custom_call.1} parent=155 // pred_check
          %p1255 = pneg %p500
        $region214: #{tpu_custom_call.1} parent=155 // pred_check_branch
          %1257 = sbr.rel (%p1255) target = $region216
        $region215: #{tpu_custom_call.1} parent=155 // pred_region
          %1258 = dma.done [#allocation27], 16
        $region216: #{tpu_custom_call.1} parent=155 // pred_fallthru
          _
        // Predicated region
        $region217: #{tpu_custom_call.1} parent=155 // pred_check
          %p1259 = pneg %p521
        $region218: #{tpu_custom_call.1} parent=155 // pred_check_branch
          %1261 = sbr.rel (%p1259) target = $region220
        $region219: #{tpu_custom_call.1} parent=155 // pred_region
          %1262 = dma.done [#allocation30], 512
        $region220: #{tpu_custom_call.1} parent=155 // pred_fallthru
          _
        // Predicated region
        $region221: #{tpu_custom_call.1} parent=155 // pred_check
          %p1263 = pneg %p542
        $region222: #{tpu_custom_call.1} parent=155 // pred_check_branch
          %1265 = sbr.rel (%p1263) target = $region224
        $region223: #{tpu_custom_call.1} parent=155 // pred_region
          %1266 = dma.done [#allocation30], 16
        $region224: #{tpu_custom_call.1} parent=155 // pred_fallthru
          _
        // Predicated region
        $region225: #{tpu_custom_call.1} parent=155 // pred_check
          %p1267 = pneg %p563
        $region226: #{tpu_custom_call.1} parent=155 // pred_check_branch
          %1269 = sbr.rel (%p1267) target = $region228
        $region227: #{tpu_custom_call.1} parent=155 // pred_region
          %1270 = dma.done [#allocation33], 16
        $region228: #{tpu_custom_call.1} parent=155 // pred_fallthru
          _
        // Predicated region
        $region229: #{tpu_custom_call.1} parent=155 // pred_check
          %p1271 = pneg %p584
        $region230: #{tpu_custom_call.1} parent=155 // pred_check_branch
          %1273 = sbr.rel (%p1271) target = $region232
        $region231: #{tpu_custom_call.1} parent=155 // pred_region
          %1274 = dma.done [#allocation33], 16
        $region232: #{tpu_custom_call.1} parent=155 // pred_fallthru
          _
        // Predicated region
        $region233: #{tpu_custom_call.1} parent=155 // pred_check
          %p1275 = pneg %p647
        $region234: #{tpu_custom_call.1} parent=155 // pred_check_branch
          %1277 = sbr.rel (%p1275) target = $region236
        $region235: #{tpu_custom_call.1} parent=155 // pred_region
          %1278 = dma.done [#allocation36], 512
        $region236: #{tpu_custom_call.1} parent=155 // pred_fallthru
          _
        // Predicated region
        $region237: #{tpu_custom_call.1} parent=155 // pred_check
          %p1279 = pneg %p668
        $region238: #{tpu_custom_call.1} parent=155 // pred_check_branch
          %1281 = sbr.rel (%p1279) target = $region240
        $region239: #{tpu_custom_call.1} parent=155 // pred_region
          %1282 = dma.done [#allocation36], 16
        $region240: #{tpu_custom_call.1} parent=155 // pred_fallthru
          _
        // Predicated region
        $region241: #{tpu_custom_call.1} parent=155 // pred_check
          %p1283 = pneg %p731
        $region242: #{tpu_custom_call.1} parent=155 // pred_check_branch
          %1285 = sbr.rel (%p1283) target = $region244
        $region243: #{tpu_custom_call.1} parent=155 // pred_region
          %1286 = dma.done [#allocation39], 512
        $region244: #{tpu_custom_call.1} parent=155 // pred_fallthru
          _
        %s1287 = smul.u32 4, %s106
        %p1288 = scmp.lt.s32.totalorder %s105, 1
        %s1289 = scalar_select %p1288, %s105, 1
        %p1290 = scmp.lt.s32.totalorder %s1287, 7
        %s1291 = scalar_select %p1290, %s1287, 7
        %s1292 = smul.addr %s1289, 8
        %s1293 = sadd.s32 %s1291, %s1292
        %s1294 = smul.addr %s1293, 8
        %s1295 = scalar_lea.vmem %s3, %s1294
        %p1296 = pneg %p136
        %p1297 = pneg %p133
        %p1298 = scmp.lt.s32.totalorder %s105, 1
        %s1299 = scalar_select %p1298, %s105, 1
        %p1300 = scmp.lt.s32.totalorder %s106, 1
        %s1301 = scalar_select %p1300, %s106, 1
        %s1302 = smul.addr %s1301, 2
        %s1303 = smul.addr %s1299, 4
        %s1304 = sadd.s32 %s1302, %s1303
        %s1305 = smul.addr %s1304, 8
        %s1306 = scalar_lea.vmem %s5, %s1305
        %p1307 = pneg %p164
        %p1308 = pneg %p161
        %p1309 = pneg %p185
        %p1310 = pneg %p182
        %p1311 = pneg %p206
        %p1312 = pneg %p203
        %p1313 = pneg %p227
        %p1314 = pneg %p224
        %p1315 = pneg %p248
        %p1316 = pneg %p245
        %p1317 = pneg %p269
        %p1318 = pneg %p266
        %p1319 = pneg %p290
        %p1320 = pneg %p287
        %p1321 = pneg %p311
        %p1322 = pneg %p308
        %p1323 = pneg %p332
        %p1324 = pneg %p329
        %p1325 = pneg %p353
        %p1326 = pneg %p350
        %p1327 = pneg %p374
        %p1328 = pneg %p371
        %p1329 = pneg %p395
        %p1330 = pneg %p392
        %p1331 = pneg %p416
        %p1332 = pneg %p413
        %p1333 = pneg %p437
        %p1334 = pneg %p434
        %p1335 = pneg %p458
        %p1336 = pneg %p455
        %p1337 = pneg %p479
        %p1338 = pneg %p476
        %p1339 = pneg %p500
        %p1340 = pneg %p497
        %p1341 = pneg %p521
        %p1342 = pneg %p518
        %p1343 = pneg %p542
        %p1344 = pneg %p539
        %p1345 = pneg %p563
        %p1346 = pneg %p560
        %p1347 = pneg %p584
        %p1348 = pneg %p581
        %p1349 = pneg %p605
        %p1350 = pneg %p602
        %p1351 = pneg %p626
        %p1352 = pneg %p623
        %p1353 = pneg %p647
        %p1354 = pneg %p644
        %p1355 = pneg %p668
        %p1356 = pneg %p665
        %p1357 = pneg %p689
        %p1358 = pneg %p686
        %p1359 = pneg %p710
        %p1360 = pneg %p707
        %p1361 = pneg %p731
        %p1362 = pneg %p728
        %p1363 = pneg %p752
        %p1364 = pneg %p749
        %p1365 = pneg %p773
        %p1366 = pneg %p770
        %p1367 = pneg %p794
        %p1368 = pneg %p791
        %p1369 = pneg %p815
        %p1370 = pneg %p812
        %p1371 = pneg %p836
        %p1372 = pneg %p833
        %p1373 = pneg %p864
        %p1374 = pneg %p861
        %s1375 = sand.u32 %s851, 1
        %s1376 = scalar_lea.sflag [#allocation7], %s1375
        %s1377 = sand.u32 %s851, 1
        %s1378 = smul.addr %s1377, 32
        %s1379 = scalar_lea.vmem [#allocation40], %s1378
        %s1380 = smul.u32 4, %s106
        %p1381 = scmp.lt.s32.totalorder %s105, 1
        %s1382 = scalar_select %p1381, %s105, 1
        %p1383 = scmp.lt.s32.totalorder %s1380, 7
        %s1384 = scalar_select %p1383, %s1380, 7
        %s1385 = smul.addr %s1382, 8
        %s1386 = sadd.s32 %s1384, %s1385
        %s1387 = smul.addr %s1386, 8
        %s1388 = scalar_lea.vmem %s3, %s1387
        %s1389 = smul.u32 4, %s106
        %p1390 = scmp.lt.s32.totalorder %s105, 1
        %s1391 = scalar_select %p1390, %s105, 1
        %p1392 = scmp.lt.s32.totalorder %s106, 1
        %s1393 = scalar_select %p1392, %s106, 1
        %s1394 = smul.addr %s1393, 2
        %s1395 = smul.addr %s1391, 4
        %s1396 = sadd.s32 %s1394, %s1395
        %s1397 = smul.addr %s1396, 8
        %s1398 = scalar_lea.vmem %s5, %s1397
        %s1399 = smul.u32 4, %s106
        %v1401 = vld [vmem:[%s1398] sm:$0xff]
        %v1402 = vld [vmem:[%s1398 + $0x8] sm:$0xff]
        %v1403 = vld [vmem:[%s1388] sm:$0xff]
        %v1404 = vld [vmem:[%s1388 + $0x8] sm:$0xff]
        %v1405 = vld [vmem:[%s1388 + $0x10] sm:$0xff]
        %v1406 = vld [vmem:[%s1388 + $0x18] sm:$0xff]
        %s1407 = sld [smem:[#allocation4 + %s105]]
        %s1408 = smul.u32 %s106, 32
        %s1409 = ssub.s32 %s1408, 16
        %v1410 = vlaneseq
        %v1411 = vshrl.u32 %v1410, 7
        %v1412 = vadd.s32 %v1411, 8
        %v1413 = vadd.s32 %v1411, 16
        %v1414 = vadd.s32 %v1411, 24
        %v1415 = vadd.s32 %v1411, 32
        %v1416 = vadd.s32 %v1411, 40
        %v1417 = vstv %s1409
        %v1418 = vadd.s32 %v1417, %v1411
        %v1419 = vadd.s32 %v1417, %v1412
        %v1420 = vadd.s32 %v1417, %v1413
        %v1421 = vadd.s32 %v1417, %v1414
        %v1422 = vadd.s32 %v1417, %v1415
        %v1423 = vadd.s32 %v1417, %v1416
        %v1424 = vstv %s1408
        %v1425 = vadd.s32 %v1424, %v1411
        %v1426 = vadd.s32 %v1424, %v1412
        %v1427 = vadd.s32 %v1424, %v1413
        %v1428 = vadd.s32 %v1424, %v1414
        %v1429 = vlaneseq
        %v1430 = vand.u32 %v1429, 127
        %v1431 = vadd.s32 %v1417, %v1430
        %v1432 = vld [vmem:[#allocation5] sm:$0x1]
        %v1433 = vld [vmem:[#allocation8] sm:$0x1]
        %vm1434 = vcmask 523264
        %v1435 = vsel %vm1434, %v1401, 0.0
        %1436 = vadd.xlane.f32.xlu0 %v1435
        %v1437 = vpop.xlane.xlu0 %1436
        %v1438 = vsel %vm1434, %v1402, 0.0
        %1439 = vadd.xlane.f32.xlu0 %v1438
        %v1440 = vpop.xlane.xlu0 %1439
        %v1441 = vsel %vm1434, %v1403, 0.0
        %1442 = vadd.xlane.f32.xlu0 %v1441
        %v1443 = vpop.xlane.xlu0 %1442
        %v1444 = vsel %vm1434, %v1404, 0.0
        %1445 = vadd.xlane.f32.xlu0 %v1444
        %v1446 = vpop.xlane.xlu0 %1445
        %v1447 = vsel %vm1434, %v1405, 0.0
        %1448 = vadd.xlane.f32.xlu0 %v1447
        %v1449 = vpop.xlane.xlu0 %1448
        %v1450 = vsel %vm1434, %v1406, 0.0
        %1451 = vadd.xlane.f32.xlu0 %v1450
        %v1452 = vpop.xlane.xlu0 %1451
        %v1453 = vrcp.pop 64.0
        %v1454 = vmul.f32 %v1437, %v1453
        %v1455 = vmul.f32 %v1440, %v1453
        %v1456 = vmul.f32 %v1443, %v1453
        %v1457 = vmul.f32 %v1446, %v1453
        %v1458 = vmul.f32 %v1449, %v1453
        %v1459 = vmul.f32 %v1452, %v1453
        %v1460 = vsub.f32 %v1401, %v1454
        %v1461 = vsub.f32 %v1402, %v1455
        %v1462 = vsub.f32 %v1403, %v1456
        %v1463 = vsub.f32 %v1404, %v1457
        %v1464 = vsub.f32 %v1405, %v1458
        %v1465 = vsub.f32 %v1406, %v1459
        %v1466 = vmul.f32 %v1460, %v1460
        %v1467 = vmul.f32 %v1461, %v1461
        %v1468 = vmul.f32 %v1462, %v1462
        %v1469 = vmul.f32 %v1463, %v1463
        %v1470 = vmul.f32 %v1464, %v1464
        %v1471 = vmul.f32 %v1465, %v1465
        %v1472 = vsel %vm1434, %v1466, 0.0
        %1473 = vadd.xlane.f32.xlu0 %v1472
        %v1474 = vpop.xlane.xlu0 %1473
        %v1475 = vsel %vm1434, %v1467, 0.0
        %1476 = vadd.xlane.f32.xlu0 %v1475
        %v1477 = vpop.xlane.xlu0 %1476
        %v1478 = vsel %vm1434, %v1468, 0.0
        %1479 = vadd.xlane.f32.xlu0 %v1478
        %v1480 = vpop.xlane.xlu0 %1479
        %v1481 = vsel %vm1434, %v1469, 0.0
        %1482 = vadd.xlane.f32.xlu0 %v1481
        %v1483 = vpop.xlane.xlu0 %1482
        %v1484 = vsel %vm1434, %v1470, 0.0
        %1485 = vadd.xlane.f32.xlu0 %v1484
        %v1486 = vpop.xlane.xlu0 %1485
        %v1487 = vsel %vm1434, %v1471, 0.0
        %1488 = vadd.xlane.f32.xlu0 %v1487
        %v1489 = vpop.xlane.xlu0 %1488
        %v1490 = vmul.f32 %v1474, %v1453
        %v1491 = vmul.f32 %v1477, %v1453
        %v1492 = vmul.f32 %v1480, %v1453
        %v1493 = vmul.f32 %v1483, %v1453
        %v1494 = vmul.f32 %v1486, %v1453
        %v1495 = vmul.f32 %v1489, %v1453
        %v1496 = vadd.f32 %v1490, 1e-05
        %v1497 = vadd.f32 %v1491, 1e-05
        %v1498 = vadd.f32 %v1492, 1e-05
        %v1499 = vadd.f32 %v1493, 1e-05
        %v1500 = vadd.f32 %v1494, 1e-05
        %v1501 = vadd.f32 %v1495, 1e-05
        %v1502 = vrsqrt.pop %v1496
        %v1503 = vrsqrt.pop %v1497
        %v1504 = vrsqrt.pop %v1498
        %v1505 = vrsqrt.pop %v1499
        %v1506 = vrsqrt.pop %v1500
        %v1507 = vrsqrt.pop %v1501
        %v1508 = vmul.f32 %v1460, %v1502
        %v1509 = vmul.f32 %v1461, %v1503
        %v1510 = vmul.f32 %v1462, %v1504
        %v1511 = vmul.f32 %v1463, %v1505
        %v1512 = vmul.f32 %v1464, %v1506
        %v1513 = vmul.f32 %v1465, %v1507
        %v1515 = vlaneseq
        %v1516 = vshrl.u32 %v1515, 7
        %v1517 = vsub.s32 0, %v1516
        %v1518 = vrot.slane %v1432, %v1517
        %v1520 = vmul.f32 %v1508, %v1518
        %v1521 = vmul.f32 %v1509, %v1518
        %v1522 = vmul.f32 %v1510, %v1518
        %v1523 = vmul.f32 %v1511, %v1518
        %v1524 = vmul.f32 %v1512, %v1518
        %v1525 = vmul.f32 %v1513, %v1518
        %v1527 = vlaneseq
        %v1528 = vshrl.u32 %v1527, 7
        %v1529 = vsub.s32 0, %v1528
        %v1530 = vrot.slane %v1433, %v1529
        %v1532 = vadd.f32 %v1520, %v1530
        %v1533 = vadd.f32 %v1521, %v1530
        %v1534 = vadd.f32 %v1522, %v1530
        %v1535 = vadd.f32 %v1523, %v1530
        %v1536 = vadd.f32 %v1524, %v1530
        %v1537 = vadd.f32 %v1525, %v1530
        %v1538 = vpack.c.bf16 %v1533, %v1532
        %v1539 = vpack.c.bf16 %v1535, %v1534
        %v1540 = vpack.c.bf16 %v1537, %v1536
        %v1541 = vld [vmem:[#allocation10] sm:$0xf]
        %v1542 = vld [vmem:[#allocation10 + $0x4] sm:$0xf]
        %v1543 = vld [vmem:[#allocation10 + $0x8] sm:$0xf]
        %v1544 = vld [vmem:[#allocation10 + $0xc] sm:$0xf]
        %v1545 = vld [vmem:[#allocation10 + $0x10] sm:$0xf]
        %v1546 = vld [vmem:[#allocation10 + $0x14] sm:$0xf]
        %v1547 = vld [vmem:[#allocation10 + $0x18] sm:$0xf]
        %v1548 = vld [vmem:[#allocation10 + $0x1c] sm:$0xf]
        %v1549 = vld [vmem:[#allocation11] sm:$0x1]
        %v1551 = vlaneseq
        %v1552 = vshrl.u32 %v1551, 7
        %v1553 = vsub.s32 0, %v1552
        %v1554 = vrot.slane %v1549, %v1553
        %v1564 = vunpack.c.l.b16 %v1541
        %v1565 = vunpack.c.l.b16 %v1542
        %v1566 = vunpack.c.l.b16 %v1543
        %v1567 = vunpack.c.l.b16 %v1544
        %v1568 = vunpack.c.l.b16 %v1545
        %v1569 = vunpack.c.l.b16 %v1546
        %v1570 = vunpack.c.l.b16 %v1547
        %v1571 = vunpack.c.l.b16 %v1548
        %v1572 = vpack.c.b16 %v1565, %v1564
        %v1573 = vpack.c.b16 %v1567, %v1566
        %v1574 = vpack.c.b16 %v1569, %v1568
        %v1575 = vpack.c.b16 %v1571, %v1570
        %v1581 = vsel %vm1434, %v1538, 0
        %v1584 = vsel %vm1434, %v1539, 0
        %v1587 = vsel %vm1434, %v1540, 0
        %1589 = vmatprep.subr.bf16.mxu0 0
        %1590 = vmatpush1.bf16.msra.mxu0 %v1572
        %1591 = vmatprep.subr.bf16.mxu0 0
        %1592 = vmatpush1.bf16.msra.mxu0 %v1573
        %1593 = vmatprep.subr.bf16.mxu0 0
        %1594 = vmatpush1.bf16.msra.mxu0 %v1574
        %1595 = vmatprep.subr.bf16.mxu0 0
        %1596 = vmatpush1.bf16.msra.mxu0 %v1575
        %1597 = vmatprep.subr.bf16.mxu0 0
        %1598 = vmatpush1.bf16.msra.mxu0 0
        %1599 = vmatprep.subr.bf16.mxu0 0
        %1600 = vmatpush1.bf16.msra.mxu0 0
        %1601 = vmatprep.subr.bf16.mxu0 0
        %1602 = vmatpush1.bf16.msra.mxu0 0
        %1603 = vmatprep.subr.bf16.mxu0 0
        %1604 = vmatpush1.bf16.msra.mxu0 0
        %1605 = vmatprep.subr.bf16.mxu0 0
        %1606 = vmatpush1.bf16.msra.mxu0 0
        %1607 = vmatprep.subr.bf16.mxu0 0
        %1608 = vmatpush1.bf16.msra.mxu0 0
        %1609 = vmatprep.subr.bf16.mxu0 0
        %1610 = vmatpush1.bf16.msra.mxu0 0
        %1611 = vmatprep.subr.bf16.mxu0 0
        %1612 = vmatpush1.bf16.msra.mxu0 0
        %1613 = vmatprep.subr.bf16.mxu0 0
        %1614 = vmatpush1.bf16.msra.mxu0 0
        %1615 = vmatprep.subr.bf16.mxu0 0
        %1616 = vmatpush1.bf16.msra.mxu0 0
        %1617 = vmatprep.subr.bf16.mxu0 0
        %1618 = vmatpush1.bf16.msra.mxu0 0
        %1619 = vmatprep.subr.bf16.mxu0 0
        %1620 = vmatpush1.bf16.msra.mxu0 0
        %1621 = vmatprep.mubr.bf16.mxu0 0
        %1622 = vmatmul.mubr.bf16.gmra.mrb[0].mxu0 %v1581
        %v1623 = vpop.f32.mrb[0].mxu0
        %v1624 = vadd.f32 %v1554, %v1623
        %v1625 = vpop.f32.mrb[0].mxu0
        %v1626 = vpop.f32.mrb[0].mxu0
        %v1627 = vadd.f32 %v1554, %v1626
        %v1628 = vpop.f32.mrb[0].mxu0
        %1629 = vmatprep.mubr.bf16.mxu0 0
        %1630 = vmatmul.mubr.bf16.gmra.mrb[0].mxu0 %v1584
        %v1631 = vpop.f32.mrb[0].mxu0
        %v1632 = vadd.f32 %v1554, %v1631
        %v1633 = vpop.f32.mrb[0].mxu0
        %v1634 = vpop.f32.mrb[0].mxu0
        %v1635 = vadd.f32 %v1554, %v1634
        %v1636 = vpop.f32.mrb[0].mxu0
        %1637 = vmatprep.mubr.bf16.mxu0 0
        %1638 = vmatmul.mubr.bf16.gmra.mrb[0].mxu0 %v1587
        %v1639 = vpop.f32.mrb[0].mxu0
        %v1640 = vadd.f32 %v1554, %v1639
        %v1641 = vpop.f32.mrb[0].mxu0
        %v1642 = vpop.f32.mrb[0].mxu0
        %v1643 = vadd.f32 %v1554, %v1642
        %v1644 = vpop.f32.mrb[0].mxu0
        %1645 = vdwg.mxu0
        %v1646 = vxor.u32 %v1624, 2147483648
        %v1647 = vxor.u32 %v1627, 2147483648
        %v1648 = vxor.u32 %v1632, 2147483648
        %v1649 = vxor.u32 %v1635, 2147483648
        %v1650 = vxor.u32 %v1640, 2147483648
        %v1651 = vxor.u32 %v1643, 2147483648
        %v1652 = vmul.f32 %v1646, 1.442695
        %v1653 = vpow.pop %v1652
        %v1654 = vmul.f32 %v1647, 1.442695
        %v1655 = vpow.pop %v1654
        %v1656 = vmul.f32 %v1648, 1.442695
        %v1657 = vpow.pop %v1656
        %v1658 = vmul.f32 %v1649, 1.442695
        %v1659 = vpow.pop %v1658
        %v1660 = vmul.f32 %v1650, 1.442695
        %v1661 = vpow.pop %v1660
        %v1662 = vmul.f32 %v1651, 1.442695
        %v1663 = vpow.pop %v1662
        %v1664 = vadd.f32 %v1653, 1.0
        %v1665 = vadd.f32 %v1655, 1.0
        %v1666 = vadd.f32 %v1657, 1.0
        %v1667 = vadd.f32 %v1659, 1.0
        %v1668 = vadd.f32 %v1661, 1.0
        %v1669 = vadd.f32 %v1663, 1.0
        %v1670 = vrcp.pop %v1664
        %v1671 = vmul.f32 1.0, %v1670
        %v1672 = vrcp.pop %v1665
        %v1673 = vmul.f32 1.0, %v1672
        %v1674 = vrcp.pop %v1666
        %v1675 = vmul.f32 1.0, %v1674
        %v1676 = vrcp.pop %v1667
        %v1677 = vmul.f32 1.0, %v1676
        %v1678 = vrcp.pop %v1668
        %v1679 = vmul.f32 1.0, %v1678
        %v1680 = vrcp.pop %v1669
        %v1681 = vmul.f32 1.0, %v1680
        %v1682 = vmul.f32 %v1624, %v1671
        %v1683 = vmul.f32 %v1627, %v1673
        %v1684 = vmul.f32 %v1632, %v1675
        %v1685 = vmul.f32 %v1635, %v1677
        %v1686 = vmul.f32 %v1640, %v1679
        %v1687 = vmul.f32 %v1643, %v1681
        %v1688 = vpack.c.bf16 %v1683, %v1682
        %v1689 = vpack.c.bf16 %v1685, %v1684
        %v1690 = vpack.c.bf16 %v1687, %v1686
        %v1691 = vld [vmem:[%s15] sm:$0xf]
        %v1692 = vld [vmem:[%s15 + $0x4] sm:$0xf]
        %v1693 = vld [vmem:[%s15 + $0x8] sm:$0xf]
        %v1694 = vld [vmem:[%s15 + $0xc] sm:$0xf]
        %v1695 = vld [vmem:[%s15 + $0x10] sm:$0xf]
        %v1696 = vld [vmem:[%s15 + $0x14] sm:$0xf]
        %v1697 = vld [vmem:[%s15 + $0x18] sm:$0xf]
        %v1698 = vld [vmem:[%s15 + $0x1c] sm:$0xf]
        %v1699 = vld [vmem:[%s15 + $0x20] sm:$0xf]
        %v1700 = vld [vmem:[%s15 + $0x24] sm:$0xf]
        %v1701 = vld [vmem:[%s15 + $0x28] sm:$0xf]
        %v1702 = vld [vmem:[%s15 + $0x2c] sm:$0xf]
        %v1703 = vld [vmem:[%s15 + $0x30] sm:$0xf]
        %v1704 = vld [vmem:[%s15 + $0x34] sm:$0xf]
        %v1705 = vld [vmem:[%s15 + $0x38] sm:$0xf]
        %v1706 = vld [vmem:[%s15 + $0x3c] sm:$0xf]
        %v1707 = vld [vmem:[#allocation13] sm:$0x1]
        %v1709 = vlaneseq
        %v1710 = vshrl.u32 %v1709, 7
        %v1711 = vsub.s32 0, %v1710
        %v1712 = vrot.slane %v1707, %v1711
        %v1730 = vunpack.c.l.b16 %v1691
        %v1731 = vunpack.c.l.b16 %v1692
        %v1732 = vunpack.c.l.b16 %v1693
        %v1733 = vunpack.c.l.b16 %v1694
        %v1734 = vunpack.c.l.b16 %v1695
        %v1735 = vunpack.c.l.b16 %v1696
        %v1736 = vunpack.c.l.b16 %v1697
        %v1737 = vunpack.c.l.b16 %v1698
        %v1738 = vunpack.c.l.b16 %v1699
        %v1739 = vunpack.c.l.b16 %v1700
        %v1740 = vunpack.c.l.b16 %v1701
        %v1741 = vunpack.c.l.b16 %v1702
        %v1742 = vunpack.c.l.b16 %v1703
        %v1743 = vunpack.c.l.b16 %v1704
        %v1744 = vunpack.c.l.b16 %v1705
        %v1745 = vunpack.c.l.b16 %v1706
        %v1746 = vpack.c.b16 %v1731, %v1730
        %v1747 = vpack.c.b16 %v1733, %v1732
        %v1748 = vpack.c.b16 %v1735, %v1734
        %v1749 = vpack.c.b16 %v1737, %v1736
        %v1750 = vpack.c.b16 %v1739, %v1738
        %v1751 = vpack.c.b16 %v1741, %v1740
        %v1752 = vpack.c.b16 %v1743, %v1742
        %v1753 = vpack.c.b16 %v1745, %v1744
        %1762 = vmatprep.subr.bf16.mxu0 0
        %1763 = vmatpush1.bf16.msra.mxu0 %v1746
        %1764 = vmatprep.subr.bf16.mxu0 0
        %1765 = vmatpush1.bf16.msra.mxu0 %v1747
        %1766 = vmatprep.subr.bf16.mxu0 0
        %1767 = vmatpush1.bf16.msra.mxu0 %v1748
        %1768 = vmatprep.subr.bf16.mxu0 0
        %1769 = vmatpush1.bf16.msra.mxu0 %v1749
        %1770 = vmatprep.subr.bf16.mxu0 0
        %1771 = vmatpush1.bf16.msra.mxu0 %v1750
        %1772 = vmatprep.subr.bf16.mxu0 0
        %1773 = vmatpush1.bf16.msra.mxu0 %v1751
        %1774 = vmatprep.subr.bf16.mxu0 0
        %1775 = vmatpush1.bf16.msra.mxu0 %v1752
        %1776 = vmatprep.subr.bf16.mxu0 0
        %1777 = vmatpush1.bf16.msra.mxu0 %v1753
        %1778 = vmatprep.subr.bf16.mxu0 0
        %1779 = vmatpush1.bf16.msra.mxu0 0
        %1780 = vmatprep.subr.bf16.mxu0 0
        %1781 = vmatpush1.bf16.msra.mxu0 0
        %1782 = vmatprep.subr.bf16.mxu0 0
        %1783 = vmatpush1.bf16.msra.mxu0 0
        %1784 = vmatprep.subr.bf16.mxu0 0
        %1785 = vmatpush1.bf16.msra.mxu0 0
        %1786 = vmatprep.subr.bf16.mxu0 0
        %1787 = vmatpush1.bf16.msra.mxu0 0
        %1788 = vmatprep.subr.bf16.mxu0 0
        %1789 = vmatpush1.bf16.msra.mxu0 0
        %1790 = vmatprep.subr.bf16.mxu0 0
        %1791 = vmatpush1.bf16.msra.mxu0 0
        %1792 = vmatprep.subr.bf16.mxu0 0
        %1793 = vmatpush1.bf16.msra.mxu0 0
        %1794 = vmatprep.mubr.bf16.mxu0 0
        %1795 = vmatmul.mubr.bf16.gmra.mrb[0].mxu0 %v1688
        %v1796 = vpop.f32.mrb[0].mxu0
        %v1797 = vadd.f32 %v1712, %v1796
        %v1798 = vpop.f32.mrb[0].mxu0
        %v1799 = vpop.f32.mrb[0].mxu0
        %v1800 = vadd.f32 %v1712, %v1799
        %v1801 = vpop.f32.mrb[0].mxu0
        %1802 = vmatprep.mubr.bf16.mxu0 0
        %1803 = vmatmul.mubr.bf16.gmra.mrb[0].mxu0 %v1689
        %v1804 = vpop.f32.mrb[0].mxu0
        %v1805 = vadd.f32 %v1712, %v1804
        %v1806 = vpop.f32.mrb[0].mxu0
        %v1807 = vpop.f32.mrb[0].mxu0
        %v1808 = vadd.f32 %v1712, %v1807
        %v1809 = vpop.f32.mrb[0].mxu0
        %1810 = vmatprep.mubr.bf16.mxu0 0
        %1811 = vmatmul.mubr.bf16.gmra.mrb[0].mxu0 %v1690
        %v1812 = vpop.f32.mrb[0].mxu0
        %v1813 = vadd.f32 %v1712, %v1812
        %v1814 = vpop.f32.mrb[0].mxu0
        %v1815 = vpop.f32.mrb[0].mxu0
        %v1816 = vadd.f32 %v1712, %v1815
        %v1817 = vpop.f32.mrb[0].mxu0
        %1818 = vdwg.mxu0
        %v1819 = vmul.f32 %v1797, 0.5
        %v1820 = vmul.f32 %v1800, 0.5
        %v1821 = vmul.f32 %v1805, 0.5
        %v1822 = vmul.f32 %v1808, 0.5
        %v1823 = vmul.f32 %v1813, 0.5
        %v1824 = vmul.f32 %v1816, 0.5
        %v1825 = vadd.f32 %v1401, %v1819
        %v1826 = vadd.f32 %v1402, %v1820
        %v1827 = vadd.f32 %v1403, %v1821
        %v1828 = vadd.f32 %v1404, %v1822
        %v1829 = vadd.f32 %v1405, %v1823
        %v1830 = vadd.f32 %v1406, %v1824
        %v1831 = vld [vmem:[#allocation14] sm:$0x1]
        %v1832 = vld [vmem:[#allocation16] sm:$0x1]
        %v1833 = vsel %vm1434, %v1825, 0.0
        %1834 = vadd.xlane.f32.xlu0 %v1833
        %v1835 = vpop.xlane.xlu0 %1834
        %v1836 = vsel %vm1434, %v1826, 0.0
        %1837 = vadd.xlane.f32.xlu0 %v1836
        %v1838 = vpop.xlane.xlu0 %1837
        %v1839 = vsel %vm1434, %v1827, 0.0
        %1840 = vadd.xlane.f32.xlu0 %v1839
        %v1841 = vpop.xlane.xlu0 %1840
        %v1842 = vsel %vm1434, %v1828, 0.0
        %1843 = vadd.xlane.f32.xlu0 %v1842
        %v1844 = vpop.xlane.xlu0 %1843
        %v1845 = vsel %vm1434, %v1829, 0.0
        %1846 = vadd.xlane.f32.xlu0 %v1845
        %v1847 = vpop.xlane.xlu0 %1846
        %v1848 = vsel %vm1434, %v1830, 0.0
        %1849 = vadd.xlane.f32.xlu0 %v1848
        %v1850 = vpop.xlane.xlu0 %1849
        %v1851 = vmul.f32 %v1835, %v1453
        %v1852 = vmul.f32 %v1838, %v1453
        %v1853 = vmul.f32 %v1841, %v1453
        %v1854 = vmul.f32 %v1844, %v1453
        %v1855 = vmul.f32 %v1847, %v1453
        %v1856 = vmul.f32 %v1850, %v1453
        %v1857 = vsub.f32 %v1825, %v1851
        %v1858 = vsub.f32 %v1826, %v1852
        %v1859 = vsub.f32 %v1827, %v1853
        %v1860 = vsub.f32 %v1828, %v1854
        %v1861 = vsub.f32 %v1829, %v1855
        %v1862 = vsub.f32 %v1830, %v1856
        %v1863 = vmul.f32 %v1857, %v1857
        %v1864 = vmul.f32 %v1858, %v1858
        %v1865 = vmul.f32 %v1859, %v1859
        %v1866 = vmul.f32 %v1860, %v1860
        %v1867 = vmul.f32 %v1861, %v1861
        %v1868 = vmul.f32 %v1862, %v1862
        %v1869 = vsel %vm1434, %v1863, 0.0
        %1870 = vadd.xlane.f32.xlu0 %v1869
        %v1871 = vpop.xlane.xlu0 %1870
        %v1872 = vsel %vm1434, %v1864, 0.0
        %1873 = vadd.xlane.f32.xlu0 %v1872
        %v1874 = vpop.xlane.xlu0 %1873
        %v1875 = vsel %vm1434, %v1865, 0.0
        %1876 = vadd.xlane.f32.xlu0 %v1875
        %v1877 = vpop.xlane.xlu0 %1876
        %v1878 = vsel %vm1434, %v1866, 0.0
        %1879 = vadd.xlane.f32.xlu0 %v1878
        %v1880 = vpop.xlane.xlu0 %1879
        %v1881 = vsel %vm1434, %v1867, 0.0
        %1882 = vadd.xlane.f32.xlu0 %v1881
        %v1883 = vpop.xlane.xlu0 %1882
        %v1884 = vsel %vm1434, %v1868, 0.0
        %1885 = vadd.xlane.f32.xlu0 %v1884
        %v1886 = vpop.xlane.xlu0 %1885
        %v1887 = vmul.f32 %v1871, %v1453
        %v1888 = vmul.f32 %v1874, %v1453
        %v1889 = vmul.f32 %v1877, %v1453
        %v1890 = vmul.f32 %v1880, %v1453
        %v1891 = vmul.f32 %v1883, %v1453
        %v1892 = vmul.f32 %v1886, %v1453
        %v1893 = vadd.f32 %v1887, 1e-05
        %v1894 = vadd.f32 %v1888, 1e-05
        %v1895 = vadd.f32 %v1889, 1e-05
        %v1896 = vadd.f32 %v1890, 1e-05
        %v1897 = vadd.f32 %v1891, 1e-05
        %v1898 = vadd.f32 %v1892, 1e-05
        %v1899 = vrsqrt.pop %v1893
        %v1900 = vrsqrt.pop %v1894
        %v1901 = vrsqrt.pop %v1895
        %v1902 = vrsqrt.pop %v1896
        %v1903 = vrsqrt.pop %v1897
        %v1904 = vrsqrt.pop %v1898
        %v1905 = vmul.f32 %v1857, %v1899
        %v1906 = vmul.f32 %v1858, %v1900
        %v1907 = vmul.f32 %v1859, %v1901
        %v1908 = vmul.f32 %v1860, %v1902
        %v1909 = vmul.f32 %v1861, %v1903
        %v1910 = vmul.f32 %v1862, %v1904
        %v1912 = vlaneseq
        %v1913 = vshrl.u32 %v1912, 7
        %v1914 = vsub.s32 0, %v1913
        %v1915 = vrot.slane %v1831, %v1914
        %v1917 = vmul.f32 %v1905, %v1915
        %v1918 = vmul.f32 %v1906, %v1915
        %v1919 = vmul.f32 %v1907, %v1915
        %v1920 = vmul.f32 %v1908, %v1915
        %v1921 = vmul.f32 %v1909, %v1915
        %v1922 = vmul.f32 %v1910, %v1915
        %v1924 = vlaneseq
        %v1925 = vshrl.u32 %v1924, 7
        %v1926 = vsub.s32 0, %v1925
        %v1927 = vrot.slane %v1832, %v1926
        %v1929 = vadd.f32 %v1917, %v1927
        %v1930 = vadd.f32 %v1918, %v1927
        %v1931 = vadd.f32 %v1919, %v1927
        %v1932 = vadd.f32 %v1920, %v1927
        %v1933 = vadd.f32 %v1921, %v1927
        %v1934 = vadd.f32 %v1922, %v1927
        %v1935 = vpack.c.bf16 %v1930, %v1929
        %v1936 = vpack.c.bf16 %v1932, %v1931
        %v1937 = vpack.c.bf16 %v1934, %v1933
        %v1938 = vld [vmem:[#allocation17] sm:$0xf]
        %v1939 = vld [vmem:[#allocation17 + $0x4] sm:$0xf]
        %v1940 = vld [vmem:[#allocation17 + $0x8] sm:$0xf]
        %v1941 = vld [vmem:[#allocation17 + $0xc] sm:$0xf]
        %v1942 = vld [vmem:[#allocation17 + $0x10] sm:$0xf]
        %v1943 = vld [vmem:[#allocation17 + $0x14] sm:$0xf]
        %v1944 = vld [vmem:[#allocation17 + $0x18] sm:$0xf]
        %v1945 = vld [vmem:[#allocation17 + $0x1c] sm:$0xf]
        %v1946 = vld [vmem:[#allocation19] sm:$0x1]
        %v1948 = vlaneseq
        %v1949 = vshrl.u32 %v1948, 7
        %v1950 = vsub.s32 0, %v1949
        %v1951 = vrot.slane %v1946, %v1950
        %v1961 = vunpack.c.l.b16 %v1938
        %v1962 = vunpack.c.l.b16 %v1939
        %v1963 = vunpack.c.l.b16 %v1940
        %v1964 = vunpack.c.l.b16 %v1941
        %v1965 = vunpack.c.l.b16 %v1942
        %v1966 = vunpack.c.l.b16 %v1943
        %v1967 = vunpack.c.l.b16 %v1944
        %v1968 = vunpack.c.l.b16 %v1945
        %v1969 = vpack.c.b16 %v1962, %v1961
        %v1970 = vpack.c.b16 %v1964, %v1963
        %v1971 = vpack.c.b16 %v1966, %v1965
        %v1972 = vpack.c.b16 %v1968, %v1967
        %v1978 = vsel %vm1434, %v1935, 0
        %v1981 = vsel %vm1434, %v1936, 0
        %v1984 = vsel %vm1434, %v1937, 0
        %1986 = vmatprep.subr.bf16.mxu0 0
        %1987 = vmatpush1.bf16.msra.mxu0 %v1969
        %1988 = vmatprep.subr.bf16.mxu0 0
        %1989 = vmatpush1.bf16.msra.mxu0 %v1970
        %1990 = vmatprep.subr.bf16.mxu0 0
        %1991 = vmatpush1.bf16.msra.mxu0 %v1971
        %1992 = vmatprep.subr.bf16.mxu0 0
        %1993 = vmatpush1.bf16.msra.mxu0 %v1972
        %1994 = vmatprep.subr.bf16.mxu0 0
        %1995 = vmatpush1.bf16.msra.mxu0 0
        %1996 = vmatprep.subr.bf16.mxu0 0
        %1997 = vmatpush1.bf16.msra.mxu0 0
        %1998 = vmatprep.subr.bf16.mxu0 0
        %1999 = vmatpush1.bf16.msra.mxu0 0
        %2000 = vmatprep.subr.bf16.mxu0 0
        %2001 = vmatpush1.bf16.msra.mxu0 0
        %2002 = vmatprep.subr.bf16.mxu0 0
        %2003 = vmatpush1.bf16.msra.mxu0 0
        %2004 = vmatprep.subr.bf16.mxu0 0
        %2005 = vmatpush1.bf16.msra.mxu0 0
        %2006 = vmatprep.subr.bf16.mxu0 0
        %2007 = vmatpush1.bf16.msra.mxu0 0
        %2008 = vmatprep.subr.bf16.mxu0 0
        %2009 = vmatpush1.bf16.msra.mxu0 0
        %2010 = vmatprep.subr.bf16.mxu0 0
        %2011 = vmatpush1.bf16.msra.mxu0 0
        %2012 = vmatprep.subr.bf16.mxu0 0
        %2013 = vmatpush1.bf16.msra.mxu0 0
        %2014 = vmatprep.subr.bf16.mxu0 0
        %2015 = vmatpush1.bf16.msra.mxu0 0
        %2016 = vmatprep.subr.bf16.mxu0 0
        %2017 = vmatpush1.bf16.msra.mxu0 0
        %2018 = vmatprep.mubr.bf16.mxu0 0
        %2019 = vmatmul.mubr.bf16.gmra.mrb[0].mxu0 %v1978
        %v2020 = vpop.f32.mrb[0].mxu0
        %v2021 = vadd.f32 %v1951, %v2020
        %v2022 = vpop.f32.mrb[0].mxu0
        %v2023 = vpop.f32.mrb[0].mxu0
        %v2024 = vadd.f32 %v1951, %v2023
        %v2025 = vpop.f32.mrb[0].mxu0
        %2026 = vmatprep.mubr.bf16.mxu0 0
        %2027 = vmatmul.mubr.bf16.gmra.mrb[0].mxu0 %v1981
        %v2028 = vpop.f32.mrb[0].mxu0
        %v2029 = vadd.f32 %v1951, %v2028
        %v2030 = vpop.f32.mrb[0].mxu0
        %v2031 = vpop.f32.mrb[0].mxu0
        %v2032 = vadd.f32 %v1951, %v2031
        %v2033 = vpop.f32.mrb[0].mxu0
        %2034 = vmatprep.mubr.bf16.mxu0 0
        %2035 = vmatmul.mubr.bf16.gmra.mrb[0].mxu0 %v1984
        %v2036 = vpop.f32.mrb[0].mxu0
        %v2037 = vadd.f32 %v1951, %v2036
        %v2038 = vpop.f32.mrb[0].mxu0
        %v2039 = vpop.f32.mrb[0].mxu0
        %v2040 = vadd.f32 %v1951, %v2039
        %v2041 = vpop.f32.mrb[0].mxu0
        %2042 = vdwg.mxu0
        %v2043 = vld [vmem:[#allocation20] sm:$0xf]
        %v2044 = vld [vmem:[#allocation20 + $0x4] sm:$0xf]
        %v2045 = vld [vmem:[#allocation20 + $0x8] sm:$0xf]
        %v2046 = vld [vmem:[#allocation20 + $0xc] sm:$0xf]
        %v2047 = vld [vmem:[#allocation20 + $0x10] sm:$0xf]
        %v2048 = vld [vmem:[#allocation20 + $0x14] sm:$0xf]
        %v2049 = vld [vmem:[#allocation20 + $0x18] sm:$0xf]
        %v2050 = vld [vmem:[#allocation20 + $0x1c] sm:$0xf]
        %v2051 = vld [vmem:[#allocation22] sm:$0x1]
        %v2053 = vlaneseq
        %v2054 = vshrl.u32 %v2053, 7
        %v2055 = vsub.s32 0, %v2054
        %v2056 = vrot.slane %v2051, %v2055
        %v2066 = vunpack.c.l.b16 %v2043
        %v2067 = vunpack.c.l.b16 %v2044
        %v2068 = vunpack.c.l.b16 %v2045
        %v2069 = vunpack.c.l.b16 %v2046
        %v2070 = vunpack.c.l.b16 %v2047
        %v2071 = vunpack.c.l.b16 %v2048
        %v2072 = vunpack.c.l.b16 %v2049
        %v2073 = vunpack.c.l.b16 %v2050
        %v2074 = vpack.c.b16 %v2067, %v2066
        %v2075 = vpack.c.b16 %v2069, %v2068
        %v2076 = vpack.c.b16 %v2071, %v2070
        %v2077 = vpack.c.b16 %v2073, %v2072
        %2082 = vmatprep.subr.bf16.mxu0 0
        %2083 = vmatpush1.bf16.msra.mxu0 %v2074
        %2084 = vmatprep.subr.bf16.mxu0 0
        %2085 = vmatpush1.bf16.msra.mxu0 %v2075
        %2086 = vmatprep.subr.bf16.mxu0 0
        %2087 = vmatpush1.bf16.msra.mxu0 %v2076
        %2088 = vmatprep.subr.bf16.mxu0 0
        %2089 = vmatpush1.bf16.msra.mxu0 %v2077
        %2090 = vmatprep.subr.bf16.mxu0 0
        %2091 = vmatpush1.bf16.msra.mxu0 0
        %2092 = vmatprep.subr.bf16.mxu0 0
        %2093 = vmatpush1.bf16.msra.mxu0 0
        %2094 = vmatprep.subr.bf16.mxu0 0
        %2095 = vmatpush1.bf16.msra.mxu0 0
        %2096 = vmatprep.subr.bf16.mxu0 0
        %2097 = vmatpush1.bf16.msra.mxu0 0
        %2098 = vmatprep.subr.bf16.mxu0 0
        %2099 = vmatpush1.bf16.msra.mxu0 0
        %2100 = vmatprep.subr.bf16.mxu0 0
        %2101 = vmatpush1.bf16.msra.mxu0 0
        %2102 = vmatprep.subr.bf16.mxu0 0
        %2103 = vmatpush1.bf16.msra.mxu0 0
        %2104 = vmatprep.subr.bf16.mxu0 0
        %2105 = vmatpush1.bf16.msra.mxu0 0
        %2106 = vmatprep.subr.bf16.mxu0 0
        %2107 = vmatpush1.bf16.msra.mxu0 0
        %2108 = vmatprep.subr.bf16.mxu0 0
        %2109 = vmatpush1.bf16.msra.mxu0 0
        %2110 = vmatprep.subr.bf16.mxu0 0
        %2111 = vmatpush1.bf16.msra.mxu0 0
        %2112 = vmatprep.subr.bf16.mxu0 0
        %2113 = vmatpush1.bf16.msra.mxu0 0
        %2114 = vmatprep.mubr.bf16.mxu0 0
        %2115 = vmatmul.mubr.bf16.gmra.mrb[0].mxu0 %v1978
        %v2116 = vpop.f32.mrb[0].mxu0
        %v2117 = vadd.f32 %v2056, %v2116
        %v2118 = vpop.f32.mrb[0].mxu0
        %v2119 = vpop.f32.mrb[0].mxu0
        %v2120 = vadd.f32 %v2056, %v2119
        %v2121 = vpop.f32.mrb[0].mxu0
        %2122 = vmatprep.mubr.bf16.mxu0 0
        %2123 = vmatmul.mubr.bf16.gmra.mrb[0].mxu0 %v1981
        %v2124 = vpop.f32.mrb[0].mxu0
        %v2125 = vadd.f32 %v2056, %v2124
        %v2126 = vpop.f32.mrb[0].mxu0
        %v2127 = vpop.f32.mrb[0].mxu0
        %v2128 = vadd.f32 %v2056, %v2127
        %v2129 = vpop.f32.mrb[0].mxu0
        %2130 = vmatprep.mubr.bf16.mxu0 0
        %2131 = vmatmul.mubr.bf16.gmra.mrb[0].mxu0 %v1984
        %v2132 = vpop.f32.mrb[0].mxu0
        %v2133 = vadd.f32 %v2056, %v2132
        %v2134 = vpop.f32.mrb[0].mxu0
        %v2135 = vpop.f32.mrb[0].mxu0
        %v2136 = vadd.f32 %v2056, %v2135
        %v2137 = vpop.f32.mrb[0].mxu0
        %2138 = vdwg.mxu0
        %v2139 = vxor.u32 %v2117, 2147483648
        %v2140 = vxor.u32 %v2120, 2147483648
        %v2141 = vxor.u32 %v2125, 2147483648
        %v2142 = vxor.u32 %v2128, 2147483648
        %v2143 = vxor.u32 %v2133, 2147483648
        %v2144 = vxor.u32 %v2136, 2147483648
        %v2145 = vmul.f32 %v2139, 1.442695
        %v2146 = vpow.pop %v2145
        %v2147 = vmul.f32 %v2140, 1.442695
        %v2148 = vpow.pop %v2147
        %v2149 = vmul.f32 %v2141, 1.442695
        %v2150 = vpow.pop %v2149
        %v2151 = vmul.f32 %v2142, 1.442695
        %v2152 = vpow.pop %v2151
        %v2153 = vmul.f32 %v2143, 1.442695
        %v2154 = vpow.pop %v2153
        %v2155 = vmul.f32 %v2144, 1.442695
        %v2156 = vpow.pop %v2155
        %v2157 = vadd.f32 %v2146, 1.0
        %v2158 = vadd.f32 %v2148, 1.0
        %v2159 = vadd.f32 %v2150, 1.0
        %v2160 = vadd.f32 %v2152, 1.0
        %v2161 = vadd.f32 %v2154, 1.0
        %v2162 = vadd.f32 %v2156, 1.0
        %v2163 = vrcp.pop %v2157
        %v2164 = vmul.f32 1.0, %v2163
        %v2165 = vrcp.pop %v2158
        %v2166 = vmul.f32 1.0, %v2165
        %v2167 = vrcp.pop %v2159
        %v2168 = vmul.f32 1.0, %v2167
        %v2169 = vrcp.pop %v2160
        %v2170 = vmul.f32 1.0, %v2169
        %v2171 = vrcp.pop %v2161
        %v2172 = vmul.f32 1.0, %v2171
        %v2173 = vrcp.pop %v2162
        %v2174 = vmul.f32 1.0, %v2173
        %v2175 = vmul.f32 %v2021, %v2164
        %v2176 = vmul.f32 %v2024, %v2166
        %v2177 = vmul.f32 %v2029, %v2168
        %v2178 = vmul.f32 %v2032, %v2170
        %v2179 = vmul.f32 %v2037, %v2172
        %v2180 = vmul.f32 %v2040, %v2174
        %vm2181 = vcmp.ge.s32.totalorder %v1418, 0
        %vm2182 = vcmp.ge.s32.totalorder %v1419, 0
        %vm2183 = vcmp.ge.s32.totalorder %v1420, 0
        %vm2184 = vcmp.ge.s32.totalorder %v1421, 0
        %vm2185 = vcmp.ge.s32.totalorder %v1422, 0
        %vm2186 = vcmp.ge.s32.totalorder %v1423, 0
        %v2187 = vsel %vm2181, 1, 0
        %v2188 = vsel %vm2182, 1, 0
        %v2189 = vsel %vm2183, 1, 0
        %v2190 = vsel %vm2184, 1, 0
        %v2191 = vsel %vm2185, 1, 0
        %v2192 = vsel %vm2186, 1, 0
        %vm2193 = vcmp.eq.s32.totalorder %v2187, 1
        %vm2194 = vcmp.eq.s32.totalorder %v2188, 1
        %vm2195 = vcmp.eq.s32.totalorder %v2189, 1
        %vm2196 = vcmp.eq.s32.totalorder %v2190, 1
        %vm2197 = vcmp.eq.s32.totalorder %v2191, 1
        %vm2198 = vcmp.eq.s32.totalorder %v2192, 1
        %v2199 = vsel %vm2193, %v2175, 0.0
        %v2200 = vsel %vm2194, %v2176, 0.0
        %v2201 = vsel %vm2195, %v2177, 0.0
        %v2202 = vsel %vm2196, %v2178, 0.0
        %v2203 = vsel %vm2197, %v2179, 0.0
        %v2204 = vsel %vm2198, %v2180, 0.0
        %v2205 = vld [vmem:[#allocation23] sm:$0x7]
        %v2206 = vlaneseq
        %v2207 = vshrl.u32 %v2206, 7
        %v2208 = vsub.s32 2, %v2207
        %v2209 = vrot.slane %v2205, %v2208
        %v2210 = vmul.f32 %v2199, %v2209
        %v2211 = vmul.f32 %v2200, %v2209
        %v2212 = vmul.f32 %v2201, %v2209
        %v2213 = vmul.f32 %v2202, %v2209
        %v2214 = vmul.f32 %v2203, %v2209
        %v2215 = vmul.f32 %v2204, %v2209
        %v2216 = vrot.slane %v2199, 7
        %v2217 = vrot.slane %v2200, 7
        %v2218 = vrot.slane %v2201, 7
        %v2219 = vrot.slane %v2202, 7
        %v2220 = vrot.slane %v2203, 7
        %v2221 = vrot.slane %v2204, 7
        %vm2222 = vcmp.lt.s32.totalorder %v1411, 1
        %v2223 = vsel %vm2222, %v2220, %v2221
        %v2224 = vsel %vm2222, %v2219, %v2220
        %v2225 = vsel %vm2222, %v2218, %v2219
        %v2226 = vsel %vm2222, %v2217, %v2218
        %v2227 = vsel %vm2222, %v2216, %v2217
        %v2228 = vsel %vm2222, %v2221, %v2216
        %v2229 = vlaneseq
        %v2230 = vshrl.u32 %v2229, 7
        %v2231 = vsub.s32 1, %v2230
        %v2232 = vrot.slane %v2205, %v2231
        %v2233 = vmul.f32 %v2228, %v2232
        %v2234 = vmul.f32 %v2227, %v2232
        %v2235 = vmul.f32 %v2226, %v2232
        %v2236 = vmul.f32 %v2225, %v2232
        %v2237 = vmul.f32 %v2224, %v2232
        %v2238 = vmul.f32 %v2223, %v2232
        %v2239 = vadd.f32 %v2210, %v2233
        %v2240 = vadd.f32 %v2211, %v2234
        %v2241 = vadd.f32 %v2212, %v2235
        %v2242 = vadd.f32 %v2213, %v2236
        %v2243 = vadd.f32 %v2214, %v2237
        %v2244 = vadd.f32 %v2215, %v2238
        %v2245 = vrot.slane %v2199, 6
        %v2246 = vrot.slane %v2200, 6
        %v2247 = vrot.slane %v2201, 6
        %v2248 = vrot.slane %v2202, 6
        %v2249 = vrot.slane %v2203, 6
        %v2250 = vrot.slane %v2204, 6
        %vm2251 = vcmp.lt.s32.totalorder %v1411, 2
        %v2252 = vsel %vm2251, %v2249, %v2250
        %v2253 = vsel %vm2251, %v2248, %v2249
        %v2254 = vsel %vm2251, %v2247, %v2248
        %v2255 = vsel %vm2251, %v2246, %v2247
        %v2256 = vsel %vm2251, %v2245, %v2246
        %v2257 = vsel %vm2251, %v2250, %v2245
        %v2258 = vlaneseq
        %v2259 = vshrl.u32 %v2258, 7
        %v2260 = vsub.s32 0, %v2259
        %v2261 = vrot.slane %v2205, %v2260
        %v2262 = vmul.f32 %v2257, %v2261
        %v2263 = vmul.f32 %v2256, %v2261
        %v2264 = vmul.f32 %v2255, %v2261
        %v2265 = vmul.f32 %v2254, %v2261
        %v2266 = vmul.f32 %v2253, %v2261
        %v2267 = vmul.f32 %v2252, %v2261
        %v2268 = vadd.f32 %v2239, %v2262
        %v2269 = vadd.f32 %v2240, %v2263
        %v2270 = vadd.f32 %v2241, %v2264
        %v2271 = vadd.f32 %v2242, %v2265
        %v2272 = vadd.f32 %v2243, %v2266
        %v2273 = vadd.f32 %v2244, %v2267
        %v2274 = vld [vmem:[#allocation25] sm:$0x1]
        %v2276 = vlaneseq
        %v2277 = vshrl.u32 %v2276, 7
        %v2278 = vsub.s32 0, %v2277
        %v2279 = vrot.slane %v2274, %v2278
        %v2281 = vadd.f32 %v2268, %v2279
        %v2282 = vadd.f32 %v2269, %v2279
        %v2283 = vadd.f32 %v2270, %v2279
        %v2284 = vadd.f32 %v2271, %v2279
        %v2285 = vadd.f32 %v2272, %v2279
        %v2286 = vadd.f32 %v2273, %v2279
        %v2287 = vld [vmem:[#allocation26] sm:$0x1]
        %v2288 = vld [vmem:[#allocation28] sm:$0x1]
        %v2289 = vsel %vm1434, %v2281, 0.0
        %2290 = vadd.xlane.f32.xlu0 %v2289
        %v2291 = vpop.xlane.xlu0 %2290
        %v2292 = vsel %vm1434, %v2282, 0.0
        %2293 = vadd.xlane.f32.xlu0 %v2292
        %v2294 = vpop.xlane.xlu0 %2293
        %v2295 = vsel %vm1434, %v2283, 0.0
        %2296 = vadd.xlane.f32.xlu0 %v2295
        %v2297 = vpop.xlane.xlu0 %2296
        %v2298 = vsel %vm1434, %v2284, 0.0
        %2299 = vadd.xlane.f32.xlu0 %v2298
        %v2300 = vpop.xlane.xlu0 %2299
        %v2301 = vsel %vm1434, %v2285, 0.0
        %2302 = vadd.xlane.f32.xlu0 %v2301
        %v2303 = vpop.xlane.xlu0 %2302
        %v2304 = vsel %vm1434, %v2286, 0.0
        %2305 = vadd.xlane.f32.xlu0 %v2304
        %v2306 = vpop.xlane.xlu0 %2305
        %v2307 = vmul.f32 %v2291, %v1453
        %v2308 = vmul.f32 %v2294, %v1453
        %v2309 = vmul.f32 %v2297, %v1453
        %v2310 = vmul.f32 %v2300, %v1453
        %v2311 = vmul.f32 %v2303, %v1453
        %v2312 = vmul.f32 %v2306, %v1453
        %v2313 = vsub.f32 %v2281, %v2307
        %v2314 = vsub.f32 %v2282, %v2308
        %v2315 = vsub.f32 %v2283, %v2309
        %v2316 = vsub.f32 %v2284, %v2310
        %v2317 = vsub.f32 %v2285, %v2311
        %v2318 = vsub.f32 %v2286, %v2312
        %v2319 = vmul.f32 %v2313, %v2313
        %v2320 = vmul.f32 %v2314, %v2314
        %v2321 = vmul.f32 %v2315, %v2315
        %v2322 = vmul.f32 %v2316, %v2316
        %v2323 = vmul.f32 %v2317, %v2317
        %v2324 = vmul.f32 %v2318, %v2318
        %v2325 = vsel %vm1434, %v2319, 0.0
        %2326 = vadd.xlane.f32.xlu0 %v2325
        %v2327 = vpop.xlane.xlu0 %2326
        %v2328 = vsel %vm1434, %v2320, 0.0
        %2329 = vadd.xlane.f32.xlu0 %v2328
        %v2330 = vpop.xlane.xlu0 %2329
        %v2331 = vsel %vm1434, %v2321, 0.0
        %2332 = vadd.xlane.f32.xlu0 %v2331
        %v2333 = vpop.xlane.xlu0 %2332
        %v2334 = vsel %vm1434, %v2322, 0.0
        %2335 = vadd.xlane.f32.xlu0 %v2334
        %v2336 = vpop.xlane.xlu0 %2335
        %v2337 = vsel %vm1434, %v2323, 0.0
        %2338 = vadd.xlane.f32.xlu0 %v2337
        %v2339 = vpop.xlane.xlu0 %2338
        %v2340 = vsel %vm1434, %v2324, 0.0
        %2341 = vadd.xlane.f32.xlu0 %v2340
        %v2342 = vpop.xlane.xlu0 %2341
        %v2343 = vmul.f32 %v2327, %v1453
        %v2344 = vmul.f32 %v2330, %v1453
        %v2345 = vmul.f32 %v2333, %v1453
        %v2346 = vmul.f32 %v2336, %v1453
        %v2347 = vmul.f32 %v2339, %v1453
        %v2348 = vmul.f32 %v2342, %v1453
        %v2349 = vadd.f32 %v2343, 1e-05
        %v2350 = vadd.f32 %v2344, 1e-05
        %v2351 = vadd.f32 %v2345, 1e-05
        %v2352 = vadd.f32 %v2346, 1e-05
        %v2353 = vadd.f32 %v2347, 1e-05
        %v2354 = vadd.f32 %v2348, 1e-05
        %v2355 = vrsqrt.pop %v2349
        %v2356 = vrsqrt.pop %v2350
        %v2357 = vrsqrt.pop %v2351
        %v2358 = vrsqrt.pop %v2352
        %v2359 = vrsqrt.pop %v2353
        %v2360 = vrsqrt.pop %v2354
        %v2361 = vmul.f32 %v2313, %v2355
        %v2362 = vmul.f32 %v2314, %v2356
        %v2363 = vmul.f32 %v2315, %v2357
        %v2364 = vmul.f32 %v2316, %v2358
        %v2365 = vmul.f32 %v2317, %v2359
        %v2366 = vmul.f32 %v2318, %v2360
        %v2368 = vlaneseq
        %v2369 = vshrl.u32 %v2368, 7
        %v2370 = vsub.s32 0, %v2369
        %v2371 = vrot.slane %v2287, %v2370
        %v2373 = vmul.f32 %v2361, %v2371
        %v2374 = vmul.f32 %v2362, %v2371
        %v2375 = vmul.f32 %v2363, %v2371
        %v2376 = vmul.f32 %v2364, %v2371
        %v2377 = vmul.f32 %v2365, %v2371
        %v2378 = vmul.f32 %v2366, %v2371
        %v2380 = vlaneseq
        %v2381 = vshrl.u32 %v2380, 7
        %v2382 = vsub.s32 0, %v2381
        %v2383 = vrot.slane %v2288, %v2382
        %v2385 = vadd.f32 %v2373, %v2383
        %v2386 = vadd.f32 %v2374, %v2383
        %v2387 = vadd.f32 %v2375, %v2383
        %v2388 = vadd.f32 %v2376, %v2383
        %v2389 = vadd.f32 %v2377, %v2383
        %v2390 = vadd.f32 %v2378, %v2383
        %v2391 = vxor.u32 %v2385, 2147483648
        %v2392 = vxor.u32 %v2386, 2147483648
        %v2393 = vxor.u32 %v2387, 2147483648
        %v2394 = vxor.u32 %v2388, 2147483648
        %v2395 = vxor.u32 %v2389, 2147483648
        %v2396 = vxor.u32 %v2390, 2147483648
        %v2397 = vmul.f32 %v2391, 1.442695
        %v2398 = vpow.pop %v2397
        %v2399 = vmul.f32 %v2392, 1.442695
        %v2400 = vpow.pop %v2399
        %v2401 = vmul.f32 %v2393, 1.442695
        %v2402 = vpow.pop %v2401
        %v2403 = vmul.f32 %v2394, 1.442695
        %v2404 = vpow.pop %v2403
        %v2405 = vmul.f32 %v2395, 1.442695
        %v2406 = vpow.pop %v2405
        %v2407 = vmul.f32 %v2396, 1.442695
        %v2408 = vpow.pop %v2407
        %v2409 = vadd.f32 %v2398, 1.0
        %v2410 = vadd.f32 %v2400, 1.0
        %v2411 = vadd.f32 %v2402, 1.0
        %v2412 = vadd.f32 %v2404, 1.0
        %v2413 = vadd.f32 %v2406, 1.0
        %v2414 = vadd.f32 %v2408, 1.0
        %v2415 = vrcp.pop %v2409
        %v2416 = vmul.f32 1.0, %v2415
        %v2417 = vrcp.pop %v2410
        %v2418 = vmul.f32 1.0, %v2417
        %v2419 = vrcp.pop %v2411
        %v2420 = vmul.f32 1.0, %v2419
        %v2421 = vrcp.pop %v2412
        %v2422 = vmul.f32 1.0, %v2421
        %v2423 = vrcp.pop %v2413
        %v2424 = vmul.f32 1.0, %v2423
        %v2425 = vrcp.pop %v2414
        %v2426 = vmul.f32 1.0, %v2425
        %v2427 = vmul.f32 %v2385, %v2416
        %v2428 = vmul.f32 %v2386, %v2418
        %v2429 = vmul.f32 %v2387, %v2420
        %v2430 = vmul.f32 %v2388, %v2422
        %v2431 = vmul.f32 %v2389, %v2424
        %v2432 = vmul.f32 %v2390, %v2426
        %v2433 = vpack.c.bf16 %v2428, %v2427
        %v2434 = vpack.c.bf16 %v2430, %v2429
        %v2435 = vpack.c.bf16 %v2432, %v2431
        %v2436 = vld [vmem:[#allocation29] sm:$0xf]
        %v2437 = vld [vmem:[#allocation29 + $0x4] sm:$0xf]
        %v2438 = vld [vmem:[#allocation29 + $0x8] sm:$0xf]
        %v2439 = vld [vmem:[#allocation29 + $0xc] sm:$0xf]
        %v2440 = vld [vmem:[#allocation29 + $0x10] sm:$0xf]
        %v2441 = vld [vmem:[#allocation29 + $0x14] sm:$0xf]
        %v2442 = vld [vmem:[#allocation29 + $0x18] sm:$0xf]
        %v2443 = vld [vmem:[#allocation29 + $0x1c] sm:$0xf]
        %v2444 = vld [vmem:[#allocation31] sm:$0x1]
        %v2446 = vlaneseq
        %v2447 = vshrl.u32 %v2446, 7
        %v2448 = vsub.s32 0, %v2447
        %v2449 = vrot.slane %v2444, %v2448
        %v2459 = vunpack.c.l.b16 %v2436
        %v2460 = vunpack.c.l.b16 %v2437
        %v2461 = vunpack.c.l.b16 %v2438
        %v2462 = vunpack.c.l.b16 %v2439
        %v2463 = vunpack.c.l.b16 %v2440
        %v2464 = vunpack.c.l.b16 %v2441
        %v2465 = vunpack.c.l.b16 %v2442
        %v2466 = vunpack.c.l.b16 %v2443
        %v2467 = vpack.c.b16 %v2460, %v2459
        %v2468 = vpack.c.b16 %v2462, %v2461
        %v2469 = vpack.c.b16 %v2464, %v2463
        %v2470 = vpack.c.b16 %v2466, %v2465
        %v2476 = vsel %vm1434, %v2433, 0
        %v2479 = vsel %vm1434, %v2434, 0
        %v2482 = vsel %vm1434, %v2435, 0
        %2484 = vmatprep.subr.bf16.mxu0 0
        %2485 = vmatpush1.bf16.msra.mxu0 %v2467
        %2486 = vmatprep.subr.bf16.mxu0 0
        %2487 = vmatpush1.bf16.msra.mxu0 %v2468
        %2488 = vmatprep.subr.bf16.mxu0 0
        %2489 = vmatpush1.bf16.msra.mxu0 %v2469
        %2490 = vmatprep.subr.bf16.mxu0 0
        %2491 = vmatpush1.bf16.msra.mxu0 %v2470
        %2492 = vmatprep.subr.bf16.mxu0 0
        %2493 = vmatpush1.bf16.msra.mxu0 0
        %2494 = vmatprep.subr.bf16.mxu0 0
        %2495 = vmatpush1.bf16.msra.mxu0 0
        %2496 = vmatprep.subr.bf16.mxu0 0
        %2497 = vmatpush1.bf16.msra.mxu0 0
        %2498 = vmatprep.subr.bf16.mxu0 0
        %2499 = vmatpush1.bf16.msra.mxu0 0
        %2500 = vmatprep.subr.bf16.mxu0 0
        %2501 = vmatpush1.bf16.msra.mxu0 0
        %2502 = vmatprep.subr.bf16.mxu0 0
        %2503 = vmatpush1.bf16.msra.mxu0 0
        %2504 = vmatprep.subr.bf16.mxu0 0
        %2505 = vmatpush1.bf16.msra.mxu0 0
        %2506 = vmatprep.subr.bf16.mxu0 0
        %2507 = vmatpush1.bf16.msra.mxu0 0
        %2508 = vmatprep.subr.bf16.mxu0 0
        %2509 = vmatpush1.bf16.msra.mxu0 0
        %2510 = vmatprep.subr.bf16.mxu0 0
        %2511 = vmatpush1.bf16.msra.mxu0 0
        %2512 = vmatprep.subr.bf16.mxu0 0
        %2513 = vmatpush1.bf16.msra.mxu0 0
        %2514 = vmatprep.subr.bf16.mxu0 0
        %2515 = vmatpush1.bf16.msra.mxu0 0
        %2516 = vmatprep.mubr.bf16.mxu0 0
        %2517 = vmatmul.mubr.bf16.gmra.mrb[0].mxu0 %v2476
        %v2518 = vpop.f32.mrb[0].mxu0
        %v2519 = vadd.f32 %v2449, %v2518
        %v2520 = vpop.f32.mrb[0].mxu0
        %v2521 = vpop.f32.mrb[0].mxu0
        %v2522 = vadd.f32 %v2449, %v2521
        %v2523 = vpop.f32.mrb[0].mxu0
        %2524 = vmatprep.mubr.bf16.mxu0 0
        %2525 = vmatmul.mubr.bf16.gmra.mrb[0].mxu0 %v2479
        %v2526 = vpop.f32.mrb[0].mxu0
        %v2527 = vadd.f32 %v2449, %v2526
        %v2528 = vpop.f32.mrb[0].mxu0
        %v2529 = vpop.f32.mrb[0].mxu0
        %v2530 = vadd.f32 %v2449, %v2529
        %v2531 = vpop.f32.mrb[0].mxu0
        %2532 = vmatprep.mubr.bf16.mxu0 0
        %2533 = vmatmul.mubr.bf16.gmra.mrb[0].mxu0 %v2482
        %v2534 = vpop.f32.mrb[0].mxu0
        %v2535 = vadd.f32 %v2449, %v2534
        %v2536 = vpop.f32.mrb[0].mxu0
        %v2537 = vpop.f32.mrb[0].mxu0
        %v2538 = vadd.f32 %v2449, %v2537
        %v2539 = vpop.f32.mrb[0].mxu0
        %2540 = vdwg.mxu0
        %v2541 = vadd.f32 %v1825, %v2519
        %v2542 = vadd.f32 %v1826, %v2522
        %v2543 = vadd.f32 %v1827, %v2527
        %v2544 = vadd.f32 %v1828, %v2530
        %v2545 = vadd.f32 %v1829, %v2535
        %v2546 = vadd.f32 %v1830, %v2538
        %v2547 = vld [vmem:[#allocation32] sm:$0x1]
        %v2548 = vld [vmem:[#allocation34] sm:$0x1]
        %v2549 = vsel %vm1434, %v2541, 0.0
        %2550 = vadd.xlane.f32.xlu0 %v2549
        %v2551 = vpop.xlane.xlu0 %2550
        %v2552 = vsel %vm1434, %v2542, 0.0
        %2553 = vadd.xlane.f32.xlu0 %v2552
        %v2554 = vpop.xlane.xlu0 %2553
        %v2555 = vsel %vm1434, %v2543, 0.0
        %2556 = vadd.xlane.f32.xlu0 %v2555
        %v2557 = vpop.xlane.xlu0 %2556
        %v2558 = vsel %vm1434, %v2544, 0.0
        %2559 = vadd.xlane.f32.xlu0 %v2558
        %v2560 = vpop.xlane.xlu0 %2559
        %v2561 = vsel %vm1434, %v2545, 0.0
        %2562 = vadd.xlane.f32.xlu0 %v2561
        %v2563 = vpop.xlane.xlu0 %2562
        %v2564 = vsel %vm1434, %v2546, 0.0
        %2565 = vadd.xlane.f32.xlu0 %v2564
        %v2566 = vpop.xlane.xlu0 %2565
        %v2567 = vmul.f32 %v2551, %v1453
        %v2568 = vmul.f32 %v2554, %v1453
        %v2569 = vmul.f32 %v2557, %v1453
        %v2570 = vmul.f32 %v2560, %v1453
        %v2571 = vmul.f32 %v2563, %v1453
        %v2572 = vmul.f32 %v2566, %v1453
        %v2573 = vsub.f32 %v2541, %v2567
        %v2574 = vsub.f32 %v2542, %v2568
        %v2575 = vsub.f32 %v2543, %v2569
        %v2576 = vsub.f32 %v2544, %v2570
        %v2577 = vsub.f32 %v2545, %v2571
        %v2578 = vsub.f32 %v2546, %v2572
        %v2579 = vmul.f32 %v2573, %v2573
        %v2580 = vmul.f32 %v2574, %v2574
        %v2581 = vmul.f32 %v2575, %v2575
        %v2582 = vmul.f32 %v2576, %v2576
        %v2583 = vmul.f32 %v2577, %v2577
        %v2584 = vmul.f32 %v2578, %v2578
        %v2585 = vsel %vm1434, %v2579, 0.0
        %2586 = vadd.xlane.f32.xlu0 %v2585
        %v2587 = vpop.xlane.xlu0 %2586
        %v2588 = vsel %vm1434, %v2580, 0.0
        %2589 = vadd.xlane.f32.xlu0 %v2588
        %v2590 = vpop.xlane.xlu0 %2589
        %v2591 = vsel %vm1434, %v2581, 0.0
        %2592 = vadd.xlane.f32.xlu0 %v2591
        %v2593 = vpop.xlane.xlu0 %2592
        %v2594 = vsel %vm1434, %v2582, 0.0
        %2595 = vadd.xlane.f32.xlu0 %v2594
        %v2596 = vpop.xlane.xlu0 %2595
        %v2597 = vsel %vm1434, %v2583, 0.0
        %2598 = vadd.xlane.f32.xlu0 %v2597
        %v2599 = vpop.xlane.xlu0 %2598
        %v2600 = vsel %vm1434, %v2584, 0.0
        %2601 = vadd.xlane.f32.xlu0 %v2600
        %v2602 = vpop.xlane.xlu0 %2601
        %v2603 = vmul.f32 %v2587, %v1453
        %v2604 = vmul.f32 %v2590, %v1453
        %v2605 = vmul.f32 %v2593, %v1453
        %v2606 = vmul.f32 %v2596, %v1453
        %v2607 = vmul.f32 %v2599, %v1453
        %v2608 = vmul.f32 %v2602, %v1453
        %v2609 = vadd.f32 %v2603, 1e-05
        %v2610 = vadd.f32 %v2604, 1e-05
        %v2611 = vadd.f32 %v2605, 1e-05
        %v2612 = vadd.f32 %v2606, 1e-05
        %v2613 = vadd.f32 %v2607, 1e-05
        %v2614 = vadd.f32 %v2608, 1e-05
        %v2615 = vrsqrt.pop %v2609
        %v2616 = vrsqrt.pop %v2610
        %v2617 = vrsqrt.pop %v2611
        %v2618 = vrsqrt.pop %v2612
        %v2619 = vrsqrt.pop %v2613
        %v2620 = vrsqrt.pop %v2614
        %v2621 = vmul.f32 %v2573, %v2615
        %v2622 = vmul.f32 %v2574, %v2616
        %v2623 = vmul.f32 %v2575, %v2617
        %v2624 = vmul.f32 %v2576, %v2618
        %v2625 = vmul.f32 %v2577, %v2619
        %v2626 = vmul.f32 %v2578, %v2620
        %v2628 = vlaneseq
        %v2629 = vshrl.u32 %v2628, 7
        %v2630 = vsub.s32 0, %v2629
        %v2631 = vrot.slane %v2547, %v2630
        %v2633 = vmul.f32 %v2621, %v2631
        %v2634 = vmul.f32 %v2622, %v2631
        %v2635 = vmul.f32 %v2623, %v2631
        %v2636 = vmul.f32 %v2624, %v2631
        %v2637 = vmul.f32 %v2625, %v2631
        %v2638 = vmul.f32 %v2626, %v2631
        %v2640 = vlaneseq
        %v2641 = vshrl.u32 %v2640, 7
        %v2642 = vsub.s32 0, %v2641
        %v2643 = vrot.slane %v2548, %v2642
        %v2645 = vadd.f32 %v2633, %v2643
        %v2646 = vadd.f32 %v2634, %v2643
        %v2647 = vadd.f32 %v2635, %v2643
        %v2648 = vadd.f32 %v2636, %v2643
        %v2649 = vadd.f32 %v2637, %v2643
        %v2650 = vadd.f32 %v2638, %v2643
        %v2651 = vpack.c.bf16 %v2646, %v2645
        %v2652 = vpack.c.bf16 %v2648, %v2647
        %v2653 = vpack.c.bf16 %v2650, %v2649
        %v2654 = vld [vmem:[%s47] sm:$0xff]
        %v2655 = vld [vmem:[%s47 + $0x8] sm:$0xff]
        %v2656 = vld [vmem:[%s47 + $0x10] sm:$0xff]
        %v2657 = vld [vmem:[%s47 + $0x18] sm:$0xff]
        %v2658 = vld [vmem:[%s47 + $0x20] sm:$0xff]
        %v2659 = vld [vmem:[%s47 + $0x28] sm:$0xff]
        %v2660 = vld [vmem:[%s47 + $0x30] sm:$0xff]
        %v2661 = vld [vmem:[%s47 + $0x38] sm:$0xff]
        %v2662 = vld [vmem:[%s49] sm:$0x3]
        %v2664 = vlaneseq
        %v2665 = vshrl.u32 %v2664, 7
        %v2666 = vsub.s32 0, %v2665
        %v2667 = vrot.slane %v2662, %v2666
        %v2668 = vlaneseq
        %v2669 = vshrl.u32 %v2668, 7
        %v2670 = vsub.s32 1, %v2669
        %v2671 = vrot.slane %v2662, %v2670
        %v2682 = vunpack.c.l.b16 %v2654
        %v2683 = vunpack.c.h.b16 %v2654
        %v2684 = vunpack.c.l.b16 %v2655
        %v2685 = vunpack.c.h.b16 %v2655
        %v2686 = vunpack.c.l.b16 %v2656
        %v2687 = vunpack.c.h.b16 %v2656
        %v2688 = vunpack.c.l.b16 %v2657
        %v2689 = vunpack.c.h.b16 %v2657
        %v2690 = vunpack.c.l.b16 %v2658
        %v2691 = vunpack.c.h.b16 %v2658
        %v2692 = vunpack.c.l.b16 %v2659
        %v2693 = vunpack.c.h.b16 %v2659
        %v2694 = vunpack.c.l.b16 %v2660
        %v2695 = vunpack.c.h.b16 %v2660
        %v2696 = vunpack.c.l.b16 %v2661
        %v2697 = vunpack.c.h.b16 %v2661
        %v2698 = vpack.c.b16 %v2684, %v2682
        %v2699 = vpack.c.b16 %v2685, %v2683
        %v2700 = vpack.c.b16 %v2688, %v2686
        %v2701 = vpack.c.b16 %v2689, %v2687
        %v2702 = vpack.c.b16 %v2692, %v2690
        %v2703 = vpack.c.b16 %v2693, %v2691
        %v2704 = vpack.c.b16 %v2696, %v2694
        %v2705 = vpack.c.b16 %v2697, %v2695
        %v2715 = vsel %vm1434, %v2651, 0
        %v2718 = vsel %vm1434, %v2652, 0
        %v2721 = vsel %vm1434, %v2653, 0
        %2723 = vmatprep.subr.bf16.mxu0 %v2699
        %2724 = vmatpush1.bf16.msra.mxu0 %v2698
        %2725 = vmatprep.subr.bf16.mxu0 %v2701
        %2726 = vmatpush1.bf16.msra.mxu0 %v2700
        %2727 = vmatprep.subr.bf16.mxu0 %v2703
        %2728 = vmatpush1.bf16.msra.mxu0 %v2702
        %2729 = vmatprep.subr.bf16.mxu0 %v2705
        %2730 = vmatpush1.bf16.msra.mxu0 %v2704
        %2731 = vmatprep.subr.bf16.mxu0 0
        %2732 = vmatpush1.bf16.msra.mxu0 0
        %2733 = vmatprep.subr.bf16.mxu0 0
        %2734 = vmatpush1.bf16.msra.mxu0 0
        %2735 = vmatprep.subr.bf16.mxu0 0
        %2736 = vmatpush1.bf16.msra.mxu0 0
        %2737 = vmatprep.subr.bf16.mxu0 0
        %2738 = vmatpush1.bf16.msra.mxu0 0
        %2739 = vmatprep.subr.bf16.mxu0 0
        %2740 = vmatpush1.bf16.msra.mxu0 0
        %2741 = vmatprep.subr.bf16.mxu0 0
        %2742 = vmatpush1.bf16.msra.mxu0 0
        %2743 = vmatprep.subr.bf16.mxu0 0
        %2744 = vmatpush1.bf16.msra.mxu0 0
        %2745 = vmatprep.subr.bf16.mxu0 0
        %2746 = vmatpush1.bf16.msra.mxu0 0
        %2747 = vmatprep.subr.bf16.mxu0 0
        %2748 = vmatpush1.bf16.msra.mxu0 0
        %2749 = vmatprep.subr.bf16.mxu0 0
        %2750 = vmatpush1.bf16.msra.mxu0 0
        %2751 = vmatprep.subr.bf16.mxu0 0
        %2752 = vmatpush1.bf16.msra.mxu0 0
        %2753 = vmatprep.subr.bf16.mxu0 0
        %2754 = vmatpush1.bf16.msra.mxu0 0
        %2755 = vmatprep.mubr.bf16.mxu0 0
        %2756 = vmatmul.mubr.bf16.gmra.mrb[0].mxu0 %v2715
        %v2757 = vpop.f32.mrb[0].mxu0
        %v2758 = vadd.f32 %v2667, %v2757
        %v2759 = vpop.f32.mrb[0].mxu0
        %v2760 = vadd.f32 %v2671, %v2759
        %v2761 = vpop.f32.mrb[0].mxu0
        %v2762 = vadd.f32 %v2667, %v2761
        %v2763 = vpop.f32.mrb[0].mxu0
        %v2764 = vadd.f32 %v2671, %v2763
        %2765 = vmatprep.mubr.bf16.mxu0 0
        %2766 = vmatmul.mubr.bf16.gmra.mrb[0].mxu0 %v2718
        %v2767 = vpop.f32.mrb[0].mxu0
        %v2768 = vadd.f32 %v2667, %v2767
        %v2769 = vpop.f32.mrb[0].mxu0
        %v2770 = vadd.f32 %v2671, %v2769
        %v2771 = vpop.f32.mrb[0].mxu0
        %v2772 = vadd.f32 %v2667, %v2771
        %v2773 = vpop.f32.mrb[0].mxu0
        %v2774 = vadd.f32 %v2671, %v2773
        %2775 = vmatprep.mubr.bf16.mxu0 0
        %2776 = vmatmul.mubr.bf16.gmra.mrb[0].mxu0 %v2721
        %v2777 = vpop.f32.mrb[0].mxu0
        %v2778 = vadd.f32 %v2667, %v2777
        %v2779 = vpop.f32.mrb[0].mxu0
        %v2780 = vadd.f32 %v2671, %v2779
        %v2781 = vpop.f32.mrb[0].mxu0
        %v2782 = vadd.f32 %v2667, %v2781
        %v2783 = vpop.f32.mrb[0].mxu0
        %v2784 = vadd.f32 %v2671, %v2783
        %2785 = vdwg.mxu0
        %vm2786 = vcmp.le.s32.totalorder %v1431, %v1425
        %vm2787 = vcmp.le.s32.totalorder %v1431, %v1426
        %vm2788 = vcmp.le.s32.totalorder %v1431, %v1427
        %vm2789 = vcmp.le.s32.totalorder %v1431, %v1428
        %v2790 = vsub.s32 %v1425, 8
        %v2791 = vsub.s32 %v1426, 8
        %v2792 = vsub.s32 %v1427, 8
        %v2793 = vsub.s32 %v1428, 8
        %vm2794 = vcmp.ge.s32.totalorder %v1431, %v2790
        %vm2795 = vcmp.ge.s32.totalorder %v1431, %v2791
        %vm2796 = vcmp.ge.s32.totalorder %v1431, %v2792
        %vm2797 = vcmp.ge.s32.totalorder %v1431, %v2793
        %vm2798 = vmand %vm2786, %vm2794
        %vm2799 = vmand %vm2787, %vm2795
        %vm2800 = vmand %vm2788, %vm2796
        %vm2801 = vmand %vm2789, %vm2797
        %vm2802 = vcmp.ge.s32.totalorder %v1431, 0
        %v2803 = vsel %vm2802, 1, 0
        %vm2804 = vcmp.eq.s32.totalorder %v2803, 1
        %vm2805 = vmand %vm2798, %vm2804
        %vm2806 = vmand %vm2799, %vm2804
        %vm2807 = vmand %vm2800, %vm2804
        %vm2808 = vmand %vm2801, %vm2804
        %v2809 = vstv %s1407
        %vm2810 = vcmp.lt.s32.totalorder %v1431, %v2809
        %v2811 = vsel %vm2810, 1, 0
        %vm2812 = vcmp.eq.s32.totalorder %v2811, 1
        %vm2813 = vmand %vm2805, %vm2812
        %vm2814 = vmand %vm2806, %vm2812
        %vm2815 = vmand %vm2807, %vm2812
        %vm2816 = vmand %vm2808, %vm2812
        %v2817 = vpack.c.bf16 %v2772, %v2768
        %v2818 = vpack.c.bf16 %v2782, %v2778
        %2825 = vrot.lane.b32.xlu0 %v2758, 64
        %v2826 = vpop.permute.xlu0 %2825
        %2827 = vrot.lane.b32.xlu0 %v2762, 64
        %v2828 = vpop.permute.xlu0 %2827
        %2829 = vrot.lane.b32.xlu0 %v2768, 64
        %v2830 = vpop.permute.xlu0 %2829
        %2831 = vrot.lane.b32.xlu0 %v2772, 64
        %v2832 = vpop.permute.xlu0 %2831
        %2833 = vrot.lane.b32.xlu0 %v2778, 64
        %v2834 = vpop.permute.xlu0 %2833
        %2835 = vrot.lane.b32.xlu0 %v2782, 64
        %v2836 = vpop.permute.xlu0 %2835
        %2843 = vxpose.xlu0.b32.start [1/16] %v2826, 128
        %2844 = vxpose.xlu0.b32.cont [2/16] %v2828, 128
        %2845 = vxpose.xlu0.b32.cont [3/16] %v2830, 128
        %2846 = vxpose.xlu0.b32.cont [4/16] %v2832, 128
        %2847 = vxpose.xlu0.b32.cont [5/16] %v2834, 128
        %2848 = vxpose.xlu0.b32.cont [6/16] %v2836, 128
        %2849 = vxpose.xlu0.b32.cont [7/16] 0.0, 128
        %2850 = vxpose.xlu0.b32.cont [8/16] 0.0, 128
        %2851 = vxpose.xlu0.b32.cont [9/16] 0.0, 128
        %2852 = vxpose.xlu0.b32.cont [10/16] 0.0, 128
        %2853 = vxpose.xlu0.b32.cont [11/16] 0.0, 128
        %2854 = vxpose.xlu0.b32.cont [12/16] 0.0, 128
        %2855 = vxpose.xlu0.b32.cont [13/16] 0.0, 128
        %2856 = vxpose.xlu0.b32.cont [14/16] 0.0, 128
        %2857 = vxpose.xlu0.b32.cont [15/16] 0.0, 128
        %2858 = vxpose.xlu0.b32.end [16/16] 0.0, 128
        %v2859 = vpop.trf.xlu0
        %v2860 = vpop.trf.xlu0
        %v2861 = vpop.trf.xlu0
        %v2862 = vpop.trf.xlu0
        %v2863 = vpop.trf.xlu0
        %v2864 = vpop.trf.xlu0
        %v2865 = vpop.trf.xlu0
        %v2866 = vpop.trf.xlu0
        %v2867 = vpop.trf.xlu0
        %v2868 = vpop.trf.xlu0
        %v2869 = vpop.trf.xlu0
        %v2870 = vpop.trf.xlu0
        %v2871 = vpop.trf.xlu0
        %v2872 = vpop.trf.xlu0
        %v2873 = vpop.trf.xlu0
        %v2874 = vpop.trf.xlu0
        %v2875 = vpack.c.bf16 %v2860, %v2859
        %vm2876 = vcmask 130048
        %v2878 = vsel %vm2876, %v2817, 0
        %v2881 = vsel %vm2876, %v2818, 0
        %2883 = vmatprep.subr.bf16.mxu0 0
        %2884 = vmatpush1.bf16.msra.mxu0 %v2875
        %2885 = vmatprep.subr.bf16.mxu0 0
        %2886 = vmatpush1.bf16.msra.mxu0 0
        %2887 = vmatprep.subr.bf16.mxu0 0
        %2888 = vmatpush1.bf16.msra.mxu0 0
        %2889 = vmatprep.subr.bf16.mxu0 0
        %2890 = vmatpush1.bf16.msra.mxu0 0
        %2891 = vmatprep.subr.bf16.mxu0 0
        %2892 = vmatpush1.bf16.msra.mxu0 0
        %2893 = vmatprep.subr.bf16.mxu0 0
        %2894 = vmatpush1.bf16.msra.mxu0 0
        %2895 = vmatprep.subr.bf16.mxu0 0
        %2896 = vmatpush1.bf16.msra.mxu0 0
        %2897 = vmatprep.subr.bf16.mxu0 0
        %2898 = vmatpush1.bf16.msra.mxu0 0
        %2899 = vmatprep.subr.bf16.mxu0 0
        %2900 = vmatpush1.bf16.msra.mxu0 0
        %2901 = vmatprep.subr.bf16.mxu0 0
        %2902 = vmatpush1.bf16.msra.mxu0 0
        %2903 = vmatprep.subr.bf16.mxu0 0
        %2904 = vmatpush1.bf16.msra.mxu0 0
        %2905 = vmatprep.subr.bf16.mxu0 0
        %2906 = vmatpush1.bf16.msra.mxu0 0
        %2907 = vmatprep.subr.bf16.mxu0 0
        %2908 = vmatpush1.bf16.msra.mxu0 0
        %2909 = vmatprep.subr.bf16.mxu0 0
        %2910 = vmatpush1.bf16.msra.mxu0 0
        %2911 = vmatprep.subr.bf16.mxu0 0
        %2912 = vmatpush1.bf16.msra.mxu0 0
        %2913 = vmatprep.subr.bf16.mxu0 0
        %2914 = vmatpush1.bf16.msra.mxu0 0
        %2915 = vmatprep.mubr.bf16.mxu0 0
        %2916 = vmatmul.mubr.bf16.gmra.mrb[0].mxu0 %v2878
        %v2917 = vpop.f32.mrb[0].mxu0
        %v2918 = vadd.f32 0.0, %v2917
        %v2919 = vpop.f32.mrb[0].mxu0
        %v2920 = vpop.f32.mrb[0].mxu0
        %v2921 = vadd.f32 0.0, %v2920
        %v2922 = vpop.f32.mrb[0].mxu0
        %2923 = vmatprep.mubr.bf16.mxu0 0
        %2924 = vmatmul.mubr.bf16.gmra.mrb[0].mxu0 %v2881
        %v2925 = vpop.f32.mrb[0].mxu0
        %v2926 = vadd.f32 0.0, %v2925
        %v2927 = vpop.f32.mrb[0].mxu0
        %v2928 = vpop.f32.mrb[0].mxu0
        %v2929 = vadd.f32 0.0, %v2928
        %v2930 = vpop.f32.mrb[0].mxu0
        %2931 = vdwg.mxu0
        %v2932 = vmul.f32 %v2918, 0.25
        %v2933 = vmul.f32 %v2921, 0.25
        %v2934 = vmul.f32 %v2926, 0.25
        %v2935 = vmul.f32 %v2929, 0.25
        %v2936 = vsel %vm2813, %v2932, -1e+09
        %v2937 = vsel %vm2814, %v2933, -1e+09
        %v2938 = vsel %vm2815, %v2934, -1e+09
        %v2939 = vsel %vm2816, %v2935, -1e+09
        %vm2940 = vcmask 392192
        %v2941 = vsel %vm2940, %v2936, -inf
        %2942 = vmax.xlane.f32.xlu0 %v2941
        %v2943 = vpop.xlane.xlu0 %2942
        %v2944 = vsel %vm2940, %v2937, -inf
        %2945 = vmax.xlane.f32.xlu0 %v2944
        %v2946 = vpop.xlane.xlu0 %2945
        %v2947 = vsel %vm2940, %v2938, -inf
        %2948 = vmax.xlane.f32.xlu0 %v2947
        %v2949 = vpop.xlane.xlu0 %2948
        %v2950 = vsel %vm2940, %v2939, -inf
        %2951 = vmax.xlane.f32.xlu0 %v2950
        %v2952 = vpop.xlane.xlu0 %2951
        %v2953 = vsub.f32 %v2936, %v2943
        %v2954 = vsub.f32 %v2937, %v2946
        %v2955 = vsub.f32 %v2938, %v2949
        %v2956 = vsub.f32 %v2939, %v2952
        %v2957 = vmul.f32 %v2953, 1.442695
        %v2958 = vpow.pop %v2957
        %v2959 = vmul.f32 %v2954, 1.442695
        %v2960 = vpow.pop %v2959
        %v2961 = vmul.f32 %v2955, 1.442695
        %v2962 = vpow.pop %v2961
        %v2963 = vmul.f32 %v2956, 1.442695
        %v2964 = vpow.pop %v2963
        %v2965 = vsel %vm2940, %v2958, 0.0
        %2966 = vadd.xlane.f32.xlu0 %v2965
        %v2967 = vpop.xlane.xlu0 %2966
        %v2968 = vsel %vm2940, %v2960, 0.0
        %2969 = vadd.xlane.f32.xlu0 %v2968
        %v2970 = vpop.xlane.xlu0 %2969
        %v2971 = vsel %vm2940, %v2962, 0.0
        %2972 = vadd.xlane.f32.xlu0 %v2971
        %v2973 = vpop.xlane.xlu0 %2972
        %v2974 = vsel %vm2940, %v2964, 0.0
        %2975 = vadd.xlane.f32.xlu0 %v2974
        %v2976 = vpop.xlane.xlu0 %2975
        %v2977 = vrcp.pop %v2967
        %v2978 = vrcp.pop %v2970
        %v2979 = vrcp.pop %v2973
        %v2980 = vrcp.pop %v2976
        %v2981 = vmul.f32 %v2958, %v2977
        %v2982 = vmul.f32 %v2960, %v2978
        %v2983 = vmul.f32 %v2962, %v2979
        %v2984 = vmul.f32 %v2964, %v2980
        %v2985 = vpack.c.bf16 %v2982, %v2981
        %v2986 = vpack.c.bf16 %v2984, %v2983
        %v2987 = vpack.c.bf16 %v2764, %v2760
        %v2988 = vpack.c.bf16 %v2774, %v2770
        %v2989 = vpack.c.bf16 %v2784, %v2780
        %v2991 = vsel %vm2940, %v2985, 0
        %v2994 = vsel %vm2940, %v2986, 0
        %2996 = vmatprep.subr.bf16.mxu0 0
        %2997 = vmatpush1.bf16.msra.mxu0 %v2987
        %2998 = vmatprep.subr.bf16.mxu0 0
        %2999 = vmatpush1.bf16.msra.mxu0 %v2988
        %3000 = vmatprep.subr.bf16.mxu0 0
        %3001 = vmatpush1.bf16.msra.mxu0 %v2989
        %3002 = vmatprep.subr.bf16.mxu0 0
        %3003 = vmatpush1.bf16.msra.mxu0 0
        %3004 = vmatprep.subr.bf16.mxu0 0
        %3005 = vmatpush1.bf16.msra.mxu0 0
        %3006 = vmatprep.subr.bf16.mxu0 0
        %3007 = vmatpush1.bf16.msra.mxu0 0
        %3008 = vmatprep.subr.bf16.mxu0 0
        %3009 = vmatpush1.bf16.msra.mxu0 0
        %3010 = vmatprep.subr.bf16.mxu0 0
        %3011 = vmatpush1.bf16.msra.mxu0 0
        %3012 = vmatprep.subr.bf16.mxu0 0
        %3013 = vmatpush1.bf16.msra.mxu0 0
        %3014 = vmatprep.subr.bf16.mxu0 0
        %3015 = vmatpush1.bf16.msra.mxu0 0
        %3016 = vmatprep.subr.bf16.mxu0 0
        %3017 = vmatpush1.bf16.msra.mxu0 0
        %3018 = vmatprep.subr.bf16.mxu0 0
        %3019 = vmatpush1.bf16.msra.mxu0 0
        %3020 = vmatprep.subr.bf16.mxu0 0
        %3021 = vmatpush1.bf16.msra.mxu0 0
        %3022 = vmatprep.subr.bf16.mxu0 0
        %3023 = vmatpush1.bf16.msra.mxu0 0
        %3024 = vmatprep.subr.bf16.mxu0 0
        %3025 = vmatpush1.bf16.msra.mxu0 0
        %3026 = vmatprep.subr.bf16.mxu0 0
        %3027 = vmatpush1.bf16.msra.mxu0 0
        %3028 = vmatprep.mubr.bf16.mxu0 0
        %3029 = vmatmul.mubr.bf16.gmra.mrb[0].mxu0 %v2991
        %v3030 = vpop.f32.mrb[0].mxu0
        %v3031 = vadd.f32 0.0, %v3030
        %v3032 = vpop.f32.mrb[0].mxu0
        %v3033 = vpop.f32.mrb[0].mxu0
        %v3034 = vadd.f32 0.0, %v3033
        %v3035 = vpop.f32.mrb[0].mxu0
        %3036 = vmatprep.mubr.bf16.mxu0 0
        %3037 = vmatmul.mubr.bf16.gmra.mrb[0].mxu0 %v2994
        %v3038 = vpop.f32.mrb[0].mxu0
        %v3039 = vadd.f32 0.0, %v3038
        %v3040 = vpop.f32.mrb[0].mxu0
        %v3041 = vpop.f32.mrb[0].mxu0
        %v3042 = vadd.f32 0.0, %v3041
        %v3043 = vpop.f32.mrb[0].mxu0
        %3044 = vdwg.mxu0
        %3045 = vst.msk [vmem:[#allocation2] sm:$0xff] %vm2876, %v3031
        %3046 = vst.msk [vmem:[#allocation2 + $0x8] sm:$0xff] %vm2876, %v3034
        %3047 = vst.msk [vmem:[#allocation2 + $0x10] sm:$0xff] %vm2876, %v3039
        %3048 = vst.msk [vmem:[#allocation2 + $0x18] sm:$0xff] %vm2876, %v3042
        %3049 = vrot.lane.b32.xlu0 %v2758, 48
        %v3050 = vpop.permute.xlu0 %3049
        %3051 = vrot.lane.b32.xlu0 %v2762, 48
        %v3052 = vpop.permute.xlu0 %3051
        %3053 = vrot.lane.b32.xlu0 %v2768, 48
        %v3054 = vpop.permute.xlu0 %3053
        %3055 = vrot.lane.b32.xlu0 %v2772, 48
        %v3056 = vpop.permute.xlu0 %3055
        %3057 = vrot.lane.b32.xlu0 %v2778, 48
        %v3058 = vpop.permute.xlu0 %3057
        %3059 = vrot.lane.b32.xlu0 %v2782, 48
        %v3060 = vpop.permute.xlu0 %3059
        %3067 = vxpose.xlu0.b32.start [1/16] %v3050, 128
        %3068 = vxpose.xlu0.b32.cont [2/16] %v3052, 128
        %3069 = vxpose.xlu0.b32.cont [3/16] %v3054, 128
        %3070 = vxpose.xlu0.b32.cont [4/16] %v3056, 128
        %3071 = vxpose.xlu0.b32.cont [5/16] %v3058, 128
        %3072 = vxpose.xlu0.b32.cont [6/16] %v3060, 128
        %3073 = vxpose.xlu0.b32.cont [7/16] 0.0, 128
        %3074 = vxpose.xlu0.b32.cont [8/16] 0.0, 128
        %3075 = vxpose.xlu0.b32.cont [9/16] 0.0, 128
        %3076 = vxpose.xlu0.b32.cont [10/16] 0.0, 128
        %3077 = vxpose.xlu0.b32.cont [11/16] 0.0, 128
        %3078 = vxpose.xlu0.b32.cont [12/16] 0.0, 128
        %3079 = vxpose.xlu0.b32.cont [13/16] 0.0, 128
        %3080 = vxpose.xlu0.b32.cont [14/16] 0.0, 128
        %3081 = vxpose.xlu0.b32.cont [15/16] 0.0, 128
        %3082 = vxpose.xlu0.b32.end [16/16] 0.0, 128
        %v3083 = vpop.trf.xlu0
        %v3084 = vpop.trf.xlu0
        %v3085 = vpop.trf.xlu0
        %v3086 = vpop.trf.xlu0
        %v3087 = vpop.trf.xlu0
        %v3088 = vpop.trf.xlu0
        %v3089 = vpop.trf.xlu0
        %v3090 = vpop.trf.xlu0
        %v3091 = vpop.trf.xlu0
        %v3092 = vpop.trf.xlu0
        %v3093 = vpop.trf.xlu0
        %v3094 = vpop.trf.xlu0
        %v3095 = vpop.trf.xlu0
        %v3096 = vpop.trf.xlu0
        %v3097 = vpop.trf.xlu0
        %v3098 = vpop.trf.xlu0
        %v3099 = vpack.c.bf16 %v3084, %v3083
        %3102 = vrot.lane.b32.xlu0 %v2817, 112
        %v3103 = vpop.permute.xlu0 %3102
        %3104 = vrot.lane.b32.xlu0 %v2818, 112
        %v3105 = vpop.permute.xlu0 %3104
        %v3107 = vsel %vm2876, %v3103, 0
        %v3110 = vsel %vm2876, %v3105, 0
        %3112 = vmatprep.subr.bf16.mxu0 0
        %3113 = vmatpush1.bf16.msra.mxu0 %v3099
        %3114 = vmatprep.subr.bf16.mxu0 0
        %3115 = vmatpush1.bf16.msra.mxu0 0
        %3116 = vmatprep.subr.bf16.mxu0 0
        %3117 = vmatpush1.bf16.msra.mxu0 0
        %3118 = vmatprep.subr.bf16.mxu0 0
        %3119 = vmatpush1.bf16.msra.mxu0 0
        %3120 = vmatprep.subr.bf16.mxu0 0
        %3121 = vmatpush1.bf16.msra.mxu0 0
        %3122 = vmatprep.subr.bf16.mxu0 0
        %3123 = vmatpush1.bf16.msra.mxu0 0
        %3124 = vmatprep.subr.bf16.mxu0 0
        %3125 = vmatpush1.bf16.msra.mxu0 0
        %3126 = vmatprep.subr.bf16.mxu0 0
        %3127 = vmatpush1.bf16.msra.mxu0 0
        %3128 = vmatprep.subr.bf16.mxu0 0
        %3129 = vmatpush1.bf16.msra.mxu0 0
        %3130 = vmatprep.subr.bf16.mxu0 0
        %3131 = vmatpush1.bf16.msra.mxu0 0
        %3132 = vmatprep.subr.bf16.mxu0 0
        %3133 = vmatpush1.bf16.msra.mxu0 0
        %3134 = vmatprep.subr.bf16.mxu0 0
        %3135 = vmatpush1.bf16.msra.mxu0 0
        %3136 = vmatprep.subr.bf16.mxu0 0
        %3137 = vmatpush1.bf16.msra.mxu0 0
        %3138 = vmatprep.subr.bf16.mxu0 0
        %3139 = vmatpush1.bf16.msra.mxu0 0
        %3140 = vmatprep.subr.bf16.mxu0 0
        %3141 = vmatpush1.bf16.msra.mxu0 0
        %3142 = vmatprep.subr.bf16.mxu0 0
        %3143 = vmatpush1.bf16.msra.mxu0 0
        %3144 = vmatprep.mubr.bf16.mxu0 0
        %3145 = vmatmul.mubr.bf16.gmra.mrb[0].mxu0 %v3107
        %v3146 = vpop.f32.mrb[0].mxu0
        %v3147 = vadd.f32 0.0, %v3146
        %v3148 = vpop.f32.mrb[0].mxu0
        %v3149 = vpop.f32.mrb[0].mxu0
        %v3150 = vadd.f32 0.0, %v3149
        %v3151 = vpop.f32.mrb[0].mxu0
        %3152 = vmatprep.mubr.bf16.mxu0 0
        %3153 = vmatmul.mubr.bf16.gmra.mrb[0].mxu0 %v3110
        %v3154 = vpop.f32.mrb[0].mxu0
        %v3155 = vadd.f32 0.0, %v3154
        %v3156 = vpop.f32.mrb[0].mxu0
        %v3157 = vpop.f32.mrb[0].mxu0
        %v3158 = vadd.f32 0.0, %v3157
        %v3159 = vpop.f32.mrb[0].mxu0
        %3160 = vdwg.mxu0
        %v3161 = vmul.f32 %v3147, 0.25
        %v3162 = vmul.f32 %v3150, 0.25
        %v3163 = vmul.f32 %v3155, 0.25
        %v3164 = vmul.f32 %v3158, 0.25
        %v3165 = vsel %vm2813, %v3161, -1e+09
        %v3166 = vsel %vm2814, %v3162, -1e+09
        %v3167 = vsel %vm2815, %v3163, -1e+09
        %v3168 = vsel %vm2816, %v3164, -1e+09
        %v3169 = vsel %vm2940, %v3165, -inf
        %3170 = vmax.xlane.f32.xlu0 %v3169
        %v3171 = vpop.xlane.xlu0 %3170
        %v3172 = vsel %vm2940, %v3166, -inf
        %3173 = vmax.xlane.f32.xlu0 %v3172
        %v3174 = vpop.xlane.xlu0 %3173
        %v3175 = vsel %vm2940, %v3167, -inf
        %3176 = vmax.xlane.f32.xlu0 %v3175
        %v3177 = vpop.xlane.xlu0 %3176
        %v3178 = vsel %vm2940, %v3168, -inf
        %3179 = vmax.xlane.f32.xlu0 %v3178
        %v3180 = vpop.xlane.xlu0 %3179
        %v3181 = vsub.f32 %v3165, %v3171
        %v3182 = vsub.f32 %v3166, %v3174
        %v3183 = vsub.f32 %v3167, %v3177
        %v3184 = vsub.f32 %v3168, %v3180
        %v3185 = vmul.f32 %v3181, 1.442695
        %v3186 = vpow.pop %v3185
        %v3187 = vmul.f32 %v3182, 1.442695
        %v3188 = vpow.pop %v3187
        %v3189 = vmul.f32 %v3183, 1.442695
        %v3190 = vpow.pop %v3189
        %v3191 = vmul.f32 %v3184, 1.442695
        %v3192 = vpow.pop %v3191
        %v3193 = vsel %vm2940, %v3186, 0.0
        %3194 = vadd.xlane.f32.xlu0 %v3193
        %v3195 = vpop.xlane.xlu0 %3194
        %v3196 = vsel %vm2940, %v3188, 0.0
        %3197 = vadd.xlane.f32.xlu0 %v3196
        %v3198 = vpop.xlane.xlu0 %3197
        %v3199 = vsel %vm2940, %v3190, 0.0
        %3200 = vadd.xlane.f32.xlu0 %v3199
        %v3201 = vpop.xlane.xlu0 %3200
        %v3202 = vsel %vm2940, %v3192, 0.0
        %3203 = vadd.xlane.f32.xlu0 %v3202
        %v3204 = vpop.xlane.xlu0 %3203
        %v3205 = vrcp.pop %v3195
        %v3206 = vrcp.pop %v3198
        %v3207 = vrcp.pop %v3201
        %v3208 = vrcp.pop %v3204
        %v3209 = vmul.f32 %v3186, %v3205
        %v3210 = vmul.f32 %v3188, %v3206
        %v3211 = vmul.f32 %v3190, %v3207
        %v3212 = vmul.f32 %v3192, %v3208
        %v3213 = vpack.c.bf16 %v3210, %v3209
        %v3214 = vpack.c.bf16 %v3212, %v3211
        %3218 = vrot.lane.b32.xlu0 %v2987, 112
        %v3219 = vpop.permute.xlu0 %3218
        %3220 = vrot.lane.b32.xlu0 %v2988, 112
        %v3221 = vpop.permute.xlu0 %3220
        %3222 = vrot.lane.b32.xlu0 %v2989, 112
        %v3223 = vpop.permute.xlu0 %3222
        %v3228 = vsel %vm2940, %v3213, 0
        %v3231 = vsel %vm2940, %v3214, 0
        %3233 = vmatprep.subr.bf16.mxu0 0
        %3234 = vmatpush1.bf16.msra.mxu0 %v3219
        %3235 = vmatprep.subr.bf16.mxu0 0
        %3236 = vmatpush1.bf16.msra.mxu0 %v3221
        %3237 = vmatprep.subr.bf16.mxu0 0
        %3238 = vmatpush1.bf16.msra.mxu0 %v3223
        %3239 = vmatprep.subr.bf16.mxu0 0
        %3240 = vmatpush1.bf16.msra.mxu0 0
        %3241 = vmatprep.subr.bf16.mxu0 0
        %3242 = vmatpush1.bf16.msra.mxu0 0
        %3243 = vmatprep.subr.bf16.mxu0 0
        %3244 = vmatpush1.bf16.msra.mxu0 0
        %3245 = vmatprep.subr.bf16.mxu0 0
        %3246 = vmatpush1.bf16.msra.mxu0 0
        %3247 = vmatprep.subr.bf16.mxu0 0
        %3248 = vmatpush1.bf16.msra.mxu0 0
        %3249 = vmatprep.subr.bf16.mxu0 0
        %3250 = vmatpush1.bf16.msra.mxu0 0
        %3251 = vmatprep.subr.bf16.mxu0 0
        %3252 = vmatpush1.bf16.msra.mxu0 0
        %3253 = vmatprep.subr.bf16.mxu0 0
        %3254 = vmatpush1.bf16.msra.mxu0 0
        %3255 = vmatprep.subr.bf16.mxu0 0
        %3256 = vmatpush1.bf16.msra.mxu0 0
        %3257 = vmatprep.subr.bf16.mxu0 0
        %3258 = vmatpush1.bf16.msra.mxu0 0
        %3259 = vmatprep.subr.bf16.mxu0 0
        %3260 = vmatpush1.bf16.msra.mxu0 0
        %3261 = vmatprep.subr.bf16.mxu0 0
        %3262 = vmatpush1.bf16.msra.mxu0 0
        %3263 = vmatprep.subr.bf16.mxu0 0
        %3264 = vmatpush1.bf16.msra.mxu0 0
        %3265 = vmatprep.mubr.bf16.mxu0 0
        %3266 = vmatmul.mubr.bf16.gmra.mrb[0].mxu0 %v3228
        %v3267 = vpop.f32.mrb[0].mxu0
        %v3268 = vadd.f32 0.0, %v3267
        %v3269 = vpop.f32.mrb[0].mxu0
        %v3270 = vpop.f32.mrb[0].mxu0
        %v3271 = vadd.f32 0.0, %v3270
        %v3272 = vpop.f32.mrb[0].mxu0
        %3273 = vmatprep.mubr.bf16.mxu0 0
        %3274 = vmatmul.mubr.bf16.gmra.mrb[0].mxu0 %v3231
        %v3275 = vpop.f32.mrb[0].mxu0
        %v3276 = vadd.f32 0.0, %v3275
        %v3277 = vpop.f32.mrb[0].mxu0
        %v3278 = vpop.f32.mrb[0].mxu0
        %v3279 = vadd.f32 0.0, %v3278
        %v3280 = vpop.f32.mrb[0].mxu0
        %3281 = vdwg.mxu0
        %3286 = vrot.lane.b32.xlu0 %v3268, 16
        %v3287 = vpop.permute.xlu0 %3286
        %3288 = vrot.lane.b32.xlu0 %v3271, 16
        %v3289 = vpop.permute.xlu0 %3288
        %3290 = vrot.lane.b32.xlu0 %v3276, 16
        %v3291 = vpop.permute.xlu0 %3290
        %3292 = vrot.lane.b32.xlu0 %v3279, 16
        %v3293 = vpop.permute.xlu0 %3292
        %vm3298 = vcmask 261248
        %3299 = vst.msk [vmem:[#allocation2] sm:$0xff] %vm3298, %v3287
        %3300 = vst.msk [vmem:[#allocation2 + $0x8] sm:$0xff] %vm3298, %v3289
        %3301 = vst.msk [vmem:[#allocation2 + $0x10] sm:$0xff] %vm3298, %v3291
        %3302 = vst.msk [vmem:[#allocation2 + $0x18] sm:$0xff] %vm3298, %v3293
        %3303 = vrot.lane.b32.xlu0 %v2758, 32
        %v3304 = vpop.permute.xlu0 %3303
        %3305 = vrot.lane.b32.xlu0 %v2762, 32
        %v3306 = vpop.permute.xlu0 %3305
        %3307 = vrot.lane.b32.xlu0 %v2768, 32
        %v3308 = vpop.permute.xlu0 %3307
        %3309 = vrot.lane.b32.xlu0 %v2772, 32
        %v3310 = vpop.permute.xlu0 %3309
        %3311 = vrot.lane.b32.xlu0 %v2778, 32
        %v3312 = vpop.permute.xlu0 %3311
        %3313 = vrot.lane.b32.xlu0 %v2782, 32
        %v3314 = vpop.permute.xlu0 %3313
        %3321 = vxpose.xlu0.b32.start [1/16] %v3304, 128
        %3322 = vxpose.xlu0.b32.cont [2/16] %v3306, 128
        %3323 = vxpose.xlu0.b32.cont [3/16] %v3308, 128
        %3324 = vxpose.xlu0.b32.cont [4/16] %v3310, 128
        %3325 = vxpose.xlu0.b32.cont [5/16] %v3312, 128
        %3326 = vxpose.xlu0.b32.cont [6/16] %v3314, 128
        %3327 = vxpose.xlu0.b32.cont [7/16] 0.0, 128
        %3328 = vxpose.xlu0.b32.cont [8/16] 0.0, 128
        %3329 = vxpose.xlu0.b32.cont [9/16] 0.0, 128
        %3330 = vxpose.xlu0.b32.cont [10/16] 0.0, 128
        %3331 = vxpose.xlu0.b32.cont [11/16] 0.0, 128
        %3332 = vxpose.xlu0.b32.cont [12/16] 0.0, 128
        %3333 = vxpose.xlu0.b32.cont [13/16] 0.0, 128
        %3334 = vxpose.xlu0.b32.cont [14/16] 0.0, 128
        %3335 = vxpose.xlu0.b32.cont [15/16] 0.0, 128
        %3336 = vxpose.xlu0.b32.end [16/16] 0.0, 128
        %v3337 = vpop.trf.xlu0
        %v3338 = vpop.trf.xlu0
        %v3339 = vpop.trf.xlu0
        %v3340 = vpop.trf.xlu0
        %v3341 = vpop.trf.xlu0
        %v3342 = vpop.trf.xlu0
        %v3343 = vpop.trf.xlu0
        %v3344 = vpop.trf.xlu0
        %v3345 = vpop.trf.xlu0
        %v3346 = vpop.trf.xlu0
        %v3347 = vpop.trf.xlu0
        %v3348 = vpop.trf.xlu0
        %v3349 = vpop.trf.xlu0
        %v3350 = vpop.trf.xlu0
        %v3351 = vpop.trf.xlu0
        %v3352 = vpop.trf.xlu0
        %v3353 = vpack.c.bf16 %v3338, %v3337
        %3354 = vrot.lane.b32.xlu0 %v2817, 96
        %v3355 = vpop.permute.xlu0 %3354
        %3356 = vrot.lane.b32.xlu0 %v2818, 96
        %v3357 = vpop.permute.xlu0 %3356
        %v3359 = vsel %vm2876, %v3355, 0
        %v3362 = vsel %vm2876, %v3357, 0
        %3364 = vmatprep.subr.bf16.mxu0 0
        %3365 = vmatpush1.bf16.msra.mxu0 %v3353
        %3366 = vmatprep.subr.bf16.mxu0 0
        %3367 = vmatpush1.bf16.msra.mxu0 0
        %3368 = vmatprep.subr.bf16.mxu0 0
        %3369 = vmatpush1.bf16.msra.mxu0 0
        %3370 = vmatprep.subr.bf16.mxu0 0
        %3371 = vmatpush1.bf16.msra.mxu0 0
        %3372 = vmatprep.subr.bf16.mxu0 0
        %3373 = vmatpush1.bf16.msra.mxu0 0
        %3374 = vmatprep.subr.bf16.mxu0 0
        %3375 = vmatpush1.bf16.msra.mxu0 0
        %3376 = vmatprep.subr.bf16.mxu0 0
        %3377 = vmatpush1.bf16.msra.mxu0 0
        %3378 = vmatprep.subr.bf16.mxu0 0
        %3379 = vmatpush1.bf16.msra.mxu0 0
        %3380 = vmatprep.subr.bf16.mxu0 0
        %3381 = vmatpush1.bf16.msra.mxu0 0
        %3382 = vmatprep.subr.bf16.mxu0 0
        %3383 = vmatpush1.bf16.msra.mxu0 0
        %3384 = vmatprep.subr.bf16.mxu0 0
        %3385 = vmatpush1.bf16.msra.mxu0 0
        %3386 = vmatprep.subr.bf16.mxu0 0
        %3387 = vmatpush1.bf16.msra.mxu0 0
        %3388 = vmatprep.subr.bf16.mxu0 0
        %3389 = vmatpush1.bf16.msra.mxu0 0
        %3390 = vmatprep.subr.bf16.mxu0 0
        %3391 = vmatpush1.bf16.msra.mxu0 0
        %3392 = vmatprep.subr.bf16.mxu0 0
        %3393 = vmatpush1.bf16.msra.mxu0 0
        %3394 = vmatprep.subr.bf16.mxu0 0
        %3395 = vmatpush1.bf16.msra.mxu0 0
        %3396 = vmatprep.mubr.bf16.mxu0 0
        %3397 = vmatmul.mubr.bf16.gmra.mrb[0].mxu0 %v3359
        %v3398 = vpop.f32.mrb[0].mxu0
        %v3399 = vadd.f32 0.0, %v3398
        %v3400 = vpop.f32.mrb[0].mxu0
        %v3401 = vpop.f32.mrb[0].mxu0
        %v3402 = vadd.f32 0.0, %v3401
        %v3403 = vpop.f32.mrb[0].mxu0
        %3404 = vmatprep.mubr.bf16.mxu0 0
        %3405 = vmatmul.mubr.bf16.gmra.mrb[0].mxu0 %v3362
        %v3406 = vpop.f32.mrb[0].mxu0
        %v3407 = vadd.f32 0.0, %v3406
        %v3408 = vpop.f32.mrb[0].mxu0
        %v3409 = vpop.f32.mrb[0].mxu0
        %v3410 = vadd.f32 0.0, %v3409
        %v3411 = vpop.f32.mrb[0].mxu0
        %3412 = vdwg.mxu0
        %v3413 = vmul.f32 %v3399, 0.25
        %v3414 = vmul.f32 %v3402, 0.25
        %v3415 = vmul.f32 %v3407, 0.25
        %v3416 = vmul.f32 %v3410, 0.25
        %v3417 = vsel %vm2813, %v3413, -1e+09
        %v3418 = vsel %vm2814, %v3414, -1e+09
        %v3419 = vsel %vm2815, %v3415, -1e+09
        %v3420 = vsel %vm2816, %v3416, -1e+09
        %v3421 = vsel %vm2940, %v3417, -inf
        %3422 = vmax.xlane.f32.xlu0 %v3421
        %v3423 = vpop.xlane.xlu0 %3422
        %v3424 = vsel %vm2940, %v3418, -inf
        %3425 = vmax.xlane.f32.xlu0 %v3424
        %v3426 = vpop.xlane.xlu0 %3425
        %v3427 = vsel %vm2940, %v3419, -inf
        %3428 = vmax.xlane.f32.xlu0 %v3427
        %v3429 = vpop.xlane.xlu0 %3428
        %v3430 = vsel %vm2940, %v3420, -inf
        %3431 = vmax.xlane.f32.xlu0 %v3430
        %v3432 = vpop.xlane.xlu0 %3431
        %v3433 = vsub.f32 %v3417, %v3423
        %v3434 = vsub.f32 %v3418, %v3426
        %v3435 = vsub.f32 %v3419, %v3429
        %v3436 = vsub.f32 %v3420, %v3432
        %v3437 = vmul.f32 %v3433, 1.442695
        %v3438 = vpow.pop %v3437
        %v3439 = vmul.f32 %v3434, 1.442695
        %v3440 = vpow.pop %v3439
        %v3441 = vmul.f32 %v3435, 1.442695
        %v3442 = vpow.pop %v3441
        %v3443 = vmul.f32 %v3436, 1.442695
        %v3444 = vpow.pop %v3443
        %v3445 = vsel %vm2940, %v3438, 0.0
        %3446 = vadd.xlane.f32.xlu0 %v3445
        %v3447 = vpop.xlane.xlu0 %3446
        %v3448 = vsel %vm2940, %v3440, 0.0
        %3449 = vadd.xlane.f32.xlu0 %v3448
        %v3450 = vpop.xlane.xlu0 %3449
        %v3451 = vsel %vm2940, %v3442, 0.0
        %3452 = vadd.xlane.f32.xlu0 %v3451
        %v3453 = vpop.xlane.xlu0 %3452
        %v3454 = vsel %vm2940, %v3444, 0.0
        %3455 = vadd.xlane.f32.xlu0 %v3454
        %v3456 = vpop.xlane.xlu0 %3455
        %v3457 = vrcp.pop %v3447
        %v3458 = vrcp.pop %v3450
        %v3459 = vrcp.pop %v3453
        %v3460 = vrcp.pop %v3456
        %v3461 = vmul.f32 %v3438, %v3457
        %v3462 = vmul.f32 %v3440, %v3458
        %v3463 = vmul.f32 %v3442, %v3459
        %v3464 = vmul.f32 %v3444, %v3460
        %v3465 = vpack.c.bf16 %v3462, %v3461
        %v3466 = vpack.c.bf16 %v3464, %v3463
        %3467 = vrot.lane.b32.xlu0 %v2987, 96
        %v3468 = vpop.permute.xlu0 %3467
        %3469 = vrot.lane.b32.xlu0 %v2988, 96
        %v3470 = vpop.permute.xlu0 %3469
        %3471 = vrot.lane.b32.xlu0 %v2989, 96
        %v3472 = vpop.permute.xlu0 %3471
        %v3477 = vsel %vm2940, %v3465, 0
        %v3480 = vsel %vm2940, %v3466, 0
        %3482 = vmatprep.subr.bf16.mxu0 0
        %3483 = vmatpush1.bf16.msra.mxu0 %v3468
        %3484 = vmatprep.subr.bf16.mxu0 0
        %3485 = vmatpush1.bf16.msra.mxu0 %v3470
        %3486 = vmatprep.subr.bf16.mxu0 0
        %3487 = vmatpush1.bf16.msra.mxu0 %v3472
        %3488 = vmatprep.subr.bf16.mxu0 0
        %3489 = vmatpush1.bf16.msra.mxu0 0
        %3490 = vmatprep.subr.bf16.mxu0 0
        %3491 = vmatpush1.bf16.msra.mxu0 0
        %3492 = vmatprep.subr.bf16.mxu0 0
        %3493 = vmatpush1.bf16.msra.mxu0 0
        %3494 = vmatprep.subr.bf16.mxu0 0
        %3495 = vmatpush1.bf16.msra.mxu0 0
        %3496 = vmatprep.subr.bf16.mxu0 0
        %3497 = vmatpush1.bf16.msra.mxu0 0
        %3498 = vmatprep.subr.bf16.mxu0 0
        %3499 = vmatpush1.bf16.msra.mxu0 0
        %3500 = vmatprep.subr.bf16.mxu0 0
        %3501 = vmatpush1.bf16.msra.mxu0 0
        %3502 = vmatprep.subr.bf16.mxu0 0
        %3503 = vmatpush1.bf16.msra.mxu0 0
        %3504 = vmatprep.subr.bf16.mxu0 0
        %3505 = vmatpush1.bf16.msra.mxu0 0
        %3506 = vmatprep.subr.bf16.mxu0 0
        %3507 = vmatpush1.bf16.msra.mxu0 0
        %3508 = vmatprep.subr.bf16.mxu0 0
        %3509 = vmatpush1.bf16.msra.mxu0 0
        %3510 = vmatprep.subr.bf16.mxu0 0
        %3511 = vmatpush1.bf16.msra.mxu0 0
        %3512 = vmatprep.subr.bf16.mxu0 0
        %3513 = vmatpush1.bf16.msra.mxu0 0
        %3514 = vmatprep.mubr.bf16.mxu0 0
        %3515 = vmatmul.mubr.bf16.gmra.mrb[0].mxu0 %v3477
        %v3516 = vpop.f32.mrb[0].mxu0
        %v3517 = vadd.f32 0.0, %v3516
        %v3518 = vpop.f32.mrb[0].mxu0
        %v3519 = vpop.f32.mrb[0].mxu0
        %v3520 = vadd.f32 0.0, %v3519
        %v3521 = vpop.f32.mrb[0].mxu0
        %3522 = vmatprep.mubr.bf16.mxu0 0
        %3523 = vmatmul.mubr.bf16.gmra.mrb[0].mxu0 %v3480
        %v3524 = vpop.f32.mrb[0].mxu0
        %v3525 = vadd.f32 0.0, %v3524
        %v3526 = vpop.f32.mrb[0].mxu0
        %v3527 = vpop.f32.mrb[0].mxu0
        %v3528 = vadd.f32 0.0, %v3527
        %v3529 = vpop.f32.mrb[0].mxu0
        %3530 = vdwg.mxu0
        %3535 = vrot.lane.b32.xlu0 %v3517, 32
        %v3536 = vpop.permute.xlu0 %3535
        %3537 = vrot.lane.b32.xlu0 %v3520, 32
        %v3538 = vpop.permute.xlu0 %3537
        %3539 = vrot.lane.b32.xlu0 %v3525, 32
        %v3540 = vpop.permute.xlu0 %3539
        %3541 = vrot.lane.b32.xlu0 %v3528, 32
        %v3542 = vpop.permute.xlu0 %3541
        %vm3547 = vcmask 392448
        %3548 = vst.msk [vmem:[#allocation2] sm:$0xff] %vm3547, %v3536
        %3549 = vst.msk [vmem:[#allocation2 + $0x8] sm:$0xff] %vm3547, %v3538
        %3550 = vst.msk [vmem:[#allocation2 + $0x10] sm:$0xff] %vm3547, %v3540
        %3551 = vst.msk [vmem:[#allocation2 + $0x18] sm:$0xff] %vm3547, %v3542
        %3552 = vrot.lane.b32.xlu0 %v2758, 16
        %v3553 = vpop.permute.xlu0 %3552
        %3554 = vrot.lane.b32.xlu0 %v2762, 16
        %v3555 = vpop.permute.xlu0 %3554
        %3556 = vrot.lane.b32.xlu0 %v2768, 16
        %v3557 = vpop.permute.xlu0 %3556
        %3558 = vrot.lane.b32.xlu0 %v2772, 16
        %v3559 = vpop.permute.xlu0 %3558
        %3560 = vrot.lane.b32.xlu0 %v2778, 16
        %v3561 = vpop.permute.xlu0 %3560
        %3562 = vrot.lane.b32.xlu0 %v2782, 16
        %v3563 = vpop.permute.xlu0 %3562
        %3570 = vxpose.xlu0.b32.start [1/16] %v3553, 128
        %3571 = vxpose.xlu0.b32.cont [2/16] %v3555, 128
        %3572 = vxpose.xlu0.b32.cont [3/16] %v3557, 128
        %3573 = vxpose.xlu0.b32.cont [4/16] %v3559, 128
        %3574 = vxpose.xlu0.b32.cont [5/16] %v3561, 128
        %3575 = vxpose.xlu0.b32.cont [6/16] %v3563, 128
        %3576 = vxpose.xlu0.b32.cont [7/16] 0.0, 128
        %3577 = vxpose.xlu0.b32.cont [8/16] 0.0, 128
        %3578 = vxpose.xlu0.b32.cont [9/16] 0.0, 128
        %3579 = vxpose.xlu0.b32.cont [10/16] 0.0, 128
        %3580 = vxpose.xlu0.b32.cont [11/16] 0.0, 128
        %3581 = vxpose.xlu0.b32.cont [12/16] 0.0, 128
        %3582 = vxpose.xlu0.b32.cont [13/16] 0.0, 128
        %3583 = vxpose.xlu0.b32.cont [14/16] 0.0, 128
        %3584 = vxpose.xlu0.b32.cont [15/16] 0.0, 128
        %3585 = vxpose.xlu0.b32.end [16/16] 0.0, 128
        %v3586 = vpop.trf.xlu0
        %v3587 = vpop.trf.xlu0
        %v3588 = vpop.trf.xlu0
        %v3589 = vpop.trf.xlu0
        %v3590 = vpop.trf.xlu0
        %v3591 = vpop.trf.xlu0
        %v3592 = vpop.trf.xlu0
        %v3593 = vpop.trf.xlu0
        %v3594 = vpop.trf.xlu0
        %v3595 = vpop.trf.xlu0
        %v3596 = vpop.trf.xlu0
        %v3597 = vpop.trf.xlu0
        %v3598 = vpop.trf.xlu0
        %v3599 = vpop.trf.xlu0
        %v3600 = vpop.trf.xlu0
        %v3601 = vpop.trf.xlu0
        %v3602 = vpack.c.bf16 %v3587, %v3586
        %3603 = vrot.lane.b32.xlu0 %v2817, 80
        %v3604 = vpop.permute.xlu0 %3603
        %3605 = vrot.lane.b32.xlu0 %v2818, 80
        %v3606 = vpop.permute.xlu0 %3605
        %v3608 = vsel %vm2876, %v3604, 0
        %v3611 = vsel %vm2876, %v3606, 0
        %3613 = vmatprep.subr.bf16.mxu0 0
        %3614 = vmatpush1.bf16.msra.mxu0 %v3602
        %3615 = vmatprep.subr.bf16.mxu0 0
        %3616 = vmatpush1.bf16.msra.mxu0 0
        %3617 = vmatprep.subr.bf16.mxu0 0
        %3618 = vmatpush1.bf16.msra.mxu0 0
        %3619 = vmatprep.subr.bf16.mxu0 0
        %3620 = vmatpush1.bf16.msra.mxu0 0
        %3621 = vmatprep.subr.bf16.mxu0 0
        %3622 = vmatpush1.bf16.msra.mxu0 0
        %3623 = vmatprep.subr.bf16.mxu0 0
        %3624 = vmatpush1.bf16.msra.mxu0 0
        %3625 = vmatprep.subr.bf16.mxu0 0
        %3626 = vmatpush1.bf16.msra.mxu0 0
        %3627 = vmatprep.subr.bf16.mxu0 0
        %3628 = vmatpush1.bf16.msra.mxu0 0
        %3629 = vmatprep.subr.bf16.mxu0 0
        %3630 = vmatpush1.bf16.msra.mxu0 0
        %3631 = vmatprep.subr.bf16.mxu0 0
        %3632 = vmatpush1.bf16.msra.mxu0 0
        %3633 = vmatprep.subr.bf16.mxu0 0
        %3634 = vmatpush1.bf16.msra.mxu0 0
        %3635 = vmatprep.subr.bf16.mxu0 0
        %3636 = vmatpush1.bf16.msra.mxu0 0
        %3637 = vmatprep.subr.bf16.mxu0 0
        %3638 = vmatpush1.bf16.msra.mxu0 0
        %3639 = vmatprep.subr.bf16.mxu0 0
        %3640 = vmatpush1.bf16.msra.mxu0 0
        %3641 = vmatprep.subr.bf16.mxu0 0
        %3642 = vmatpush1.bf16.msra.mxu0 0
        %3643 = vmatprep.subr.bf16.mxu0 0
        %3644 = vmatpush1.bf16.msra.mxu0 0
        %3645 = vmatprep.mubr.bf16.mxu0 0
        %3646 = vmatmul.mubr.bf16.gmra.mrb[0].mxu0 %v3608
        %v3647 = vpop.f32.mrb[0].mxu0
        %v3648 = vadd.f32 0.0, %v3647
        %v3649 = vpop.f32.mrb[0].mxu0
        %v3650 = vpop.f32.mrb[0].mxu0
        %v3651 = vadd.f32 0.0, %v3650
        %v3652 = vpop.f32.mrb[0].mxu0
        %3653 = vmatprep.mubr.bf16.mxu0 0
        %3654 = vmatmul.mubr.bf16.gmra.mrb[0].mxu0 %v3611
        %v3655 = vpop.f32.mrb[0].mxu0
        %v3656 = vadd.f32 0.0, %v3655
        %v3657 = vpop.f32.mrb[0].mxu0
        %v3658 = vpop.f32.mrb[0].mxu0
        %v3659 = vadd.f32 0.0, %v3658
        %v3660 = vpop.f32.mrb[0].mxu0
        %3661 = vdwg.mxu0
        %v3662 = vmul.f32 %v3648, 0.25
        %v3663 = vmul.f32 %v3651, 0.25
        %v3664 = vmul.f32 %v3656, 0.25
        %v3665 = vmul.f32 %v3659, 0.25
        %v3666 = vsel %vm2813, %v3662, -1e+09
        %v3667 = vsel %vm2814, %v3663, -1e+09
        %v3668 = vsel %vm2815, %v3664, -1e+09
        %v3669 = vsel %vm2816, %v3665, -1e+09
        %v3670 = vsel %vm2940, %v3666, -inf
        %3671 = vmax.xlane.f32.xlu0 %v3670
        %v3672 = vpop.xlane.xlu0 %3671
        %v3673 = vsel %vm2940, %v3667, -inf
        %3674 = vmax.xlane.f32.xlu0 %v3673
        %v3675 = vpop.xlane.xlu0 %3674
        %v3676 = vsel %vm2940, %v3668, -inf
        %3677 = vmax.xlane.f32.xlu0 %v3676
        %v3678 = vpop.xlane.xlu0 %3677
        %v3679 = vsel %vm2940, %v3669, -inf
        %3680 = vmax.xlane.f32.xlu0 %v3679
        %v3681 = vpop.xlane.xlu0 %3680
        %v3682 = vsub.f32 %v3666, %v3672
        %v3683 = vsub.f32 %v3667, %v3675
        %v3684 = vsub.f32 %v3668, %v3678
        %v3685 = vsub.f32 %v3669, %v3681
        %v3686 = vmul.f32 %v3682, 1.442695
        %v3687 = vpow.pop %v3686
        %v3688 = vmul.f32 %v3683, 1.442695
        %v3689 = vpow.pop %v3688
        %v3690 = vmul.f32 %v3684, 1.442695
        %v3691 = vpow.pop %v3690
        %v3692 = vmul.f32 %v3685, 1.442695
        %v3693 = vpow.pop %v3692
        %v3694 = vsel %vm2940, %v3687, 0.0
        %3695 = vadd.xlane.f32.xlu0 %v3694
        %v3696 = vpop.xlane.xlu0 %3695
        %v3697 = vsel %vm2940, %v3689, 0.0
        %3698 = vadd.xlane.f32.xlu0 %v3697
        %v3699 = vpop.xlane.xlu0 %3698
        %v3700 = vsel %vm2940, %v3691, 0.0
        %3701 = vadd.xlane.f32.xlu0 %v3700
        %v3702 = vpop.xlane.xlu0 %3701
        %v3703 = vsel %vm2940, %v3693, 0.0
        %3704 = vadd.xlane.f32.xlu0 %v3703
        %v3705 = vpop.xlane.xlu0 %3704
        %v3706 = vrcp.pop %v3696
        %v3707 = vrcp.pop %v3699
        %v3708 = vrcp.pop %v3702
        %v3709 = vrcp.pop %v3705
        %v3710 = vmul.f32 %v3687, %v3706
        %v3711 = vmul.f32 %v3689, %v3707
        %v3712 = vmul.f32 %v3691, %v3708
        %v3713 = vmul.f32 %v3693, %v3709
        %v3714 = vpack.c.bf16 %v3711, %v3710
        %v3715 = vpack.c.bf16 %v3713, %v3712
        %3716 = vrot.lane.b32.xlu0 %v2987, 80
        %v3717 = vpop.permute.xlu0 %3716
        %3718 = vrot.lane.b32.xlu0 %v2988, 80
        %v3719 = vpop.permute.xlu0 %3718
        %3720 = vrot.lane.b32.xlu0 %v2989, 80
        %v3721 = vpop.permute.xlu0 %3720
        %v3726 = vsel %vm2940, %v3714, 0
        %v3729 = vsel %vm2940, %v3715, 0
        %3731 = vmatprep.subr.bf16.mxu0 0
        %3732 = vmatpush1.bf16.msra.mxu0 %v3717
        %3733 = vmatprep.subr.bf16.mxu0 0
        %3734 = vmatpush1.bf16.msra.mxu0 %v3719
        %3735 = vmatprep.subr.bf16.mxu0 0
        %3736 = vmatpush1.bf16.msra.mxu0 %v3721
        %3737 = vmatprep.subr.bf16.mxu0 0
        %3738 = vmatpush1.bf16.msra.mxu0 0
        %3739 = vmatprep.subr.bf16.mxu0 0
        %3740 = vmatpush1.bf16.msra.mxu0 0
        %3741 = vmatprep.subr.bf16.mxu0 0
        %3742 = vmatpush1.bf16.msra.mxu0 0
        %3743 = vmatprep.subr.bf16.mxu0 0
        %3744 = vmatpush1.bf16.msra.mxu0 0
        %3745 = vmatprep.subr.bf16.mxu0 0
        %3746 = vmatpush1.bf16.msra.mxu0 0
        %3747 = vmatprep.subr.bf16.mxu0 0
        %3748 = vmatpush1.bf16.msra.mxu0 0
        %3749 = vmatprep.subr.bf16.mxu0 0
        %3750 = vmatpush1.bf16.msra.mxu0 0
        %3751 = vmatprep.subr.bf16.mxu0 0
        %3752 = vmatpush1.bf16.msra.mxu0 0
        %3753 = vmatprep.subr.bf16.mxu0 0
        %3754 = vmatpush1.bf16.msra.mxu0 0
        %3755 = vmatprep.subr.bf16.mxu0 0
        %3756 = vmatpush1.bf16.msra.mxu0 0
        %3757 = vmatprep.subr.bf16.mxu0 0
        %3758 = vmatpush1.bf16.msra.mxu0 0
        %3759 = vmatprep.subr.bf16.mxu0 0
        %3760 = vmatpush1.bf16.msra.mxu0 0
        %3761 = vmatprep.subr.bf16.mxu0 0
        %3762 = vmatpush1.bf16.msra.mxu0 0
        %3763 = vmatprep.mubr.bf16.mxu0 0
        %3764 = vmatmul.mubr.bf16.gmra.mrb[0].mxu0 %v3726
        %v3765 = vpop.f32.mrb[0].mxu0
        %v3766 = vadd.f32 0.0, %v3765
        %v3767 = vpop.f32.mrb[0].mxu0
        %v3768 = vpop.f32.mrb[0].mxu0
        %v3769 = vadd.f32 0.0, %v3768
        %v3770 = vpop.f32.mrb[0].mxu0
        %3771 = vmatprep.mubr.bf16.mxu0 0
        %3772 = vmatmul.mubr.bf16.gmra.mrb[0].mxu0 %v3729
        %v3773 = vpop.f32.mrb[0].mxu0
        %v3774 = vadd.f32 0.0, %v3773
        %v3775 = vpop.f32.mrb[0].mxu0
        %v3776 = vpop.f32.mrb[0].mxu0
        %v3777 = vadd.f32 0.0, %v3776
        %v3778 = vpop.f32.mrb[0].mxu0
        %3779 = vdwg.mxu0
        %3784 = vrot.lane.b32.xlu0 %v3766, 48
        %v3785 = vpop.permute.xlu0 %3784
        %3786 = vrot.lane.b32.xlu0 %v3769, 48
        %v3787 = vpop.permute.xlu0 %3786
        %3788 = vrot.lane.b32.xlu0 %v3774, 48
        %v3789 = vpop.permute.xlu0 %3788
        %3790 = vrot.lane.b32.xlu0 %v3777, 48
        %v3791 = vpop.permute.xlu0 %3790
        %vm3796 = vcmask 523648
        %3797 = vst.msk [vmem:[#allocation2] sm:$0xff] %vm3796, %v3785
        %3798 = vst.msk [vmem:[#allocation2 + $0x8] sm:$0xff] %vm3796, %v3787
        %3799 = vst.msk [vmem:[#allocation2 + $0x10] sm:$0xff] %vm3796, %v3789
        %3800 = vst.msk [vmem:[#allocation2 + $0x18] sm:$0xff] %vm3796, %v3791
        %v3801 = vld [vmem:[#allocation2] sm:$0xff]
        %v3802 = vld [vmem:[#allocation2 + $0x8] sm:$0xff]
        %v3803 = vld [vmem:[#allocation2 + $0x10] sm:$0xff]
        %v3804 = vld [vmem:[#allocation2 + $0x18] sm:$0xff]
        %v3805 = vpack.c.bf16 %v3802, %v3801
        %v3806 = vpack.c.bf16 %v3804, %v3803
        %v3807 = vld [vmem:[#allocation35] sm:$0xf]
        %v3808 = vld [vmem:[#allocation35 + $0x4] sm:$0xf]
        %v3809 = vld [vmem:[#allocation35 + $0x8] sm:$0xf]
        %v3810 = vld [vmem:[#allocation35 + $0xc] sm:$0xf]
        %v3811 = vld [vmem:[#allocation35 + $0x10] sm:$0xf]
        %v3812 = vld [vmem:[#allocation35 + $0x14] sm:$0xf]
        %v3813 = vld [vmem:[#allocation35 + $0x18] sm:$0xf]
        %v3814 = vld [vmem:[#allocation35 + $0x1c] sm:$0xf]
        %v3815 = vld [vmem:[#allocation37] sm:$0x1]
        %v3817 = vlaneseq
        %v3818 = vshrl.u32 %v3817, 7
        %v3819 = vsub.s32 0, %v3818
        %v3820 = vrot.slane %v3815, %v3819
        %v3830 = vunpack.c.l.b16 %v3807
        %v3831 = vunpack.c.l.b16 %v3808
        %v3832 = vunpack.c.l.b16 %v3809
        %v3833 = vunpack.c.l.b16 %v3810
        %v3834 = vunpack.c.l.b16 %v3811
        %v3835 = vunpack.c.l.b16 %v3812
        %v3836 = vunpack.c.l.b16 %v3813
        %v3837 = vunpack.c.l.b16 %v3814
        %v3838 = vpack.c.b16 %v3831, %v3830
        %v3839 = vpack.c.b16 %v3833, %v3832
        %v3840 = vpack.c.b16 %v3835, %v3834
        %v3841 = vpack.c.b16 %v3837, %v3836
        %v3847 = vsel %vm1434, %v3805, 0
        %v3850 = vsel %vm1434, %v3806, 0
        %3852 = vmatprep.subr.bf16.mxu0 0
        %3853 = vmatpush1.bf16.msra.mxu0 %v3838
        %3854 = vmatprep.subr.bf16.mxu0 0
        %3855 = vmatpush1.bf16.msra.mxu0 %v3839
        %3856 = vmatprep.subr.bf16.mxu0 0
        %3857 = vmatpush1.bf16.msra.mxu0 %v3840
        %3858 = vmatprep.subr.bf16.mxu0 0
        %3859 = vmatpush1.bf16.msra.mxu0 %v3841
        %3860 = vmatprep.subr.bf16.mxu0 0
        %3861 = vmatpush1.bf16.msra.mxu0 0
        %3862 = vmatprep.subr.bf16.mxu0 0
        %3863 = vmatpush1.bf16.msra.mxu0 0
        %3864 = vmatprep.subr.bf16.mxu0 0
        %3865 = vmatpush1.bf16.msra.mxu0 0
        %3866 = vmatprep.subr.bf16.mxu0 0
        %3867 = vmatpush1.bf16.msra.mxu0 0
        %3868 = vmatprep.subr.bf16.mxu0 0
        %3869 = vmatpush1.bf16.msra.mxu0 0
        %3870 = vmatprep.subr.bf16.mxu0 0
        %3871 = vmatpush1.bf16.msra.mxu0 0
        %3872 = vmatprep.subr.bf16.mxu0 0
        %3873 = vmatpush1.bf16.msra.mxu0 0
        %3874 = vmatprep.subr.bf16.mxu0 0
        %3875 = vmatpush1.bf16.msra.mxu0 0
        %3876 = vmatprep.subr.bf16.mxu0 0
        %3877 = vmatpush1.bf16.msra.mxu0 0
        %3878 = vmatprep.subr.bf16.mxu0 0
        %3879 = vmatpush1.bf16.msra.mxu0 0
        %3880 = vmatprep.subr.bf16.mxu0 0
        %3881 = vmatpush1.bf16.msra.mxu0 0
        %3882 = vmatprep.subr.bf16.mxu0 0
        %3883 = vmatpush1.bf16.msra.mxu0 0
        %3884 = vmatprep.mubr.bf16.mxu0 0
        %3885 = vmatmul.mubr.bf16.gmra.mrb[0].mxu0 %v3847
        %v3886 = vpop.f32.mrb[0].mxu0
        %v3887 = vadd.f32 %v3820, %v3886
        %v3888 = vpop.f32.mrb[0].mxu0
        %v3889 = vpop.f32.mrb[0].mxu0
        %v3890 = vadd.f32 %v3820, %v3889
        %v3891 = vpop.f32.mrb[0].mxu0
        %3892 = vmatprep.mubr.bf16.mxu0 0
        %3893 = vmatmul.mubr.bf16.gmra.mrb[0].mxu0 %v3850
        %v3894 = vpop.f32.mrb[0].mxu0
        %v3895 = vadd.f32 %v3820, %v3894
        %v3896 = vpop.f32.mrb[0].mxu0
        %v3897 = vpop.f32.mrb[0].mxu0
        %v3898 = vadd.f32 %v3820, %v3897
        %v3899 = vpop.f32.mrb[0].mxu0
        %3900 = vdwg.mxu0
        %v3901 = vadd.f32 %v2543, %v3887
        %v3902 = vadd.f32 %v2544, %v3890
        %v3903 = vadd.f32 %v2545, %v3895
        %v3904 = vadd.f32 %v2546, %v3898
        %v3905 = vld [vmem:[%s55] sm:$0x1]
        %v3906 = vld [vmem:[%s57] sm:$0x1]
        %v3907 = vsel %vm1434, %v3901, 0.0
        %3908 = vadd.xlane.f32.xlu0 %v3907
        %v3909 = vpop.xlane.xlu0 %3908
        %v3910 = vsel %vm1434, %v3902, 0.0
        %3911 = vadd.xlane.f32.xlu0 %v3910
        %v3912 = vpop.xlane.xlu0 %3911
        %v3913 = vsel %vm1434, %v3903, 0.0
        %3914 = vadd.xlane.f32.xlu0 %v3913
        %v3915 = vpop.xlane.xlu0 %3914
        %v3916 = vsel %vm1434, %v3904, 0.0
        %3917 = vadd.xlane.f32.xlu0 %v3916
        %v3918 = vpop.xlane.xlu0 %3917
        %v3919 = vmul.f32 %v3909, %v1453
        %v3920 = vmul.f32 %v3912, %v1453
        %v3921 = vmul.f32 %v3915, %v1453
        %v3922 = vmul.f32 %v3918, %v1453
        %v3923 = vsub.f32 %v3901, %v3919
        %v3924 = vsub.f32 %v3902, %v3920
        %v3925 = vsub.f32 %v3903, %v3921
        %v3926 = vsub.f32 %v3904, %v3922
        %v3927 = vmul.f32 %v3923, %v3923
        %v3928 = vmul.f32 %v3924, %v3924
        %v3929 = vmul.f32 %v3925, %v3925
        %v3930 = vmul.f32 %v3926, %v3926
        %v3931 = vsel %vm1434, %v3927, 0.0
        %3932 = vadd.xlane.f32.xlu0 %v3931
        %v3933 = vpop.xlane.xlu0 %3932
        %v3934 = vsel %vm1434, %v3928, 0.0
        %3935 = vadd.xlane.f32.xlu0 %v3934
        %v3936 = vpop.xlane.xlu0 %3935
        %v3937 = vsel %vm1434, %v3929, 0.0
        %3938 = vadd.xlane.f32.xlu0 %v3937
        %v3939 = vpop.xlane.xlu0 %3938
        %v3940 = vsel %vm1434, %v3930, 0.0
        %3941 = vadd.xlane.f32.xlu0 %v3940
        %v3942 = vpop.xlane.xlu0 %3941
        %v3943 = vmul.f32 %v3933, %v1453
        %v3944 = vmul.f32 %v3936, %v1453
        %v3945 = vmul.f32 %v3939, %v1453
        %v3946 = vmul.f32 %v3942, %v1453
        %v3947 = vadd.f32 %v3943, 1e-05
        %v3948 = vadd.f32 %v3944, 1e-05
        %v3949 = vadd.f32 %v3945, 1e-05
        %v3950 = vadd.f32 %v3946, 1e-05
        %v3951 = vrsqrt.pop %v3947
        %v3952 = vrsqrt.pop %v3948
        %v3953 = vrsqrt.pop %v3949
        %v3954 = vrsqrt.pop %v3950
        %v3955 = vmul.f32 %v3923, %v3951
        %v3956 = vmul.f32 %v3924, %v3952
        %v3957 = vmul.f32 %v3925, %v3953
        %v3958 = vmul.f32 %v3926, %v3954
        %v3960 = vlaneseq
        %v3961 = vshrl.u32 %v3960, 7
        %v3962 = vsub.s32 0, %v3961
        %v3963 = vrot.slane %v3905, %v3962
        %v3965 = vmul.f32 %v3955, %v3963
        %v3966 = vmul.f32 %v3956, %v3963
        %v3967 = vmul.f32 %v3957, %v3963
        %v3968 = vmul.f32 %v3958, %v3963
        %v3970 = vlaneseq
        %v3971 = vshrl.u32 %v3970, 7
        %v3972 = vsub.s32 0, %v3971
        %v3973 = vrot.slane %v3906, %v3972
        %v3975 = vadd.f32 %v3965, %v3973
        %v3976 = vadd.f32 %v3966, %v3973
        %v3977 = vadd.f32 %v3967, %v3973
        %v3978 = vadd.f32 %v3968, %v3973
        %v3979 = vpack.c.bf16 %v3976, %v3975
        %v3980 = vpack.c.bf16 %v3978, %v3977
        %v3981 = vld [vmem:[#allocation38] sm:$0xf]
        %v3982 = vld [vmem:[#allocation38 + $0x4] sm:$0xf]
        %v3983 = vld [vmem:[#allocation38 + $0x8] sm:$0xf]
        %v3984 = vld [vmem:[#allocation38 + $0xc] sm:$0xf]
        %v3985 = vld [vmem:[#allocation38 + $0x10] sm:$0xf]
        %v3986 = vld [vmem:[#allocation38 + $0x14] sm:$0xf]
        %v3987 = vld [vmem:[#allocation38 + $0x18] sm:$0xf]
        %v3988 = vld [vmem:[#allocation38 + $0x1c] sm:$0xf]
        %v3989 = vld [vmem:[%s61] sm:$0x1]
        %v3991 = vlaneseq
        %v3992 = vshrl.u32 %v3991, 7
        %v3993 = vsub.s32 0, %v3992
        %v3994 = vrot.slane %v3989, %v3993
        %v4004 = vunpack.c.l.b16 %v3981
        %v4005 = vunpack.c.l.b16 %v3982
        %v4006 = vunpack.c.l.b16 %v3983
        %v4007 = vunpack.c.l.b16 %v3984
        %v4008 = vunpack.c.l.b16 %v3985
        %v4009 = vunpack.c.l.b16 %v3986
        %v4010 = vunpack.c.l.b16 %v3987
        %v4011 = vunpack.c.l.b16 %v3988
        %v4012 = vpack.c.b16 %v4005, %v4004
        %v4013 = vpack.c.b16 %v4007, %v4006
        %v4014 = vpack.c.b16 %v4009, %v4008
        %v4015 = vpack.c.b16 %v4011, %v4010
        %v4021 = vsel %vm1434, %v3979, 0
        %v4024 = vsel %vm1434, %v3980, 0
        %4026 = vmatprep.subr.bf16.mxu0 0
        %4027 = vmatpush1.bf16.msra.mxu0 %v4012
        %4028 = vmatprep.subr.bf16.mxu0 0
        %4029 = vmatpush1.bf16.msra.mxu0 %v4013
        %4030 = vmatprep.subr.bf16.mxu0 0
        %4031 = vmatpush1.bf16.msra.mxu0 %v4014
        %4032 = vmatprep.subr.bf16.mxu0 0
        %4033 = vmatpush1.bf16.msra.mxu0 %v4015
        %4034 = vmatprep.subr.bf16.mxu0 0
        %4035 = vmatpush1.bf16.msra.mxu0 0
        %4036 = vmatprep.subr.bf16.mxu0 0
        %4037 = vmatpush1.bf16.msra.mxu0 0
        %4038 = vmatprep.subr.bf16.mxu0 0
        %4039 = vmatpush1.bf16.msra.mxu0 0
        %4040 = vmatprep.subr.bf16.mxu0 0
        %4041 = vmatpush1.bf16.msra.mxu0 0
        %4042 = vmatprep.subr.bf16.mxu0 0
        %4043 = vmatpush1.bf16.msra.mxu0 0
        %4044 = vmatprep.subr.bf16.mxu0 0
        %4045 = vmatpush1.bf16.msra.mxu0 0
        %4046 = vmatprep.subr.bf16.mxu0 0
        %4047 = vmatpush1.bf16.msra.mxu0 0
        %4048 = vmatprep.subr.bf16.mxu0 0
        %4049 = vmatpush1.bf16.msra.mxu0 0
        %4050 = vmatprep.subr.bf16.mxu0 0
        %4051 = vmatpush1.bf16.msra.mxu0 0
        %4052 = vmatprep.subr.bf16.mxu0 0
        %4053 = vmatpush1.bf16.msra.mxu0 0
        %4054 = vmatprep.subr.bf16.mxu0 0
        %4055 = vmatpush1.bf16.msra.mxu0 0
        %4056 = vmatprep.subr.bf16.mxu0 0
        %4057 = vmatpush1.bf16.msra.mxu0 0
        %4058 = vmatprep.mubr.bf16.mxu0 0
        %4059 = vmatmul.mubr.bf16.gmra.mrb[0].mxu0 %v4021
        %v4060 = vpop.f32.mrb[0].mxu0
        %v4061 = vadd.f32 %v3994, %v4060
        %v4062 = vpop.f32.mrb[0].mxu0
        %v4063 = vpop.f32.mrb[0].mxu0
        %v4064 = vadd.f32 %v3994, %v4063
        %v4065 = vpop.f32.mrb[0].mxu0
        %4066 = vmatprep.mubr.bf16.mxu0 0
        %4067 = vmatmul.mubr.bf16.gmra.mrb[0].mxu0 %v4024
        %v4068 = vpop.f32.mrb[0].mxu0
        %v4069 = vadd.f32 %v3994, %v4068
        %v4070 = vpop.f32.mrb[0].mxu0
        %v4071 = vpop.f32.mrb[0].mxu0
        %v4072 = vadd.f32 %v3994, %v4071
        %v4073 = vpop.f32.mrb[0].mxu0
        %4074 = vdwg.mxu0
        %v4075 = vxor.u32 %v4061, 2147483648
        %v4076 = vxor.u32 %v4064, 2147483648
        %v4077 = vxor.u32 %v4069, 2147483648
        %v4078 = vxor.u32 %v4072, 2147483648
        %v4079 = vmul.f32 %v4075, 1.442695
        %v4080 = vpow.pop %v4079
        %v4081 = vmul.f32 %v4076, 1.442695
        %v4082 = vpow.pop %v4081
        %v4083 = vmul.f32 %v4077, 1.442695
        %v4084 = vpow.pop %v4083
        %v4085 = vmul.f32 %v4078, 1.442695
        %v4086 = vpow.pop %v4085
        %v4087 = vadd.f32 %v4080, 1.0
        %v4088 = vadd.f32 %v4082, 1.0
        %v4089 = vadd.f32 %v4084, 1.0
        %v4090 = vadd.f32 %v4086, 1.0
        %v4091 = vrcp.pop %v4087
        %v4092 = vmul.f32 1.0, %v4091
        %v4093 = vrcp.pop %v4088
        %v4094 = vmul.f32 1.0, %v4093
        %v4095 = vrcp.pop %v4089
        %v4096 = vmul.f32 1.0, %v4095
        %v4097 = vrcp.pop %v4090
        %v4098 = vmul.f32 1.0, %v4097
        %v4099 = vmul.f32 %v4061, %v4092
        %v4100 = vmul.f32 %v4064, %v4094
        %v4101 = vmul.f32 %v4069, %v4096
        %v4102 = vmul.f32 %v4072, %v4098
        %v4103 = vpack.c.bf16 %v4100, %v4099
        %v4104 = vpack.c.bf16 %v4102, %v4101
        %v4105 = vld [vmem:[%s63] sm:$0xf]
        %v4106 = vld [vmem:[%s63 + $0x4] sm:$0xf]
        %v4107 = vld [vmem:[%s63 + $0x8] sm:$0xf]
        %v4108 = vld [vmem:[%s63 + $0xc] sm:$0xf]
        %v4109 = vld [vmem:[%s63 + $0x10] sm:$0xf]
        %v4110 = vld [vmem:[%s63 + $0x14] sm:$0xf]
        %v4111 = vld [vmem:[%s63 + $0x18] sm:$0xf]
        %v4112 = vld [vmem:[%s63 + $0x1c] sm:$0xf]
        %v4113 = vld [vmem:[%s63 + $0x20] sm:$0xf]
        %v4114 = vld [vmem:[%s63 + $0x24] sm:$0xf]
        %v4115 = vld [vmem:[%s63 + $0x28] sm:$0xf]
        %v4116 = vld [vmem:[%s63 + $0x2c] sm:$0xf]
        %v4117 = vld [vmem:[%s63 + $0x30] sm:$0xf]
        %v4118 = vld [vmem:[%s63 + $0x34] sm:$0xf]
        %v4119 = vld [vmem:[%s63 + $0x38] sm:$0xf]
        %v4120 = vld [vmem:[%s63 + $0x3c] sm:$0xf]
        %v4121 = vld [vmem:[%s65] sm:$0x1]
        %v4123 = vlaneseq
        %v4124 = vshrl.u32 %v4123, 7
        %v4125 = vsub.s32 0, %v4124
        %v4126 = vrot.slane %v4121, %v4125
        %v4144 = vunpack.c.l.b16 %v4105
        %v4145 = vunpack.c.l.b16 %v4106
        %v4146 = vunpack.c.l.b16 %v4107
        %v4147 = vunpack.c.l.b16 %v4108
        %v4148 = vunpack.c.l.b16 %v4109
        %v4149 = vunpack.c.l.b16 %v4110
        %v4150 = vunpack.c.l.b16 %v4111
        %v4151 = vunpack.c.l.b16 %v4112
        %v4152 = vunpack.c.l.b16 %v4113
        %v4153 = vunpack.c.l.b16 %v4114
        %v4154 = vunpack.c.l.b16 %v4115
        %v4155 = vunpack.c.l.b16 %v4116
        %v4156 = vunpack.c.l.b16 %v4117
        %v4157 = vunpack.c.l.b16 %v4118
        %v4158 = vunpack.c.l.b16 %v4119
        %v4159 = vunpack.c.l.b16 %v4120
        %v4160 = vpack.c.b16 %v4145, %v4144
        %v4161 = vpack.c.b16 %v4147, %v4146
        %v4162 = vpack.c.b16 %v4149, %v4148
        %v4163 = vpack.c.b16 %v4151, %v4150
        %v4164 = vpack.c.b16 %v4153, %v4152
        %v4165 = vpack.c.b16 %v4155, %v4154
        %v4166 = vpack.c.b16 %v4157, %v4156
        %v4167 = vpack.c.b16 %v4159, %v4158
        %4176 = vmatprep.subr.bf16.mxu0 0
        %4177 = vmatpush1.bf16.msra.mxu0 %v4160
        %4178 = vmatprep.subr.bf16.mxu0 0
        %4179 = vmatpush1.bf16.msra.mxu0 %v4161
        %4180 = vmatprep.subr.bf16.mxu0 0
        %4181 = vmatpush1.bf16.msra.mxu0 %v4162
        %4182 = vmatprep.subr.bf16.mxu0 0
        %4183 = vmatpush1.bf16.msra.mxu0 %v4163
        %4184 = vmatprep.subr.bf16.mxu0 0
        %4185 = vmatpush1.bf16.msra.mxu0 %v4164
        %4186 = vmatprep.subr.bf16.mxu0 0
        %4187 = vmatpush1.bf16.msra.mxu0 %v4165
        %4188 = vmatprep.subr.bf16.mxu0 0
        %4189 = vmatpush1.bf16.msra.mxu0 %v4166
        %4190 = vmatprep.subr.bf16.mxu0 0
        %4191 = vmatpush1.bf16.msra.mxu0 %v4167
        %4192 = vmatprep.subr.bf16.mxu0 0
        %4193 = vmatpush1.bf16.msra.mxu0 0
        %4194 = vmatprep.subr.bf16.mxu0 0
        %4195 = vmatpush1.bf16.msra.mxu0 0
        %4196 = vmatprep.subr.bf16.mxu0 0
        %4197 = vmatpush1.bf16.msra.mxu0 0
        %4198 = vmatprep.subr.bf16.mxu0 0
        %4199 = vmatpush1.bf16.msra.mxu0 0
        %4200 = vmatprep.subr.bf16.mxu0 0
        %4201 = vmatpush1.bf16.msra.mxu0 0
        %4202 = vmatprep.subr.bf16.mxu0 0
        %4203 = vmatpush1.bf16.msra.mxu0 0
        %4204 = vmatprep.subr.bf16.mxu0 0
        %4205 = vmatpush1.bf16.msra.mxu0 0
        %4206 = vmatprep.subr.bf16.mxu0 0
        %4207 = vmatpush1.bf16.msra.mxu0 0
        %4208 = vmatprep.mubr.bf16.mxu0 0
        %4209 = vmatmul.mubr.bf16.gmra.mrb[0].mxu0 %v4103
        %v4210 = vpop.f32.mrb[0].mxu0
        %v4211 = vadd.f32 %v4126, %v4210
        %v4212 = vpop.f32.mrb[0].mxu0
        %v4213 = vpop.f32.mrb[0].mxu0
        %v4214 = vadd.f32 %v4126, %v4213
        %v4215 = vpop.f32.mrb[0].mxu0
        %4216 = vmatprep.mubr.bf16.mxu0 0
        %4217 = vmatmul.mubr.bf16.gmra.mrb[0].mxu0 %v4104
        %v4218 = vpop.f32.mrb[0].mxu0
        %v4219 = vadd.f32 %v4126, %v4218
        %v4220 = vpop.f32.mrb[0].mxu0
        %v4221 = vpop.f32.mrb[0].mxu0
        %v4222 = vadd.f32 %v4126, %v4221
        %v4223 = vpop.f32.mrb[0].mxu0
        %4224 = vdwg.mxu0
        %v4225 = vmul.f32 %v4211, 0.5
        %v4226 = vmul.f32 %v4214, 0.5
        %v4227 = vmul.f32 %v4219, 0.5
        %v4228 = vmul.f32 %v4222, 0.5
        %v4229 = vadd.f32 %v3901, %v4225
        %v4230 = vadd.f32 %v3902, %v4226
        %v4231 = vadd.f32 %v3903, %v4227
        %v4232 = vadd.f32 %v3904, %v4228
        %v4233 = vld [vmem:[%s67] sm:$0x1]
        %v4234 = vld [vmem:[%s69] sm:$0x1]
        %v4235 = vsel %vm1434, %v4229, 0.0
        %4236 = vadd.xlane.f32.xlu0 %v4235
        %v4237 = vpop.xlane.xlu0 %4236
        %v4238 = vsel %vm1434, %v4230, 0.0
        %4239 = vadd.xlane.f32.xlu0 %v4238
        %v4240 = vpop.xlane.xlu0 %4239
        %v4241 = vsel %vm1434, %v4231, 0.0
        %4242 = vadd.xlane.f32.xlu0 %v4241
        %v4243 = vpop.xlane.xlu0 %4242
        %v4244 = vsel %vm1434, %v4232, 0.0
        %4245 = vadd.xlane.f32.xlu0 %v4244
        %v4246 = vpop.xlane.xlu0 %4245
        %v4247 = vmul.f32 %v4237, %v1453
        %v4248 = vmul.f32 %v4240, %v1453
        %v4249 = vmul.f32 %v4243, %v1453
        %v4250 = vmul.f32 %v4246, %v1453
        %v4251 = vsub.f32 %v4229, %v4247
        %v4252 = vsub.f32 %v4230, %v4248
        %v4253 = vsub.f32 %v4231, %v4249
        %v4254 = vsub.f32 %v4232, %v4250
        %v4255 = vmul.f32 %v4251, %v4251
        %v4256 = vmul.f32 %v4252, %v4252
        %v4257 = vmul.f32 %v4253, %v4253
        %v4258 = vmul.f32 %v4254, %v4254
        %v4259 = vsel %vm1434, %v4255, 0.0
        %4260 = vadd.xlane.f32.xlu0 %v4259
        %v4261 = vpop.xlane.xlu0 %4260
        %v4262 = vsel %vm1434, %v4256, 0.0
        %4263 = vadd.xlane.f32.xlu0 %v4262
        %v4264 = vpop.xlane.xlu0 %4263
        %v4265 = vsel %vm1434, %v4257, 0.0
        %4266 = vadd.xlane.f32.xlu0 %v4265
        %v4267 = vpop.xlane.xlu0 %4266
        %v4268 = vsel %vm1434, %v4258, 0.0
        %4269 = vadd.xlane.f32.xlu0 %v4268
        %v4270 = vpop.xlane.xlu0 %4269
        %v4271 = vmul.f32 %v4261, %v1453
        %v4272 = vmul.f32 %v4264, %v1453
        %v4273 = vmul.f32 %v4267, %v1453
        %v4274 = vmul.f32 %v4270, %v1453
        %v4275 = vadd.f32 %v4271, 1e-05
        %v4276 = vadd.f32 %v4272, 1e-05
        %v4277 = vadd.f32 %v4273, 1e-05
        %v4278 = vadd.f32 %v4274, 1e-05
        %v4279 = vrsqrt.pop %v4275
        %v4280 = vrsqrt.pop %v4276
        %v4281 = vrsqrt.pop %v4277
        %v4282 = vrsqrt.pop %v4278
        %v4283 = vmul.f32 %v4251, %v4279
        %v4284 = vmul.f32 %v4252, %v4280
        %v4285 = vmul.f32 %v4253, %v4281
        %v4286 = vmul.f32 %v4254, %v4282
        %v4288 = vlaneseq
        %v4289 = vshrl.u32 %v4288, 7
        %v4290 = vsub.s32 0, %v4289
        %v4291 = vrot.slane %v4233, %v4290
        %v4293 = vmul.f32 %v4283, %v4291
        %v4294 = vmul.f32 %v4284, %v4291
        %v4295 = vmul.f32 %v4285, %v4291
        %v4296 = vmul.f32 %v4286, %v4291
        %v4298 = vlaneseq
        %v4299 = vshrl.u32 %v4298, 7
        %v4300 = vsub.s32 0, %v4299
        %v4301 = vrot.slane %v4234, %v4300
        %v4303 = vadd.f32 %v4293, %v4301
        %v4304 = vadd.f32 %v4294, %v4301
        %v4305 = vadd.f32 %v4295, %v4301
        %v4306 = vadd.f32 %v4296, %v4301
        %vm4307 = vcmp.lt.s32.totalorder %v1425, %v2809
        %vm4308 = vcmp.lt.s32.totalorder %v1426, %v2809
        %vm4309 = vcmp.lt.s32.totalorder %v1427, %v2809
        %vm4310 = vcmp.lt.s32.totalorder %v1428, %v2809
        %v4311 = vsel %vm4307, 1, 0
        %v4312 = vsel %vm4308, 1, 0
        %v4313 = vsel %vm4309, 1, 0
        %v4314 = vsel %vm4310, 1, 0
        %vm4315 = vcmp.eq.s32.totalorder %v4311, 1
        %vm4316 = vcmp.eq.s32.totalorder %v4312, 1
        %vm4317 = vcmp.eq.s32.totalorder %v4313, 1
        %vm4318 = vcmp.eq.s32.totalorder %v4314, 1
        %v4319 = vsel %vm4315, %v4303, 0.0
        %v4320 = vsel %vm4316, %v4304, 0.0
        %v4321 = vsel %vm4317, %v4305, 0.0
        %v4322 = vsel %vm4318, %v4306, 0.0
        %4323 = vst.msk [vmem:[%s1379] sm:$0xff] %vm1434, %v4319
        %4324 = vst.msk [vmem:[%s1379 + $0x8] sm:$0xff] %vm1434, %v4320
        %4325 = vst.msk [vmem:[%s1379 + $0x10] sm:$0xff] %vm1434, %v4321
        %4326 = vst.msk [vmem:[%s1379 + $0x18] sm:$0xff] %vm1434, %v4322
        %s4327 = sand.u32 %s851, 1
        %s4328 = scalar_lea.sflag [#allocation7], %s4327
        %s4329 = sand.u32 %s851, 1
        %s4330 = smul.addr %s4329, 32
        %s4331 = scalar_lea.vmem [#allocation40], %s4330
        // Predicated region
        $region245: #{tpu_custom_call.1} parent=155 // pred_check
          %p4332 = pneg %p861
        $region246: #{tpu_custom_call.1} parent=155 // pred_check_branch
          %4334 = sbr.rel (%p4332) target = $region248
        $region247: #{tpu_custom_call.1} parent=155 // pred_region
          %s4335 = smul.u32 4, %s106
          %s4337 = ssub.s32 512, 512
          %4338 = vsyncadd %s4328, %s4337
          %s4339 = smul.addr %s105, 8
          %s4340 = sadd.s32 %s4335, %s4339
          %s4341 = smul.addr %s4340, 128
          %s4342 = scalar_lea.hbm %s71, %s4341
          %s4343 = sshll.u32 %s4331, 4
          %s4344 = int_to_ptr.vmem [resolvable:$true] %s4343
          %4349 = dma.vmem_to_hbm [thread:$0]  %s4344, 512, %s4342, %s4328, 128, 128, 8
        $region248: #{tpu_custom_call.1} parent=155 // pred_fallthru
          _
      $region156: #{tpu_custom_call.1} parent=5 // pred_fallthru
        _
      %p4350 = scmp.le.s32.totalorder 2, %s96
      // Predicated region
      $region249: #{tpu_custom_call.1} parent=5 // pred_check
        %p4351 = pneg %p4350
      $region250: #{tpu_custom_call.1} parent=5 // pred_check_branch
        %4353 = sbr.rel (%p4351) target = $region252
      $region251: #{tpu_custom_call.1} parent=5 // pred_region
        %s4354 = ssub.s32 %s96, 2
        // Predicated region
        $region253: #{tpu_custom_call.1} parent=251 // pred_check
          %p4355 = pneg %p867
        $region254: #{tpu_custom_call.1} parent=251 // pred_check_branch
          %4357 = sbr.rel (%p4355) target = $region256
        $region255: #{tpu_custom_call.1} parent=251 // pred_region
          %s4358 = sand.u32 %s852, 1
          %s4359 = scalar_lea.sflag [#allocation7], %s4358
          %s4360 = sand.u32 %s852, 1
          %s4361 = smul.addr %s4360, 32
          %s4362 = scalar_lea.vmem [#allocation40], %s4361
          %4363 = dma.done %s4359, 512
        $region256: #{tpu_custom_call.1} parent=251 // pred_fallthru
          _
      $region252: #{tpu_custom_call.1} parent=5 // pred_fallthru
        _
    $region6: #{tpu_custom_call.1} parent=1 // loop_footer
      %s100 = sadd.s32 1, %s96
    $region7: #{tpu_custom_call.1} parent=1 // loop_footer_branch
      %95 = sbr.rel target = $region3
    $region8: #{tpu_custom_call.1} parent=1 // loop_exit
      _
    %4364 = vsyncpa [#allocation6], 1
    %s4365 = scalar_lea.sflag [#allocation6], 1
    %4366 = vsyncpa %s4365, 1
    %4367 = vsyncpa [#allocation9], 1
    %4368 = vsyncpa [#allocation12], 1
    %4369 = vsyncpa [#allocation15], 1
    %4370 = vsyncpa [#allocation18], 1
    %4371 = vsyncpa [#allocation21], 1
    %4372 = vsyncpa [#allocation24], 1
    %4373 = vsyncpa [#allocation27], 1
    %4374 = vsyncpa [#allocation30], 1
    %4375 = vsyncpa [#allocation33], 1
    %4376 = vsyncpa [#allocation36], 1
    %4377 = vsyncpa [#allocation39], 1
    %4378 = vsyncpa [#allocation7], 1
    %s4379 = scalar_lea.sflag [#allocation7], 1
    %4380 = vsyncpa %s4379, 1

</llo_original>
